<compile_context>
chip_gen: v7x
topology: tpu7x:2x2x1
jax: 0.10.0
libtpu: 0.0.40
codegen_flags: <defaults>
</compile_context>

<pallas_src>
import functools
import math

import jax
import jax.numpy as jnp
from jax.experimental import pallas as pl
from jax.experimental.pallas import tpu as pltpu


# ------------------------- kernel 1: fused q / kv projections -------------------------

def _qkv_proj_kernel(x_ref, wqa_ref, gq_ref, wqbn_ref, wqbr_ref, wukt_ref,
                     wkvc_ref, wkpe_ref, gkv_ref,
                     ql_ref, qpe_ref, kvc_ref, kpe_ref, *, eps, H, nope):
    x = x_ref[...].astype(jnp.bfloat16)

    # query path: q_a_proj -> RMSNorm -> q_b_proj (nope/rope column groups) -> W_UK_T up-proj
    cq = jnp.dot(x, wqa_ref[...], preferred_element_type=jnp.float32)          # (T, q_lora)
    var_q = jnp.mean(cq * cq, axis=-1, keepdims=True)
    qc = (cq * jax.lax.rsqrt(var_q + eps) * gq_ref[...]).astype(jnp.bfloat16)
    qpe_ref[...] = jnp.dot(qc, wqbr_ref[...], preferred_element_type=jnp.float32)   # (T, H*rope)
    qn_all = jnp.dot(qc, wqbn_ref[...], preferred_element_type=jnp.float32)         # (T, H*nope)
    for h in range(H):                                                               # H is tiny/static
        qn_h = qn_all[:, h * nope:(h + 1) * nope].astype(jnp.bfloat16)
        ql_ref[:, h, :] = jnp.dot(qn_h, wukt_ref[h], preferred_element_type=jnp.float32)

    # kv path: kv_a_proj (latent + rope columns) -> RMSNorm on the latent part only
    kv_c = jnp.dot(x, wkvc_ref[...], preferred_element_type=jnp.float32)             # (T, r)
    kpe_ref[...] = jnp.dot(x, wkpe_ref[...], preferred_element_type=jnp.float32)     # (T, rope)
    var_kv = jnp.mean(kv_c * kv_c, axis=-1, keepdims=True)
    kvc_ref[...] = kv_c * jax.lax.rsqrt(var_kv + eps) * gkv_ref[...]


def qkv_proj(x, p, H, nope, rope, r, eps=1e-6):
    T, dim = x.shape
    q_lora = p["wqa_t"].shape[1]
    kernel = functools.partial(_qkv_proj_kernel, eps=eps, H=H, nope=nope)
    return pl.pallas_call(
        kernel,
        out_shape=(jax.ShapeDtypeStruct((T, H, r), jnp.float32),
                   jax.ShapeDtypeStruct((T, H * rope), jnp.float32),
                   jax.ShapeDtypeStruct((T, r), jnp.float32),
                   jax.ShapeDtypeStruct((T, rope), jnp.float32)),
        grid=(1,),
        in_specs=[pl.BlockSpec((T, dim), lambda i: (0, 0)),
                  pl.BlockSpec((dim, q_lora), lambda i: (0, 0)),
                  pl.BlockSpec((1, q_lora), lambda i: (0, 0)),
                  pl.BlockSpec((q_lora, H * nope), lambda i: (0, 0)),
                  pl.BlockSpec((q_lora, H * rope), lambda i: (0, 0)),
                  pl.BlockSpec((H, nope, r), lambda i: (0, 0, 0)),
                  pl.BlockSpec((dim, r), lambda i: (0, 0)),
                  pl.BlockSpec((dim, rope), lambda i: (0, 0)),
                  pl.BlockSpec((1, r), lambda i: (0, 0))],
        out_specs=(pl.BlockSpec((T, H, r), lambda i: (0, 0, 0)),
                   pl.BlockSpec((T, H * rope), lambda i: (0, 0)),
                   pl.BlockSpec((T, r), lambda i: (0, 0)),
                   pl.BlockSpec((T, rope), lambda i: (0, 0))),
    )(x, p["wqa_t"], p["q_a_gamma"], p["wqb_nope_t"], p["wqb_rope_t"], p["W_UK_T"],
      p["wkva_c_t"], p["wkva_pe_t"], p["kv_a_gamma"])


# ------------------- kernel 2: in-place paged KV-cache scatter (page=1) -------------------

def _cache_scatter_kernel(slots_ref, rows_ref, cache_in_ref, cache_out_ref, sem):
    del cache_in_ref  # aliased with cache_out_ref; untouched rows keep their old contents
    n = rows_ref.shape[0]
    for t in range(n):                      # static, small decode batch
        pltpu.make_async_copy(rows_ref.at[pl.ds(t, 1), :],
                              cache_out_ref.at[pl.ds(slots_ref[t], 1), :],
                              sem.at[t % 2]).start()
    for t in range(n):
        pltpu.make_async_copy(rows_ref.at[pl.ds(t, 1), :],
                              cache_out_ref.at[pl.ds(slots_ref[t], 1), :],
                              sem.at[t % 2]).wait()


def cache_scatter(rows, slot_mapping, cache_flat):
    S, D = cache_flat.shape
    return pl.pallas_call(
        _cache_scatter_kernel,
        out_shape=jax.ShapeDtypeStruct((S, D), cache_flat.dtype),
        in_specs=[pl.BlockSpec(memory_space=pltpu.MemorySpace.SMEM),
                  pl.BlockSpec(memory_space=pltpu.MemorySpace.VMEM),
                  pl.BlockSpec(memory_space=pl.ANY)],
        out_specs=pl.BlockSpec(memory_space=pl.ANY),
        scratch_shapes=[pltpu.SemaphoreType.DMA((2,))],
        # cache input (index 2) aliased to output 0 -> in-place rows update, no full-cache copy
        # (truly in place when the cache buffer is donated in a serving loop).
        input_output_aliases={2: 0},
    )(slot_mapping, rows, cache_flat)


# ---------------------- kernel 3: paged MLA decode attention ----------------------

def _mla_decode_kernel(bt_ref, ctx_ref, ql_ref, qpe_ref, cache_ref, o_ref,
                       kbuf, sem, *, sm_scale, r):
    b = pl.program_id(0)
    ctx = ctx_ref[b]
    lmax = kbuf.shape[0]

    def row_copy(l, slot):
        return pltpu.make_async_copy(
            cache_ref.at[pl.ds(bt_ref[b, l], 1), :],
            kbuf.at[pl.ds(l, 1), :],
            sem.at[slot])

    # double-buffered gather of exactly ctx latent rows (page_size = 1); padding rows skipped
    @pl.when(ctx > 0)
    def _():
        row_copy(0, 0).start()

    @pl.loop(0, ctx)
    def _(l):
        slot = l % 2

        @pl.when(l + 1 < ctx)
        def _():
            row_copy(l + 1, 1 - slot).start()

        row_copy(l, slot).wait()

    # sm_scale folded into q (smaller than the (H, L) score tile)
    qn = ql_ref[0].astype(jnp.float32) * sm_scale          # (H, r)
    qp = qpe_ref[0].astype(jnp.float32) * sm_scale         # (H, rope)

    # zero un-gathered rows so stale scratch can never poison P @ V (and scores get -inf below)
    valid = jax.lax.broadcasted_iota(jnp.int32, (lmax, 1), 0) < ctx
    kc = jnp.where(valid, kbuf[:, :r], 0.0)                # (Lmax, r)   -- also V (latent)
    kp = jnp.where(valid, kbuf[:, r:], 0.0)                # (Lmax, rope)

    # two MXU pushes into the same f32 accumulator == one wider dot; avoids the q concat
    s = (jax.lax.dot_general(qn, kc, (((1,), (1,)), ((), ())),
                             preferred_element_type=jnp.float32) +
         jax.lax.dot_general(qp, kp, (((1,), (1,)), ((), ())),
                             preferred_element_type=jnp.float32))        # (H, Lmax)
    pos = jax.lax.broadcasted_iota(jnp.int32, s.shape, 1)
    s = jnp.where(pos < ctx, s, -jnp.inf)

    m = jnp.max(s, axis=-1, keepdims=True)
    p = jnp.exp(s - m)
    denom = jnp.maximum(jnp.sum(p, axis=-1, keepdims=True), 1e-30)       # guard (decode has ctx>=1)
    o = jnp.dot(p, kc, preferred_element_type=jnp.float32)               # V == K[:, :r], no extra copy
    o_ref[0] = o * pl.reciprocal(denom, approx=True)                     # EUP slot, ~free


def mla_decode(q_latent, q_pe, cache_flat, block_tables, context_lens, sm_scale):
    B, H, r = q_latent.shape
    rope = q_pe.shape[2]
    Lmax = block_tables.shape[1]
    D = cache_flat.shape[1]
    kernel = functools.partial(_mla_decode_kernel, sm_scale=sm_scale, r=r)
    return pl.pallas_call(
        kernel,
        out_shape=jax.ShapeDtypeStruct((B, H, r), jnp.float32),
        grid_spec=pltpu.PrefetchScalarGridSpec(
            num_scalar_prefetch=2,                       # block_tables, context_lens
            grid=(B,),
            in_specs=[pl.BlockSpec((1, H, r), lambda b, bt, ctx: (b, 0, 0)),
                      pl.BlockSpec((1, H, rope), lambda b, bt, ctx: (b, 0, 0)),
                      pl.BlockSpec(memory_space=pl.ANY)],            # latent cache stays in HBM
            out_specs=pl.BlockSpec((1, H, r), lambda b, bt, ctx: (b, 0, 0)),
            scratch_shapes=[pltpu.VMEM((Lmax, D), cache_flat.dtype),
                            pltpu.SemaphoreType.DMA((2,))]),
        compiler_params=pltpu.CompilerParams(
            dimension_semantics=("parallel",),           # sequences independent (2 TCs on v7x)
            vmem_limit_bytes=32 * 1024 * 1024),
    )(block_tables, context_lens, q_latent, q_pe, cache_flat)


# --------------------- kernel 4: fused W_UV up-projection + o_proj ---------------------

def _o_proj_kernel(o_ref, wuv_ref, wo_ref, out_ref, *, H, v):
    T = o_ref.shape[0]
    dim = out_ref.shape[1]
    acc = jnp.zeros((T, dim), jnp.float32)
    for h in range(H):
        oh = o_ref[:, h, :].astype(jnp.bfloat16)                               # (T, r)
        ov = jnp.dot(oh, wuv_ref[h], preferred_element_type=jnp.float32)       # (T, v)
        acc = acc + jnp.dot(ov.astype(jnp.bfloat16), wo_ref[h * v:(h + 1) * v, :],
                            preferred_element_type=jnp.float32)
    out_ref[...] = acc


def o_proj_fused(o, w_uv, wo_t):
    T, H, r = o.shape
    v = w_uv.shape[2]
    dim = wo_t.shape[1]
    kernel = functools.partial(_o_proj_kernel, H=H, v=v)
    return pl.pallas_call(
        kernel,
        out_shape=jax.ShapeDtypeStruct((T, dim), jnp.float32),
        grid=(1,),
        in_specs=[pl.BlockSpec((T, H, r), lambda i: (0, 0, 0)),
                  pl.BlockSpec((H, r, v), lambda i: (0, 0, 0)),
                  pl.BlockSpec((H * v, dim), lambda i: (0, 0))],
        out_specs=pl.BlockSpec((T, dim), lambda i: (0, 0)),
    )(o, w_uv, wo_t)


# ----------------------------- glue (plain JAX, fused by jit) -----------------------------

def apply_rotary_emb(x, freqs_cos, freqs_sin):
    """Mirrors torch view_as_complex multiply.
    x: (d0, d1, d2, rope_dim) with interleaved (re, im) pairs; freqs_*: (d1, rope_dim // 2)."""
    d0, d1, d2, rd = x.shape
    xp = x.reshape(d0, d1, d2, rd // 2, 2)
    x_re, x_im = xp[..., 0], xp[..., 1]
    fc = freqs_cos.reshape(1, d1, 1, rd // 2)
    fs = freqs_sin.reshape(1, d1, 1, rd // 2)
    y_re = x_re * fc - x_im * fs
    y_im = x_re * fs + x_im * fc
    return jnp.stack([y_re, y_im], axis=-1).reshape(d0, d1, d2, rd)


class Z100MLAConfig:
    hidden_size = 64
    num_attention_heads = 4
    q_lora_rank = 32
    kv_lora_rank = 64
    qk_nope_head_dim = 32
    qk_rope_head_dim = 16
    v_head_dim = 32
    max_batch_size = 4
    max_position_embeddings = 16
    original_seq_len = 32          # >= max_position_embeddings -> no mscale adjustment
    rope_factor = 1.0
    mscale = 1.0
    tensor_parallel_size = 1


def init_params(cfg, key):
    """bf16 weights, pre-transposed / regrouped at init (pure weight preprocessing, like the
    module's own W_UK_T / W_UV derivation) so no transpose is materialized at runtime."""
    H = cfg.num_attention_heads
    nope, rope = cfg.qk_nope_head_dim, cfg.qk_rope_head_dim
    v, r = cfg.v_head_dim, cfg.kv_lora_rank
    qk = nope + rope
    ks = jax.random.split(key, 5)
    std = 0.02
    wdt = jnp.bfloat16

    q_a = std * jax.random.normal(ks[0], (cfg.q_lora_rank, cfg.hidden_size), jnp.float32)
    q_b = std * jax.random.normal(ks[1], (H * qk, cfg.q_lora_rank), jnp.float32)
    kv_a = std * jax.random.normal(ks[2], (r + rope, cfg.hidden_size), jnp.float32)
    kv_b = std * jax.random.normal(ks[3], (H * (nope + v), r), jnp.float32)
    o_w = std * jax.random.normal(ks[4], (cfg.hidden_size, H * v), jnp.float32)

    p = {}
    p["wqa_t"] = q_a.T.astype(wdt)                                   # (dim, q_lora)
    p["q_a_gamma"] = jnp.ones((1, cfg.q_lora_rank), jnp.float32)
    kv_a_t = kv_a.T                                                  # (dim, r + rope)
    p["wkva_c_t"] = kv_a_t[:, :r].astype(wdt)                        # (dim, r)
    p["wkva_pe_t"] = kv_a_t[:, r:].astype(wdt)                       # (dim, rope)
    p["kv_a_gamma"] = jnp.ones((1, r), jnp.float32)

    # q_b columns regrouped per head into nope / rope blocks (column permutation only).
    q_b_t = q_b.T.reshape(cfg.q_lora_rank, H, qk)
    p["wqb_nope_t"] = q_b_t[..., :nope].reshape(cfg.q_lora_rank, H * nope).astype(wdt)
    p["wqb_rope_t"] = q_b_t[..., nope:].reshape(cfg.q_lora_rank, H * rope).astype(wdt)

    # W_UK_T / W_UV derived exactly as Z100_MLA.__init__ does.
    kv_b_w = kv_b.T.reshape(r, H, nope + v)
    W_UK = kv_b_w[..., :nope]                                        # (r, H, nope)
    W_UV = kv_b_w[..., nope:]                                        # (r, H, v)
    p["W_UV"] = jnp.transpose(W_UV, (1, 0, 2)).astype(wdt)           # (H, r, v)
    p["W_UK_T"] = jnp.transpose(W_UK, (1, 2, 0)).astype(wdt)         # (H, nope, r)
    p["wo_t"] = o_w.T.astype(wdt)                                    # (H*v, dim)
    return p


def mla_forward(cfg, params, x, freqs_cos, freqs_sin,
                slot_mapping, block_tables, context_lens, kv_cache):
    """Reproduces Z100_MLA.forward (decode path). Returns (out (T, dim), updated cache)."""
    H = cfg.num_attention_heads
    r = cfg.kv_lora_rank
    rope = cfg.qk_rope_head_dim
    nope = cfg.qk_nope_head_dim
    qk_head_dim = nope + rope
    softmax_scale = qk_head_dim ** (-0.5)
    if cfg.max_position_embeddings > cfg.original_seq_len:
        mscale = 0.1 * cfg.mscale * math.log(cfg.rope_factor) + 1.0
        softmax_scale = softmax_scale * mscale * mscale

    bsz, seqlen, dim = x.shape
    T = bsz * seqlen
    xf = x.reshape(T, dim)

    # (1) fused projections + norms + per-head latent up-projection.
    ql, q_pe_flat, kv_c_normed, k_pe = qkv_proj(xf, params, H, nope, rope, r)
    q_pe = q_pe_flat.reshape(T, H, rope)

    # rotary embeddings (elementwise glue; fused by XLA under jit).
    q_pe = apply_rotary_emb(q_pe[None], freqs_cos, freqs_sin)[0]                     # (T, H, rope)
    k_pe = apply_rotary_emb(k_pe.reshape(bsz, seqlen, 1, rope),
                            freqs_cos, freqs_sin).reshape(T, rope)                   # (T, rope)

    # (2) in-place paged cache write (page_size = 1).
    new_rows = jnp.concatenate([kv_c_normed, k_pe], axis=-1)                         # (T, r+rope)
    cache_flat = kv_cache.reshape(kv_cache.shape[0], r + rope)
    cache_flat = cache_scatter(new_rows, slot_mapping, cache_flat)
    kv_cache_new = cache_flat.reshape(kv_cache.shape)

    # (3) paged decode attention straight off the cache (in-kernel gather, V == K[:, :r]).
    o = mla_decode(ql, q_pe, cache_flat, block_tables, context_lens, softmax_scale)  # (T, H, r)

    # (4) fused W_UV up-projection + o_proj.
    out = o_proj_fused(o, params["W_UV"], params["wo_t"])                            # (T, dim)
    return out, kv_cache_new


# ----------------------------------------- main -----------------------------------------

if __name__ == "__main__":
    cfg = Z100MLAConfig()
    key = jax.random.PRNGKey(0)
    k_param, k_x, k_cache = jax.random.split(key, 3)

    params = init_params(cfg, k_param)

    # Two sequences, each decoding one new token -> x is (bsz=1, num_tokens=2, hidden).
    num_tokens = 2
    x = jax.random.normal(k_x, (1, num_tokens, cfg.hidden_size), jnp.float32)

    # Paged latent KV cache (cache_size slots, page_size=1), pre-filled with prior context.
    cache_size = cfg.max_batch_size * cfg.max_position_embeddings
    D = cfg.kv_lora_rank + cfg.qk_rope_head_dim
    kv_cache = 0.1 * jax.random.normal(k_cache, (cache_size, 1, 1, D), jnp.float32)

    # seq0: 3 tokens in slots [0,1,2] (current at 2); seq1: 5 tokens in slots [8..12] (current at 12).
    context_lens = jnp.array([3, 5], dtype=jnp.int32)
    slot_mapping = jnp.array([2, 12], dtype=jnp.int32)
    Lmax = cfg.max_position_embeddings
    bt = [[0, 1, 2] + [0] * (Lmax - 3),
          [8, 9, 10, 11, 12] + [0] * (Lmax - 5)]
    block_tables = jnp.array(bt, dtype=jnp.int32)

    # freqs_cis for the current positions (one per decoding token).
    positions = context_lens - 1
    half = cfg.qk_rope_head_dim // 2
    inv_freq = 1.0 / (10000.0 ** (jnp.arange(half, dtype=jnp.float32) * 2.0 / cfg.qk_rope_head_dim))
    angles = positions[:, None].astype(jnp.float32) * inv_freq[None, :]       # (T, rope/2)
    freqs_cos = jnp.cos(angles)
    freqs_sin = jnp.sin(angles)

    fwd = jax.jit(functools.partial(mla_forward, cfg))
    out, new_cache = fwd(params, x, freqs_cos, freqs_sin,
                         slot_mapping, block_tables, context_lens, kv_cache)
    out = jax.block_until_ready(out)
    jax.block_until_ready(new_cache)

    assert out.shape == (num_tokens, cfg.hidden_size)
    assert bool(jnp.all(jnp.isfinite(out)))
    print("KERNEL_OK")
</pallas_src>

<mosaic_0001>
module attributes {stable_mosaic.version = 11 : i64} {
  func.func @_qkv_proj_kernel(%arg0: i32, %arg1: memref<2x64xf32, #tpu.memory_space<vmem>>, %arg2: memref<64x32xbf16, #tpu.memory_space<vmem>>, %arg3: memref<1x32xf32, #tpu.memory_space<vmem>>, %arg4: memref<32x128xbf16, #tpu.memory_space<vmem>>, %arg5: memref<32x64xbf16, #tpu.memory_space<vmem>>, %arg6: memref<4x32x64xbf16, #tpu.memory_space<vmem>>, %arg7: memref<64x64xbf16, #tpu.memory_space<vmem>>, %arg8: memref<64x16xbf16, #tpu.memory_space<vmem>>, %arg9: memref<1x64xf32, #tpu.memory_space<vmem>>, %arg10: memref<2x4x64xf32, #tpu.memory_space<vmem>>, %arg11: memref<2x64xf32, #tpu.memory_space<vmem>>, %arg12: memref<2x64xf32, #tpu.memory_space<vmem>>, %arg13: memref<2x16xf32, #tpu.memory_space<vmem>>) attributes {dimension_semantics = [#tpu.dimension_semantics<arbitrary>], iteration_bounds = array<i64: 1>, scalar_prefetch = 0 : i64, scratch_operands = 0 : i64, tpu.core_type = #tpu.core_type<tc>, window_params = [{pipeline_mode = #tpu.pipeline_mode<synchronous>, transform_indices = @transform_0, window_bounds = array<i64: 2, 64>}, {pipeline_mode = #tpu.pipeline_mode<synchronous>, transform_indices = @transform_1, window_bounds = array<i64: 64, 32>}, {pipeline_mode = #tpu.pipeline_mode<synchronous>, transform_indices = @transform_2, window_bounds = array<i64: 1, 32>}, {pipeline_mode = #tpu.pipeline_mode<synchronous>, transform_indices = @transform_3, window_bounds = array<i64: 32, 128>}, {pipeline_mode = #tpu.pipeline_mode<synchronous>, transform_indices = @transform_4, window_bounds = array<i64: 32, 64>}, {pipeline_mode = #tpu.pipeline_mode<synchronous>, transform_indices = @transform_5, window_bounds = array<i64: 4, 32, 64>}, {pipeline_mode = #tpu.pipeline_mode<synchronous>, transform_indices = @transform_6, window_bounds = array<i64: 64, 64>}, {pipeline_mode = #tpu.pipeline_mode<synchronous>, transform_indices = @transform_7, window_bounds = array<i64: 64, 16>}, {pipeline_mode = #tpu.pipeline_mode<synchronous>, transform_indices = @transform_8, window_bounds = array<i64: 1, 64>}, {pipeline_mode = #tpu.pipeline_mode<synchronous>, transform_indices = @transform_9, window_bounds = array<i64: 2, 4, 64>}, {pipeline_mode = #tpu.pipeline_mode<synchronous>, transform_indices = @transform_10, window_bounds = array<i64: 2, 64>}, {pipeline_mode = #tpu.pipeline_mode<synchronous>, transform_indices = @transform_11, window_bounds = array<i64: 2, 64>}, {pipeline_mode = #tpu.pipeline_mode<synchronous>, transform_indices = @transform_12, window_bounds = array<i64: 2, 16>}]} {
    %c0 = arith.constant 0 : index
    %c0_0 = arith.constant 0 : index
    %0 = vector.load %arg1[%c0, %c0_0] : memref<2x64xf32, #tpu.memory_space<vmem>>, vector<2x64xf32>
    %1 = arith.truncf %0 : vector<2x64xf32> to vector<2x64xbf16>
    %c0_1 = arith.constant 0 : index
    %c0_2 = arith.constant 0 : index
    %2 = vector.load %arg2[%c0_1, %c0_2] : memref<64x32xbf16, #tpu.memory_space<vmem>>, vector<64x32xbf16>
    %cst = arith.constant dense<0.000000e+00> : vector<2x32xf32>
    %3 = tpu.matmul %1, %2, %cst {dimension_numbers = #tpu.dot_dimension_numbers<[1], [0], [0], [1], [0, 0, 1, 1], [], []>} : vector<2x64xbf16>, vector<64x32xbf16>, vector<2x32xf32> -> vector<2x32xf32>
    %4 = arith.mulf %3, %3 : vector<2x32xf32>
    %cst_3 = arith.constant dense<0.000000e+00> : vector<2xf32>
    %5 = vector.multi_reduction <add>, %4, %cst_3 [1] : vector<2x32xf32> to vector<2xf32>
    %6 = vector.shape_cast %5 : vector<2xf32> to vector<2x1xf32>
    %cst_4 = arith.constant 3.200000e+01 : f32
    %7 = vector.broadcast %cst_4 : f32 to vector<2x1xf32>
    %8 = arith.divf %6, %7 : vector<2x1xf32>
    %cst_5 = arith.constant 9.99999997E-7 : f32
    %9 = vector.broadcast %cst_5 : f32 to vector<2x1xf32>
    %10 = arith.addf %8, %9 : vector<2x1xf32>
    %11 = math.rsqrt %10 : vector<2x1xf32>
    %12 = vector.broadcast %11 : vector<2x1xf32> to vector<2x32xf32>
    %13 = arith.mulf %3, %12 : vector<2x32xf32>
    %c0_6 = arith.constant 0 : index
    %c0_7 = arith.constant 0 : index
    %14 = vector.load %arg3[%c0_6, %c0_7] : memref<1x32xf32, #tpu.memory_space<vmem>>, vector<1x32xf32>
    %15 = vector.broadcast %14 : vector<1x32xf32> to vector<2x32xf32>
    %16 = arith.mulf %13, %15 : vector<2x32xf32>
    %17 = arith.truncf %16 : vector<2x32xf32> to vector<2x32xbf16>
    %c0_8 = arith.constant 0 : index
    %c0_9 = arith.constant 0 : index
    %18 = vector.load %arg5[%c0_8, %c0_9] : memref<32x64xbf16, #tpu.memory_space<vmem>>, vector<32x64xbf16>
    %cst_10 = arith.constant dense<0.000000e+00> : vector<2x64xf32>
    %19 = tpu.matmul %17, %18, %cst_10 {dimension_numbers = #tpu.dot_dimension_numbers<[1], [0], [0], [1], [0, 0, 1, 1], [], []>} : vector<2x32xbf16>, vector<32x64xbf16>, vector<2x64xf32> -> vector<2x64xf32>
    %c0_11 = arith.constant 0 : index
    %c0_12 = arith.constant 0 : index
    %20 = vector.load %arg11[%c0_11, %c0_12] : memref<2x64xf32, #tpu.memory_space<vmem>>, vector<2x64xf32>
    tpu.vector_store %arg11[%c0_11, %c0_12], %19 {strides = array<i32>} : memref<2x64xf32, #tpu.memory_space<vmem>>, vector<2x64xf32>,
    %c0_13 = arith.constant 0 : index
    %c0_14 = arith.constant 0 : index
    %21 = vector.load %arg4[%c0_13, %c0_14] : memref<32x128xbf16, #tpu.memory_space<vmem>>, vector<32x128xbf16>
    %cst_15 = arith.constant dense<0.000000e+00> : vector<2x128xf32>
    %22 = tpu.matmul %17, %21, %cst_15 {dimension_numbers = #tpu.dot_dimension_numbers<[1], [0], [0], [1], [0, 0, 1, 1], [], []>} : vector<2x32xbf16>, vector<32x128xbf16>, vector<2x128xf32> -> vector<2x128xf32>
    %23 = vector.extract_strided_slice %22 {offsets = [0, 0], sizes = [2, 32], strides = [1, 1]} : vector<2x128xf32> to vector<2x32xf32>
    %24 = arith.truncf %23 : vector<2x32xf32> to vector<2x32xbf16>
    %c0_16 = arith.constant 0 : index
    %c0_17 = arith.constant 0 : index
    %c0_18 = arith.constant 0 : index
    %25 = vector.load %arg6[%c0_16, %c0_17, %c0_18] : memref<4x32x64xbf16, #tpu.memory_space<vmem>>, vector<1x32x64xbf16>
    %26 = vector.shape_cast %25 : vector<1x32x64xbf16> to vector<32x64xbf16>
    %cst_19 = arith.constant dense<0.000000e+00> : vector<2x64xf32>
    %27 = tpu.matmul %24, %26, %cst_19 {dimension_numbers = #tpu.dot_dimension_numbers<[1], [0], [0], [1], [0, 0, 1, 1], [], []>} : vector<2x32xbf16>, vector<32x64xbf16>, vector<2x64xf32> -> vector<2x64xf32>
    %c0_20 = arith.constant 0 : index
    %c0_21 = arith.constant 0 : index
    %c0_22 = arith.constant 0 : index
    %28 = vector.load %arg10[%c0_20, %c0_21, %c0_22] : memref<2x4x64xf32, #tpu.memory_space<vmem>>, vector<2x1x64xf32>
    %29 = vector.shape_cast %28 : vector<2x1x64xf32> to vector<2x64xf32>
    %30 = vector.shape_cast %27 : vector<2x64xf32> to vector<2x1x64xf32>
    tpu.vector_store %arg10[%c0_20, %c0_21, %c0_22], %30 {strides = array<i32>} : memref<2x4x64xf32, #tpu.memory_space<vmem>>, vector<2x1x64xf32>,
    %31 = vector.extract_strided_slice %22 {offsets = [0, 32], sizes = [2, 32], strides = [1, 1]} : vector<2x128xf32> to vector<2x32xf32>
    %32 = arith.truncf %31 : vector<2x32xf32> to vector<2x32xbf16>
    %c1 = arith.constant 1 : index
    %c0_23 = arith.constant 0 : index
    %c0_24 = arith.constant 0 : index
    %33 = vector.load %arg6[%c1, %c0_23, %c0_24] : memref<4x32x64xbf16, #tpu.memory_space<vmem>>, vector<1x32x64xbf16>
    %34 = vector.shape_cast %33 : vector<1x32x64xbf16> to vector<32x64xbf16>
    %cst_25 = arith.constant dense<0.000000e+00> : vector<2x64xf32>
    %35 = tpu.matmul %32, %34, %cst_25 {dimension_numbers = #tpu.dot_dimension_numbers<[1], [0], [0], [1], [0, 0, 1, 1], [], []>} : vector<2x32xbf16>, vector<32x64xbf16>, vector<2x64xf32> -> vector<2x64xf32>
    %c0_26 = arith.constant 0 : index
    %c1_27 = arith.constant 1 : index
    %c0_28 = arith.constant 0 : index
    %36 = vector.load %arg10[%c0_26, %c1_27, %c0_28] : memref<2x4x64xf32, #tpu.memory_space<vmem>>, vector<2x1x64xf32>
    %37 = vector.shape_cast %36 : vector<2x1x64xf32> to vector<2x64xf32>
    %38 = vector.shape_cast %35 : vector<2x64xf32> to vector<2x1x64xf32>
    tpu.vector_store %arg10[%c0_26, %c1_27, %c0_28], %38 {strides = array<i32>} : memref<2x4x64xf32, #tpu.memory_space<vmem>>, vector<2x1x64xf32>,
    %39 = vector.extract_strided_slice %22 {offsets = [0, 64], sizes = [2, 32], strides = [1, 1]} : vector<2x128xf32> to vector<2x32xf32>
    %40 = arith.truncf %39 : vector<2x32xf32> to vector<2x32xbf16>
    %c2 = arith.constant 2 : index
    %c0_29 = arith.constant 0 : index
    %c0_30 = arith.constant 0 : index
    %41 = vector.load %arg6[%c2, %c0_29, %c0_30] : memref<4x32x64xbf16, #tpu.memory_space<vmem>>, vector<1x32x64xbf16>
    %42 = vector.shape_cast %41 : vector<1x32x64xbf16> to vector<32x64xbf16>
    %cst_31 = arith.constant dense<0.000000e+00> : vector<2x64xf32>
    %43 = tpu.matmul %40, %42, %cst_31 {dimension_numbers = #tpu.dot_dimension_numbers<[1], [0], [0], [1], [0, 0, 1, 1], [], []>} : vector<2x32xbf16>, vector<32x64xbf16>, vector<2x64xf32> -> vector<2x64xf32>
    %c0_32 = arith.constant 0 : index
    %c2_33 = arith.constant 2 : index
    %c0_34 = arith.constant 0 : index
    %44 = vector.load %arg10[%c0_32, %c2_33, %c0_34] : memref<2x4x64xf32, #tpu.memory_space<vmem>>, vector<2x1x64xf32>
    %45 = vector.shape_cast %44 : vector<2x1x64xf32> to vector<2x64xf32>
    %46 = vector.shape_cast %43 : vector<2x64xf32> to vector<2x1x64xf32>
    tpu.vector_store %arg10[%c0_32, %c2_33, %c0_34], %46 {strides = array<i32>} : memref<2x4x64xf32, #tpu.memory_space<vmem>>, vector<2x1x64xf32>,
    %47 = vector.extract_strided_slice %22 {offsets = [0, 96], sizes = [2, 32], strides = [1, 1]} : vector<2x128xf32> to vector<2x32xf32>
    %48 = arith.truncf %47 : vector<2x32xf32> to vector<2x32xbf16>
    %c3 = arith.constant 3 : index
    %c0_35 = arith.constant 0 : index
    %c0_36 = arith.constant 0 : index
    %49 = vector.load %arg6[%c3, %c0_35, %c0_36] : memref<4x32x64xbf16, #tpu.memory_space<vmem>>, vector<1x32x64xbf16>
    %50 = vector.shape_cast %49 : vector<1x32x64xbf16> to vector<32x64xbf16>
    %cst_37 = arith.constant dense<0.000000e+00> : vector<2x64xf32>
    %51 = tpu.matmul %48, %50, %cst_37 {dimension_numbers = #tpu.dot_dimension_numbers<[1], [0], [0], [1], [0, 0, 1, 1], [], []>} : vector<2x32xbf16>, vector<32x64xbf16>, vector<2x64xf32> -> vector<2x64xf32>
    %c0_38 = arith.constant 0 : index
    %c3_39 = arith.constant 3 : index
    %c0_40 = arith.constant 0 : index
    %52 = vector.load %arg10[%c0_38, %c3_39, %c0_40] : memref<2x4x64xf32, #tpu.memory_space<vmem>>, vector<2x1x64xf32>
    %53 = vector.shape_cast %52 : vector<2x1x64xf32> to vector<2x64xf32>
    %54 = vector.shape_cast %51 : vector<2x64xf32> to vector<2x1x64xf32>
    tpu.vector_store %arg10[%c0_38, %c3_39, %c0_40], %54 {strides = array<i32>} : memref<2x4x64xf32, #tpu.memory_space<vmem>>, vector<2x1x64xf32>,
    %c0_41 = arith.constant 0 : index
    %c0_42 = arith.constant 0 : index
    %55 = vector.load %arg7[%c0_41, %c0_42] : memref<64x64xbf16, #tpu.memory_space<vmem>>, vector<64x64xbf16>
    %cst_43 = arith.constant dense<0.000000e+00> : vector<2x64xf32>
    %56 = tpu.matmul %1, %55, %cst_43 {dimension_numbers = #tpu.dot_dimension_numbers<[1], [0], [0], [1], [0, 0, 1, 1], [], []>} : vector<2x64xbf16>, vector<64x64xbf16>, vector<2x64xf32> -> vector<2x64xf32>
    %c0_44 = arith.constant 0 : index
    %c0_45 = arith.constant 0 : index
    %57 = vector.load %arg8[%c0_44, %c0_45] : memref<64x16xbf16, #tpu.memory_space<vmem>>, vector<64x16xbf16>
    %cst_46 = arith.constant dense<0.000000e+00> : vector<2x16xf32>
    %58 = tpu.matmul %1, %57, %cst_46 {dimension_numbers = #tpu.dot_dimension_numbers<[1], [0], [0], [1], [0, 0, 1, 1], [], []>} : vector<2x64xbf16>, vector<64x16xbf16>, vector<2x16xf32> -> vector<2x16xf32>
    %c0_47 = arith.constant 0 : index
    %c0_48 = arith.constant 0 : index
    %59 = vector.load %arg13[%c0_47, %c0_48] : memref<2x16xf32, #tpu.memory_space<vmem>>, vector<2x16xf32>
    tpu.vector_store %arg13[%c0_47, %c0_48], %58 {strides = array<i32>} : memref<2x16xf32, #tpu.memory_space<vmem>>, vector<2x16xf32>,
    %60 = arith.mulf %56, %56 : vector<2x64xf32>
    %cst_49 = arith.constant dense<0.000000e+00> : vector<2xf32>
    %61 = vector.multi_reduction <add>, %60, %cst_49 [1] : vector<2x64xf32> to vector<2xf32>
    %62 = vector.shape_cast %61 : vector<2xf32> to vector<2x1xf32>
    %cst_50 = arith.constant 6.400000e+01 : f32
    %63 = vector.broadcast %cst_50 : f32 to vector<2x1xf32>
    %64 = arith.divf %62, %63 : vector<2x1xf32>
    %cst_51 = arith.constant 9.99999997E-7 : f32
    %65 = vector.broadcast %cst_51 : f32 to vector<2x1xf32>
    %66 = arith.addf %64, %65 : vector<2x1xf32>
    %67 = math.rsqrt %66 : vector<2x1xf32>
    %68 = vector.broadcast %67 : vector<2x1xf32> to vector<2x64xf32>
    %69 = arith.mulf %56, %68 : vector<2x64xf32>
    %c0_52 = arith.constant 0 : index
    %c0_53 = arith.constant 0 : index
    %70 = vector.load %arg9[%c0_52, %c0_53] : memref<1x64xf32, #tpu.memory_space<vmem>>, vector<1x64xf32>
    %71 = vector.broadcast %70 : vector<1x64xf32> to vector<2x64xf32>
    %72 = arith.mulf %69, %71 : vector<2x64xf32>
    %c0_54 = arith.constant 0 : index
    %c0_55 = arith.constant 0 : index
    %73 = vector.load %arg12[%c0_54, %c0_55] : memref<2x64xf32, #tpu.memory_space<vmem>>, vector<2x64xf32>
    tpu.vector_store %arg12[%c0_54, %c0_55], %72 {strides = array<i32>} : memref<2x64xf32, #tpu.memory_space<vmem>>, vector<2x64xf32>,
    return
  }
  func.func @transform_0(%arg0: i32) -> (i32, i32) {
    %c0_i32 = arith.constant 0 : i32
    %c0_i32_0 = arith.constant 0 : i32
    %c0_i32_1 = arith.constant 0 : i32
    return %c0_i32, %c0_i32_0 : i32, i32
  }
  func.func @transform_1(%arg0: i32) -> (i32, i32) {
    %c0_i32 = arith.constant 0 : i32
    %c0_i32_0 = arith.constant 0 : i32
    %c0_i32_1 = arith.constant 0 : i32
    return %c0_i32, %c0_i32_0 : i32, i32
  }
  func.func @transform_2(%arg0: i32) -> (i32, i32) {
    %c0_i32 = arith.constant 0 : i32
    %c0_i32_0 = arith.constant 0 : i32
    %c0_i32_1 = arith.constant 0 : i32
    return %c0_i32, %c0_i32_0 : i32, i32
  }
  func.func @transform_3(%arg0: i32) -> (i32, i32) {
    %c0_i32 = arith.constant 0 : i32
    %c0_i32_0 = arith.constant 0 : i32
    %c0_i32_1 = arith.constant 0 : i32
    return %c0_i32, %c0_i32_0 : i32, i32
  }
  func.func @transform_4(%arg0: i32) -> (i32, i32) {
    %c0_i32 = arith.constant 0 : i32
    %c0_i32_0 = arith.constant 0 : i32
    %c0_i32_1 = arith.constant 0 : i32
    return %c0_i32, %c0_i32_0 : i32, i32
  }
  func.func @transform_5(%arg0: i32) -> (i32, i32, i32) {
    %c0_i32 = arith.constant 0 : i32
    %c0_i32_0 = arith.constant 0 : i32
    %c0_i32_1 = arith.constant 0 : i32
    %c0_i32_2 = arith.constant 0 : i32
    return %c0_i32, %c0_i32_0, %c0_i32_1 : i32, i32, i32
  }
  func.func @transform_6(%arg0: i32) -> (i32, i32) {
    %c0_i32 = arith.constant 0 : i32
    %c0_i32_0 = arith.constant 0 : i32
    %c0_i32_1 = arith.constant 0 : i32
    return %c0_i32, %c0_i32_0 : i32, i32
  }
  func.func @transform_7(%arg0: i32) -> (i32, i32) {
    %c0_i32 = arith.constant 0 : i32
    %c0_i32_0 = arith.constant 0 : i32
    %c0_i32_1 = arith.constant 0 : i32
    return %c0_i32, %c0_i32_0 : i32, i32
  }
  func.func @transform_8(%arg0: i32) -> (i32, i32) {
    %c0_i32 = arith.constant 0 : i32
    %c0_i32_0 = arith.constant 0 : i32
    %c0_i32_1 = arith.constant 0 : i32
    return %c0_i32, %c0_i32_0 : i32, i32
  }
  func.func @transform_9(%arg0: i32) -> (i32, i32, i32) {
    %c0_i32 = arith.constant 0 : i32
    %c0_i32_0 = arith.constant 0 : i32
    %c0_i32_1 = arith.constant 0 : i32
    %c0_i32_2 = arith.constant 0 : i32
    return %c0_i32, %c0_i32_0, %c0_i32_1 : i32, i32, i32
  }
  func.func @transform_10(%arg0: i32) -> (i32, i32) {
    %c0_i32 = arith.constant 0 : i32
    %c0_i32_0 = arith.constant 0 : i32
    %c0_i32_1 = arith.constant 0 : i32
    return %c0_i32, %c0_i32_0 : i32, i32
  }
  func.func @transform_11(%arg0: i32) -> (i32, i32) {
    %c0_i32 = arith.constant 0 : i32
    %c0_i32_0 = arith.constant 0 : i32
    %c0_i32_1 = arith.constant 0 : i32
    return %c0_i32, %c0_i32_0 : i32, i32
  }
  func.func @transform_12(%arg0: i32) -> (i32, i32) {
    %c0_i32 = arith.constant 0 : i32
    %c0_i32_0 = arith.constant 0 : i32
    %c0_i32_1 = arith.constant 0 : i32
    return %c0_i32, %c0_i32_0 : i32, i32
  }
}

module attributes {stable_mosaic.version = 11 : i64} {
  func.func @_cache_scatter_kernel(%arg0: memref<2xi32, #tpu.memory_space<smem>>, %arg1: memref<2x80xf32, #tpu.memory_space<vmem>>, %arg2: memref<64x80xf32, #tpu.memory_space<any>>, %arg3: memref<64x80xf32, #tpu.memory_space<any>>, %arg4: memref<2x!tpu.dma_semaphore, #tpu.memory_space<semaphore_mem>>) attributes {dimension_semantics = [], scalar_prefetch = 0 : i64, scratch_operands = 1 : i64, tpu.core_type = #tpu.core_type<tc>} {
    %c0 = arith.constant 0 : index
    %0 = memref.load %arg0[%c0] : memref<2xi32, #tpu.memory_space<smem>>
    %c0_i32 = arith.constant 0 : i32
    %c0_i32_0 = arith.constant 0 : i32
    %c0_i32_1 = arith.constant 0 : i32
    %1 = tpu.memref_slice %arg1[%c0_i32_0, %c0_i32_1] : memref<2x80xf32, #tpu.memory_space<vmem>> -> memref<1x80xf32, #tpu.memory_space<vmem>>
    %c0_i32_2 = arith.constant 0 : i32
    %2 = tpu.memref_slice %arg3[%0, %c0_i32_2] : memref<64x80xf32, #tpu.memory_space<any>> -> memref<1x80xf32, #tpu.memory_space<any>>
    %3 = tpu.memref_slice %arg4[%c0_i32] : memref<2x!tpu.dma_semaphore, #tpu.memory_space<semaphore_mem>> -> memref<1x!tpu.dma_semaphore, #tpu.memory_space<semaphore_mem>>
    %4 = tpu.memref_squeeze %3 : memref<1x!tpu.dma_semaphore, #tpu.memory_space<semaphore_mem>> -> memref<!tpu.dma_semaphore, #tpu.memory_space<semaphore_mem>>
    tpu.enqueue_dma source(%1 : memref<1x80xf32, #tpu.memory_space<vmem>>) target(%2 : memref<1x80xf32, #tpu.memory_space<any>>) target_semaphore(%4 : memref<!tpu.dma_semaphore, #tpu.memory_space<semaphore_mem>>)
    %c1 = arith.constant 1 : index
    %5 = memref.load %arg0[%c1] : memref<2xi32, #tpu.memory_space<smem>>
    %c1_i32 = arith.constant 1 : i32
    %c1_i32_3 = arith.constant 1 : i32
    %c0_i32_4 = arith.constant 0 : i32
    %6 = tpu.memref_slice %arg1[%c1_i32_3, %c0_i32_4] : memref<2x80xf32, #tpu.memory_space<vmem>> -> memref<1x80xf32, #tpu.memory_space<vmem>>
    %c0_i32_5 = arith.constant 0 : i32
    %7 = tpu.memref_slice %arg3[%5, %c0_i32_5] : memref<64x80xf32, #tpu.memory_space<any>> -> memref<1x80xf32, #tpu.memory_space<any>>
    %8 = tpu.memref_slice %arg4[%c1_i32] : memref<2x!tpu.dma_semaphore, #tpu.memory_space<semaphore_mem>> -> memref<1x!tpu.dma_semaphore, #tpu.memory_space<semaphore_mem>>
    %9 = tpu.memref_squeeze %8 : memref<1x!tpu.dma_semaphore, #tpu.memory_space<semaphore_mem>> -> memref<!tpu.dma_semaphore, #tpu.memory_space<semaphore_mem>>
    tpu.enqueue_dma source(%6 : memref<1x80xf32, #tpu.memory_space<vmem>>) target(%7 : memref<1x80xf32, #tpu.memory_space<any>>) target_semaphore(%9 : memref<!tpu.dma_semaphore, #tpu.memory_space<semaphore_mem>>)
    %c0_6 = arith.constant 0 : index
    %10 = memref.load %arg0[%c0_6] : memref<2xi32, #tpu.memory_space<smem>>
    %c0_i32_7 = arith.constant 0 : i32
    %c0_i32_8 = arith.constant 0 : i32
    %c0_i32_9 = arith.constant 0 : i32
    %11 = tpu.memref_slice %arg1[%c0_i32_8, %c0_i32_9] : memref<2x80xf32, #tpu.memory_space<vmem>> -> memref<1x80xf32, #tpu.memory_space<vmem>>
    %c0_i32_10 = arith.constant 0 : i32
    %12 = tpu.memref_slice %arg3[%10, %c0_i32_10] : memref<64x80xf32, #tpu.memory_space<any>> -> memref<1x80xf32, #tpu.memory_space<any>>
    %13 = tpu.memref_slice %arg4[%c0_i32_7] : memref<2x!tpu.dma_semaphore, #tpu.memory_space<semaphore_mem>> -> memref<1x!tpu.dma_semaphore, #tpu.memory_space<semaphore_mem>>
    %14 = tpu.memref_squeeze %13 : memref<1x!tpu.dma_semaphore, #tpu.memory_space<semaphore_mem>> -> memref<!tpu.dma_semaphore, #tpu.memory_space<semaphore_mem>>
    tpu.wait_dma2 semaphore(%14 : memref<!tpu.dma_semaphore, #tpu.memory_space<semaphore_mem>>) src(%11 : memref<1x80xf32, #tpu.memory_space<vmem>>) dst(%12 : memref<1x80xf32, #tpu.memory_space<any>>)
    %c1_11 = arith.constant 1 : index
    %15 = memref.load %arg0[%c1_11] : memref<2xi32, #tpu.memory_space<smem>>
    %c1_i32_12 = arith.constant 1 : i32
    %c1_i32_13 = arith.constant 1 : i32
    %c0_i32_14 = arith.constant 0 : i32
    %16 = tpu.memref_slice %arg1[%c1_i32_13, %c0_i32_14] : memref<2x80xf32, #tpu.memory_space<vmem>> -> memref<1x80xf32, #tpu.memory_space<vmem>>
    %c0_i32_15 = arith.constant 0 : i32
    %17 = tpu.memref_slice %arg3[%15, %c0_i32_15] : memref<64x80xf32, #tpu.memory_space<any>> -> memref<1x80xf32, #tpu.memory_space<any>>
    %18 = tpu.memref_slice %arg4[%c1_i32_12] : memref<2x!tpu.dma_semaphore, #tpu.memory_space<semaphore_mem>> -> memref<1x!tpu.dma_semaphore, #tpu.memory_space<semaphore_mem>>
    %19 = tpu.memref_squeeze %18 : memref<1x!tpu.dma_semaphore, #tpu.memory_space<semaphore_mem>> -> memref<!tpu.dma_semaphore, #tpu.memory_space<semaphore_mem>>
    tpu.wait_dma2 semaphore(%19 : memref<!tpu.dma_semaphore, #tpu.memory_space<semaphore_mem>>) src(%16 : memref<1x80xf32, #tpu.memory_space<vmem>>) dst(%17 : memref<1x80xf32, #tpu.memory_space<any>>)
    return
  }
}

module attributes {stable_mosaic.version = 11 : i64} {
  func.func @_mla_decode_kernel(%arg0: i32, %arg1: memref<2x16xi32, #tpu.memory_space<smem>>, %arg2: memref<2xi32, #tpu.memory_space<smem>>, %arg3: memref<1x4x64xf32, #tpu.memory_space<vmem>>, %arg4: memref<1x4x16xf32, #tpu.memory_space<vmem>>, %arg5: memref<64x80xf32, #tpu.memory_space<any>>, %arg6: memref<1x4x64xf32, #tpu.memory_space<vmem>>, %arg7: memref<16x80xf32, #tpu.memory_space<vmem>>, %arg8: memref<2x!tpu.dma_semaphore, #tpu.memory_space<semaphore_mem>>) attributes {dimension_semantics = [#tpu.dimension_semantics<parallel>], iteration_bounds = array<i64: 2>, scalar_prefetch = 2 : i64, scratch_operands = 2 : i64, tpu.core_type = #tpu.core_type<tc>, window_params = [{transform_indices = @transform_0, window_bounds = array<i64: 1, 4, 64>}, {transform_indices = @transform_1, window_bounds = array<i64: 1, 4, 16>}, {}, {transform_indices = @transform_3, window_bounds = array<i64: 1, 4, 64>}]} {
    %0 = arith.index_cast %arg0 : i32 to index
    %1 = memref.load %arg2[%0] : memref<2xi32, #tpu.memory_space<smem>>
    %c0_i32 = arith.constant 0 : i32
    %2 = arith.cmpi sgt, %1, %c0_i32 : i32
    %3 = arith.extui %2 : i1 to i32
    %c0_i32_0 = arith.constant 0 : i32
    %4 = arith.cmpi ne, %3, %c0_i32_0 : i32
    scf.if %4 {
      %56 = arith.index_cast %arg0 : i32 to index
      %c0_29 = arith.constant 0 : index
      %57 = memref.load %arg1[%56, %c0_29] : memref<2x16xi32, #tpu.memory_space<smem>>
      %c0_i32_30 = arith.constant 0 : i32
      %c0_i32_31 = arith.constant 0 : i32
      %58 = tpu.memref_slice %arg5[%57, %c0_i32_31] : memref<64x80xf32, #tpu.memory_space<any>> -> memref<1x80xf32, #tpu.memory_space<any>>
      %c0_i32_32 = arith.constant 0 : i32
      %c0_i32_33 = arith.constant 0 : i32
      %59 = tpu.memref_slice %arg7[%c0_i32_32, %c0_i32_33] : memref<16x80xf32, #tpu.memory_space<vmem>> -> memref<1x80xf32, #tpu.memory_space<vmem>>
      %60 = tpu.memref_slice %arg8[%c0_i32_30] : memref<2x!tpu.dma_semaphore, #tpu.memory_space<semaphore_mem>> -> memref<1x!tpu.dma_semaphore, #tpu.memory_space<semaphore_mem>>
      %61 = tpu.memref_squeeze %60 : memref<1x!tpu.dma_semaphore, #tpu.memory_space<semaphore_mem>> -> memref<!tpu.dma_semaphore, #tpu.memory_space<semaphore_mem>>
      tpu.enqueue_dma source(%58 : memref<1x80xf32, #tpu.memory_space<any>>) target(%59 : memref<1x80xf32, #tpu.memory_space<vmem>>) target_semaphore(%61 : memref<!tpu.dma_semaphore, #tpu.memory_space<semaphore_mem>>)
    } else {
    }
    %c0_i32_1 = arith.constant 0 : i32
    %5 = arith.subi %1, %c0_i32_1 : i32
    %c1_i32 = arith.constant 1 : i32
    %c1_i32_2 = arith.constant 1 : i32
    %6 = arith.subi %c1_i32, %c1_i32_2 : i32
    %7 = arith.addi %5, %6 : i32
    %c1_i32_3 = arith.constant 1 : i32
    %8 = arith.divsi %7, %c1_i32_3 : i32
    %c1_i32_4 = arith.constant 1 : i32
    %c0_i32_5 = arith.constant 0 : i32
    %c0_i32_6 = arith.constant 0 : i32
    %9 = arith.subi %8, %c0_i32_6 : i32
    %10 = arith.addi %c0_i32_6, %9 : i32
    %c1_i32_7 = arith.constant 1 : i32
    scf.for %arg9 = %c0_i32_6 to %10 step %c1_i32_7  : i32 {
      %56 = arith.muli %arg9, %c1_i32_4 : i32
      %57 = arith.addi %c0_i32_5, %56 : i32
      %c2_i32 = arith.constant 2 : i32
      %c0_i32_29 = arith.constant 0 : i32
      %58 = arith.cmpi eq, %c2_i32, %c0_i32_29 : i32
      %c1_i32_30 = arith.constant 1 : i32
      %59 = arith.select %58, %c1_i32_30, %c2_i32 : i32
      %60 = arith.remsi %57, %59 : i32
      %c0_i32_31 = arith.constant 0 : i32
      %61 = arith.cmpi ne, %60, %c0_i32_31 : i32
      %c0_i32_32 = arith.constant 0 : i32
      %62 = arith.cmpi slt, %60, %c0_i32_32 : i32
      %c0_i32_33 = arith.constant 0 : i32
      %63 = arith.cmpi slt, %59, %c0_i32_33 : i32
      %64 = arith.xori %62, %63 : i1
      %65 = arith.andi %64, %61 : i1
      %66 = arith.addi %60, %59 : i32
      %67 = arith.select %65, %66, %60 : i32
      %c1_i32_34 = arith.constant 1 : i32
      %68 = arith.addi %57, %c1_i32_34 : i32
      %69 = arith.cmpi slt, %68, %1 : i32
      %70 = arith.extui %69 : i1 to i32
      %c0_i32_35 = arith.constant 0 : i32
      %71 = arith.cmpi ne, %70, %c0_i32_35 : i32
      scf.if %71 {
        %c1_i32_38 = arith.constant 1 : i32
        %79 = arith.addi %57, %c1_i32_38 : i32
        %c1_i32_39 = arith.constant 1 : i32
        %80 = arith.subi %c1_i32_39, %67 : i32
        %81 = arith.index_cast %arg0 : i32 to index
        %82 = arith.index_cast %79 : i32 to index
        %83 = memref.load %arg1[%81, %82] : memref<2x16xi32, #tpu.memory_space<smem>>
        %c0_i32_40 = arith.constant 0 : i32
        %84 = tpu.memref_slice %arg5[%83, %c0_i32_40] : memref<64x80xf32, #tpu.memory_space<any>> -> memref<1x80xf32, #tpu.memory_space<any>>
        %c0_i32_41 = arith.constant 0 : i32
        %85 = tpu.memref_slice %arg7[%79, %c0_i32_41] : memref<16x80xf32, #tpu.memory_space<vmem>> -> memref<1x80xf32, #tpu.memory_space<vmem>>
        %86 = tpu.memref_slice %arg8[%80] : memref<2x!tpu.dma_semaphore, #tpu.memory_space<semaphore_mem>> -> memref<1x!tpu.dma_semaphore, #tpu.memory_space<semaphore_mem>>
        %87 = tpu.memref_squeeze %86 : memref<1x!tpu.dma_semaphore, #tpu.memory_space<semaphore_mem>> -> memref<!tpu.dma_semaphore, #tpu.memory_space<semaphore_mem>>
        tpu.enqueue_dma source(%84 : memref<1x80xf32, #tpu.memory_space<any>>) target(%85 : memref<1x80xf32, #tpu.memory_space<vmem>>) target_semaphore(%87 : memref<!tpu.dma_semaphore, #tpu.memory_space<semaphore_mem>>)
      } else {
      }
      %72 = arith.index_cast %arg0 : i32 to index
      %73 = arith.index_cast %57 : i32 to index
      %74 = memref.load %arg1[%72, %73] : memref<2x16xi32, #tpu.memory_space<smem>>
      %c0_i32_36 = arith.constant 0 : i32
      %75 = tpu.memref_slice %arg5[%74, %c0_i32_36] : memref<64x80xf32, #tpu.memory_space<any>> -> memref<1x80xf32, #tpu.memory_space<any>>
      %c0_i32_37 = arith.constant 0 : i32
      %76 = tpu.memref_slice %arg7[%57, %c0_i32_37] : memref<16x80xf32, #tpu.memory_space<vmem>> -> memref<1x80xf32, #tpu.memory_space<vmem>>
      %77 = tpu.memref_slice %arg8[%67] : memref<2x!tpu.dma_semaphore, #tpu.memory_space<semaphore_mem>> -> memref<1x!tpu.dma_semaphore, #tpu.memory_space<semaphore_mem>>
      %78 = tpu.memref_squeeze %77 : memref<1x!tpu.dma_semaphore, #tpu.memory_space<semaphore_mem>> -> memref<!tpu.dma_semaphore, #tpu.memory_space<semaphore_mem>>
      tpu.wait_dma2 semaphore(%78 : memref<!tpu.dma_semaphore, #tpu.memory_space<semaphore_mem>>) src(%75 : memref<1x80xf32, #tpu.memory_space<any>>) dst(%76 : memref<1x80xf32, #tpu.memory_space<vmem>>)
    }
    %c0 = arith.constant 0 : index
    %c0_8 = arith.constant 0 : index
    %c0_9 = arith.constant 0 : index
    %11 = vector.load %arg3[%c0, %c0_8, %c0_9] : memref<1x4x64xf32, #tpu.memory_space<vmem>>, vector<1x4x64xf32>
    %12 = vector.shape_cast %11 : vector<1x4x64xf32> to vector<4x64xf32>
    %cst = arith.constant 0.144337565 : f32
    %13 = vector.broadcast %cst : f32 to vector<4x64xf32>
    %14 = arith.mulf %12, %13 : vector<4x64xf32>
    %c0_10 = arith.constant 0 : index
    %c0_11 = arith.constant 0 : index
    %c0_12 = arith.constant 0 : index
    %15 = vector.load %arg4[%c0_10, %c0_11, %c0_12] : memref<1x4x16xf32, #tpu.memory_space<vmem>>, vector<1x4x16xf32>
    %16 = vector.shape_cast %15 : vector<1x4x16xf32> to vector<4x16xf32>
    %cst_13 = arith.constant 0.144337565 : f32
    %17 = vector.broadcast %cst_13 : f32 to vector<4x16xf32>
    %18 = arith.mulf %16, %17 : vector<4x16xf32>
    %19 = tpu.iota {dimensions = array<i32: 0>} : vector<16x1xi32>
    %20 = vector.broadcast %1 : i32 to vector<16x1xi32>
    %21 = arith.cmpi slt, %19, %20 : vector<16x1xi32>
    %c0_14 = arith.constant 0 : index
    %c0_15 = arith.constant 0 : index
    %22 = vector.load %arg7[%c0_14, %c0_15] : memref<16x80xf32, #tpu.memory_space<vmem>>, vector<16x64xf32>
    %cst_16 = arith.constant 0.000000e+00 : f32
    %23 = vector.shape_cast %21 : vector<16x1xi1> to vector<16x1xi1>
    %24 = vector.broadcast %23 : vector<16x1xi1> to vector<16x64xi1>
    %25 = vector.broadcast %cst_16 : f32 to vector<16x64xf32>
    %26 = arith.select %24, %22, %25 : vector<16x64xi1>, vector<16x64xf32>
    %c0_17 = arith.constant 0 : index
    %c64 = arith.constant 64 : index
    %27 = vector.load %arg7[%c0_17, %c64] : memref<16x80xf32, #tpu.memory_space<vmem>>, vector<16x16xf32>
    %cst_18 = arith.constant 0.000000e+00 : f32
    %28 = vector.shape_cast %21 : vector<16x1xi1> to vector<16x1xi1>
    %29 = vector.broadcast %28 : vector<16x1xi1> to vector<16x16xi1>
    %30 = vector.broadcast %cst_18 : f32 to vector<16x16xf32>
    %31 = arith.select %29, %27, %30 : vector<16x16xi1>, vector<16x16xf32>
    %cst_19 = arith.constant dense<0.000000e+00> : vector<4x16xf32>
    %32 = tpu.matmul %14, %26, %cst_19 {dimension_numbers = #tpu.dot_dimension_numbers<[1], [1], [0], [0], [0, 0, 1, 0], [], []>} : vector<4x64xf32>, vector<16x64xf32>, vector<4x16xf32> -> vector<4x16xf32>
    %cst_20 = arith.constant dense<0.000000e+00> : vector<4x16xf32>
    %33 = tpu.matmul %18, %31, %cst_20 {dimension_numbers = #tpu.dot_dimension_numbers<[1], [1], [0], [0], [0, 0, 1, 0], [], []>} : vector<4x16xf32>, vector<16x16xf32>, vector<4x16xf32> -> vector<4x16xf32>
    %34 = arith.addf %32, %33 : vector<4x16xf32>
    %35 = tpu.iota {dimensions = array<i32: 1>} : vector<4x16xi32>
    %36 = vector.broadcast %1 : i32 to vector<4x16xi32>
    %37 = arith.cmpi slt, %35, %36 : vector<4x16xi32>
    %cst_21 = arith.constant 0xFF800000 : f32
    %38 = vector.broadcast %cst_21 : f32 to vector<4x16xf32>
    %39 = arith.select %37, %34, %38 : vector<4x16xi1>, vector<4x16xf32>
    %cst_22 = arith.constant dense<0xFF800000> : vector<4xf32>
    %40 = vector.multi_reduction <maximumf>, %39, %cst_22 [1] : vector<4x16xf32> to vector<4xf32>
    %41 = vector.shape_cast %40 : vector<4xf32> to vector<4x1xf32>
    %42 = vector.broadcast %41 : vector<4x1xf32> to vector<4x16xf32>
    %43 = arith.subf %39, %42 : vector<4x16xf32>
    %44 = math.exp %43 : vector<4x16xf32>
    %cst_23 = arith.constant dense<0.000000e+00> : vector<4xf32>
    %45 = vector.multi_reduction <add>, %44, %cst_23 [1] : vector<4x16xf32> to vector<4xf32>
    %46 = vector.shape_cast %45 : vector<4xf32> to vector<4x1xf32>
    %cst_24 = arith.constant 1.000000e-30 : f32
    %47 = vector.broadcast %cst_24 : f32 to vector<4x1xf32>
    %48 = arith.maximumf %46, %47 : vector<4x1xf32>
    %cst_25 = arith.constant dense<0.000000e+00> : vector<4x64xf32>
    %49 = tpu.matmul %44, %26, %cst_25 {dimension_numbers = #tpu.dot_dimension_numbers<[1], [0], [0], [1], [0, 0, 1, 1], [], []>} : vector<4x16xf32>, vector<16x64xf32>, vector<4x64xf32> -> vector<4x64xf32>
    %50 = tpu.reciprocal %48 {approx = true} : vector<4x1xf32> -> vector<4x1xf32>
    %51 = vector.broadcast %50 : vector<4x1xf32> to vector<4x64xf32>
    %52 = arith.mulf %49, %51 : vector<4x64xf32>
    %c0_26 = arith.constant 0 : index
    %c0_27 = arith.constant 0 : index
    %c0_28 = arith.constant 0 : index
    %53 = vector.load %arg6[%c0_26, %c0_27, %c0_28] : memref<1x4x64xf32, #tpu.memory_space<vmem>>, vector<1x4x64xf32>
    %54 = vector.shape_cast %53 : vector<1x4x64xf32> to vector<4x64xf32>
    %55 = vector.shape_cast %52 : vector<4x64xf32> to vector<1x4x64xf32>
    tpu.vector_store %arg6[%c0_26, %c0_27, %c0_28], %55 {strides = array<i32>} : memref<1x4x64xf32, #tpu.memory_space<vmem>>, vector<1x4x64xf32>,
    return
  }
  func.func @transform_0(%arg0: i32, %arg1: memref<2x16xi32, #tpu.memory_space<smem>>, %arg2: memref<2xi32, #tpu.memory_space<smem>>) -> (i32, i32, i32) {
    %c0_i32 = arith.constant 0 : i32
    %c0_i32_0 = arith.constant 0 : i32
    %c0_i32_1 = arith.constant 0 : i32
    return %arg0, %c0_i32, %c0_i32_0 : i32, i32, i32
  }
  func.func @transform_1(%arg0: i32, %arg1: memref<2x16xi32, #tpu.memory_space<smem>>, %arg2: memref<2xi32, #tpu.memory_space<smem>>) -> (i32, i32, i32) {
    %c0_i32 = arith.constant 0 : i32
    %c0_i32_0 = arith.constant 0 : i32
    %c0_i32_1 = arith.constant 0 : i32
    return %arg0, %c0_i32, %c0_i32_0 : i32, i32, i32
  }
  func.func @transform_3(%arg0: i32, %arg1: memref<2x16xi32, #tpu.memory_space<smem>>, %arg2: memref<2xi32, #tpu.memory_space<smem>>) -> (i32, i32, i32) {
    %c0_i32 = arith.constant 0 : i32
    %c0_i32_0 = arith.constant 0 : i32
    %c0_i32_1 = arith.constant 0 : i32
    return %arg0, %c0_i32, %c0_i32_0 : i32, i32, i32
  }
}

module attributes {stable_mosaic.version = 11 : i64} {
  func.func @_o_proj_kernel(%arg0: i32, %arg1: memref<2x4x64xf32, #tpu.memory_space<vmem>>, %arg2: memref<4x64x32xbf16, #tpu.memory_space<vmem>>, %arg3: memref<128x64xbf16, #tpu.memory_space<vmem>>, %arg4: memref<2x64xf32, #tpu.memory_space<vmem>>) attributes {dimension_semantics = [#tpu.dimension_semantics<arbitrary>], iteration_bounds = array<i64: 1>, scalar_prefetch = 0 : i64, scratch_operands = 0 : i64, tpu.core_type = #tpu.core_type<tc>, window_params = [{pipeline_mode = #tpu.pipeline_mode<synchronous>, transform_indices = @transform_0, window_bounds = array<i64: 2, 4, 64>}, {pipeline_mode = #tpu.pipeline_mode<synchronous>, transform_indices = @transform_1, window_bounds = array<i64: 4, 64, 32>}, {pipeline_mode = #tpu.pipeline_mode<synchronous>, transform_indices = @transform_2, window_bounds = array<i64: 128, 64>}, {pipeline_mode = #tpu.pipeline_mode<synchronous>, transform_indices = @transform_3, window_bounds = array<i64: 2, 64>}]} {
    %cst = arith.constant 0.000000e+00 : f32
    %0 = vector.broadcast %cst : f32 to vector<2x64xf32>
    %c0 = arith.constant 0 : index
    %c0_0 = arith.constant 0 : index
    %c0_1 = arith.constant 0 : index
    %1 = vector.load %arg1[%c0, %c0_0, %c0_1] : memref<2x4x64xf32, #tpu.memory_space<vmem>>, vector<2x1x64xf32>
    %2 = vector.shape_cast %1 : vector<2x1x64xf32> to vector<2x64xf32>
    %3 = arith.truncf %2 : vector<2x64xf32> to vector<2x64xbf16>
    %c0_2 = arith.constant 0 : index
    %c0_3 = arith.constant 0 : index
    %c0_4 = arith.constant 0 : index
    %4 = vector.load %arg2[%c0_2, %c0_3, %c0_4] : memref<4x64x32xbf16, #tpu.memory_space<vmem>>, vector<1x64x32xbf16>
    %5 = vector.shape_cast %4 : vector<1x64x32xbf16> to vector<64x32xbf16>
    %cst_5 = arith.constant dense<0.000000e+00> : vector<2x32xf32>
    %6 = tpu.matmul %3, %5, %cst_5 {dimension_numbers = #tpu.dot_dimension_numbers<[1], [0], [0], [1], [0, 0, 1, 1], [], []>} : vector<2x64xbf16>, vector<64x32xbf16>, vector<2x32xf32> -> vector<2x32xf32>
    %7 = arith.truncf %6 : vector<2x32xf32> to vector<2x32xbf16>
    %c0_6 = arith.constant 0 : index
    %c0_7 = arith.constant 0 : index
    %8 = vector.load %arg3[%c0_6, %c0_7] : memref<128x64xbf16, #tpu.memory_space<vmem>>, vector<32x64xbf16>
    %cst_8 = arith.constant dense<0.000000e+00> : vector<2x64xf32>
    %9 = tpu.matmul %7, %8, %cst_8 {dimension_numbers = #tpu.dot_dimension_numbers<[1], [0], [0], [1], [0, 0, 1, 1], [], []>} : vector<2x32xbf16>, vector<32x64xbf16>, vector<2x64xf32> -> vector<2x64xf32>
    %10 = arith.addf %0, %9 : vector<2x64xf32>
    %c0_9 = arith.constant 0 : index
    %c1 = arith.constant 1 : index
    %c0_10 = arith.constant 0 : index
    %11 = vector.load %arg1[%c0_9, %c1, %c0_10] : memref<2x4x64xf32, #tpu.memory_space<vmem>>, vector<2x1x64xf32>
    %12 = vector.shape_cast %11 : vector<2x1x64xf32> to vector<2x64xf32>
    %13 = arith.truncf %12 : vector<2x64xf32> to vector<2x64xbf16>
    %c1_11 = arith.constant 1 : index
    %c0_12 = arith.constant 0 : index
    %c0_13 = arith.constant 0 : index
    %14 = vector.load %arg2[%c1_11, %c0_12, %c0_13] : memref<4x64x32xbf16, #tpu.memory_space<vmem>>, vector<1x64x32xbf16>
    %15 = vector.shape_cast %14 : vector<1x64x32xbf16> to vector<64x32xbf16>
    %cst_14 = arith.constant dense<0.000000e+00> : vector<2x32xf32>
    %16 = tpu.matmul %13, %15, %cst_14 {dimension_numbers = #tpu.dot_dimension_numbers<[1], [0], [0], [1], [0, 0, 1, 1], [], []>} : vector<2x64xbf16>, vector<64x32xbf16>, vector<2x32xf32> -> vector<2x32xf32>
    %17 = arith.truncf %16 : vector<2x32xf32> to vector<2x32xbf16>
    %c32 = arith.constant 32 : index
    %c0_15 = arith.constant 0 : index
    %18 = vector.load %arg3[%c32, %c0_15] : memref<128x64xbf16, #tpu.memory_space<vmem>>, vector<32x64xbf16>
    %cst_16 = arith.constant dense<0.000000e+00> : vector<2x64xf32>
    %19 = tpu.matmul %17, %18, %cst_16 {dimension_numbers = #tpu.dot_dimension_numbers<[1], [0], [0], [1], [0, 0, 1, 1], [], []>} : vector<2x32xbf16>, vector<32x64xbf16>, vector<2x64xf32> -> vector<2x64xf32>
    %20 = arith.addf %10, %19 : vector<2x64xf32>
    %c0_17 = arith.constant 0 : index
    %c2 = arith.constant 2 : index
    %c0_18 = arith.constant 0 : index
    %21 = vector.load %arg1[%c0_17, %c2, %c0_18] : memref<2x4x64xf32, #tpu.memory_space<vmem>>, vector<2x1x64xf32>
    %22 = vector.shape_cast %21 : vector<2x1x64xf32> to vector<2x64xf32>
    %23 = arith.truncf %22 : vector<2x64xf32> to vector<2x64xbf16>
    %c2_19 = arith.constant 2 : index
    %c0_20 = arith.constant 0 : index
    %c0_21 = arith.constant 0 : index
    %24 = vector.load %arg2[%c2_19, %c0_20, %c0_21] : memref<4x64x32xbf16, #tpu.memory_space<vmem>>, vector<1x64x32xbf16>
    %25 = vector.shape_cast %24 : vector<1x64x32xbf16> to vector<64x32xbf16>
    %cst_22 = arith.constant dense<0.000000e+00> : vector<2x32xf32>
    %26 = tpu.matmul %23, %25, %cst_22 {dimension_numbers = #tpu.dot_dimension_numbers<[1], [0], [0], [1], [0, 0, 1, 1], [], []>} : vector<2x64xbf16>, vector<64x32xbf16>, vector<2x32xf32> -> vector<2x32xf32>
    %27 = arith.truncf %26 : vector<2x32xf32> to vector<2x32xbf16>
    %c64 = arith.constant 64 : index
    %c0_23 = arith.constant 0 : index
    %28 = vector.load %arg3[%c64, %c0_23] : memref<128x64xbf16, #tpu.memory_space<vmem>>, vector<32x64xbf16>
    %cst_24 = arith.constant dense<0.000000e+00> : vector<2x64xf32>
    %29 = tpu.matmul %27, %28, %cst_24 {dimension_numbers = #tpu.dot_dimension_numbers<[1], [0], [0], [1], [0, 0, 1, 1], [], []>} : vector<2x32xbf16>, vector<32x64xbf16>, vector<2x64xf32> -> vector<2x64xf32>
    %30 = arith.addf %20, %29 : vector<2x64xf32>
    %c0_25 = arith.constant 0 : index
    %c3 = arith.constant 3 : index
    %c0_26 = arith.constant 0 : index
    %31 = vector.load %arg1[%c0_25, %c3, %c0_26] : memref<2x4x64xf32, #tpu.memory_space<vmem>>, vector<2x1x64xf32>
    %32 = vector.shape_cast %31 : vector<2x1x64xf32> to vector<2x64xf32>
    %33 = arith.truncf %32 : vector<2x64xf32> to vector<2x64xbf16>
    %c3_27 = arith.constant 3 : index
    %c0_28 = arith.constant 0 : index
    %c0_29 = arith.constant 0 : index
    %34 = vector.load %arg2[%c3_27, %c0_28, %c0_29] : memref<4x64x32xbf16, #tpu.memory_space<vmem>>, vector<1x64x32xbf16>
    %35 = vector.shape_cast %34 : vector<1x64x32xbf16> to vector<64x32xbf16>
    %cst_30 = arith.constant dense<0.000000e+00> : vector<2x32xf32>
    %36 = tpu.matmul %33, %35, %cst_30 {dimension_numbers = #tpu.dot_dimension_numbers<[1], [0], [0], [1], [0, 0, 1, 1], [], []>} : vector<2x64xbf16>, vector<64x32xbf16>, vector<2x32xf32> -> vector<2x32xf32>
    %37 = arith.truncf %36 : vector<2x32xf32> to vector<2x32xbf16>
    %c96 = arith.constant 96 : index
    %c0_31 = arith.constant 0 : index
    %38 = vector.load %arg3[%c96, %c0_31] : memref<128x64xbf16, #tpu.memory_space<vmem>>, vector<32x64xbf16>
    %cst_32 = arith.constant dense<0.000000e+00> : vector<2x64xf32>
    %39 = tpu.matmul %37, %38, %cst_32 {dimension_numbers = #tpu.dot_dimension_numbers<[1], [0], [0], [1], [0, 0, 1, 1], [], []>} : vector<2x32xbf16>, vector<32x64xbf16>, vector<2x64xf32> -> vector<2x64xf32>
    %40 = arith.addf %30, %39 : vector<2x64xf32>
    %c0_33 = arith.constant 0 : index
    %c0_34 = arith.constant 0 : index
    %41 = vector.load %arg4[%c0_33, %c0_34] : memref<2x64xf32, #tpu.memory_space<vmem>>, vector<2x64xf32>
    tpu.vector_store %arg4[%c0_33, %c0_34], %40 {strides = array<i32>} : memref<2x64xf32, #tpu.memory_space<vmem>>, vector<2x64xf32>,
    return
  }
  func.func @transform_0(%arg0: i32) -> (i32, i32, i32) {
    %c0_i32 = arith.constant 0 : i32
    %c0_i32_0 = arith.constant 0 : i32
    %c0_i32_1 = arith.constant 0 : i32
    %c0_i32_2 = arith.constant 0 : i32
    return %c0_i32, %c0_i32_0, %c0_i32_1 : i32, i32, i32
  }
  func.func @transform_1(%arg0: i32) -> (i32, i32, i32) {
    %c0_i32 = arith.constant 0 : i32
    %c0_i32_0 = arith.constant 0 : i32
    %c0_i32_1 = arith.constant 0 : i32
    %c0_i32_2 = arith.constant 0 : i32
    return %c0_i32, %c0_i32_0, %c0_i32_1 : i32, i32, i32
  }
  func.func @transform_2(%arg0: i32) -> (i32, i32) {
    %c0_i32 = arith.constant 0 : i32
    %c0_i32_0 = arith.constant 0 : i32
    %c0_i32_1 = arith.constant 0 : i32
    return %c0_i32, %c0_i32_0 : i32, i32
  }
  func.func @transform_3(%arg0: i32) -> (i32, i32) {
    %c0_i32 = arith.constant 0 : i32
    %c0_i32_0 = arith.constant 0 : i32
    %c0_i32_1 = arith.constant 0 : i32
    return %c0_i32, %c0_i32_0 : i32, i32
  }
}

</mosaic_0001>

<llo_original>
// kernel: mla_forward.5
$region0: #{mla_forward.5}
  #allocation0 [shape = 'u32[]', space=smem, size = 0x4, offset = 0x4, fixed_abs, tag = 'smem constant byte address 0x4 - core index']
  #allocation1 [shape = 'u32[144,128]{1,0:T(1,128)}', space=vmem, size = 0x12000, scoped, tag = 'internal scratch']
  #allocation2 [shape = 's32[2]{0}', space=sflag, size = 0x8, scoped, tag = 'scratch operand']
  #allocation5 [shape = 's32[]', space=sflag, size = 0x4, offset = 0, fixed_abs, tag = 'sflag constant byte address 0x0 - dummy sync flag']
  #allocation6 [shape = 's32[]', space=sflag, size = 0x4, offset = 0, fixed_abs, tag = 'sflag constant byte address 0x0 - dummy sync flag']
  %s0 = inlined_call_operand.vmem [shape: s32[2], index: 0, kind: input, shape index: {}]
  %s1 = inlined_call_operand.vmem [shape: f32[2,80], index: 1, kind: input, shape index: {}]
  %s2 = inlined_call_operand.vmem [shape: f32[64,80], index: 2, kind: input, shape index: {}, may-alias: {2,3}]
  %s3 = inlined_call_operand.vmem [shape: f32[64,80], index: 3, kind: output, shape index: {}, may-alias: {2,3}]
  %s4 = sld [smem:[#allocation0]]
  $region74: #{mla_forward.5} parent=0
    _
  %s6 = ssub.s32 1, %s4
  %s7 = scalar_select 0, %s6, %s4
  $region1: #{mla_forward.5} parent=0
    #allocation3 [shape = 'u8[512]{0}', space=smem, size = 0x200, scoped, tag = 'input window, operand 0, single buffered']
    #allocation4 [shape = 's32[1]{0}', space=sflag, size = 0x4, scoped, tag = 'scoped memory for mla_forward.5']
    %8 = vsyncpa [#allocation4], 0
    // Predicated region
    $region2: #{mla_forward.5} parent=1 // pred_check
      _
    $region3: #{mla_forward.5} parent=1 // pred_check_branch
      %10 = sbr.rel (0) target = $region5
    $region4: #{mla_forward.5} parent=1 // pred_region
      %s12 = ssub.s32 16, 16
      %13 = vsyncadd [#allocation4], %s12
      %s15 = sshll.u32 %s0, 4
      %s16 = int_to_ptr.vmem [resolvable:$true] %s15
      %18 = dma.vmem_to_smem %s16, 16, [#allocation3], [#allocation4]
    $region5: #{mla_forward.5} parent=1 // pred_fallthru
      _
    // Predicated region
    $region6: #{mla_forward.5} parent=1 // pred_check
      _
    $region7: #{mla_forward.5} parent=1 // pred_check_branch
      %20 = sbr.rel (0) target = $region9
    $region8: #{mla_forward.5} parent=1 // pred_region
      _
    $region9: #{mla_forward.5} parent=1 // pred_fallthru
      _
    // Predicated region
    $region10: #{mla_forward.5} parent=1 // pred_check
      _
    $region11: #{mla_forward.5} parent=1 // pred_check_branch
      %22 = sbr.rel (0) target = $region13
    $region12: #{mla_forward.5} parent=1 // pred_region
      %23 = dma.done [#allocation4], 16
    $region13: #{mla_forward.5} parent=1 // pred_fallthru
      _
    %24 = sfence
    %s25 = sld [smem:[#allocation3]]
    %s26 = scalar_lea.vmem %s3, %s25
    %p28 = scmp.lt.u32.totalorder 1, 8
    %p29 = pneg %p28
    // Predicated region
    $region14: #{mla_forward.5} parent=1 // pred_check
      _
    $region15: #{mla_forward.5} parent=1 // pred_check_branch
      %31 = sbr.rel (%p28) target = $region17
    $region16: #{mla_forward.5} parent=1 // pred_region
      %s46 = sand.u32 1, 7
      %p47 = scmp.eq.s32.totalorder %s46, 0
      %p48 = pneg %p47
      // Predicated region
      $region29: #{mla_forward.5} parent=16 // pred_check
        _
      $region30: #{mla_forward.5} parent=16 // pred_check_branch
        %50 = sbr.rel (%p47) target = $region32
      $region31: #{mla_forward.5} parent=16 // pred_region
        %s51 = sand.u32 1, 7
        %s52 = ssub.s32 1, %s51
        %s53 = scalar_lea.vmem %s1, %s52
        %s54 = ssub.s32 1, %s51
        %s55 = scalar_lea.vmem %s26, %s54
        %s56 = sshllo.u32 0, %s51
        loop: start=0, step=1, limit=1
        $region33: #{mla_forward.5} parent=31 // loop_pre_header
          _
        $region34: #{mla_forward.5} parent=31 // loop_header
          %s58 = sphi 0, %s62
          %p59 = scmp.ge.s32.totalorder %s58, 1
          %s63 = sphi %s53, %s53
          %s64 = sphi %s55, %s55
        $region35: #{mla_forward.5} parent=31 // loop_header_branch
          %61 = sbr.rel (%p59) target = $region39
        $region36: #{mla_forward.5} parent=31 // loop_body
          %v65 = vld [vmem:[%s63] sm:%s56]
          %66 = vst [vmem:[%s64] sm:%s56] %v65
        $region37: #{mla_forward.5} parent=31 // loop_footer
          %s62 = sadd.s32 1, %s58
        $region38: #{mla_forward.5} parent=31 // loop_footer_branch
          %57 = sbr.rel target = $region34
        $region39: #{mla_forward.5} parent=31 // loop_exit
          _
      $region32: #{mla_forward.5} parent=16 // pred_fallthru
        _
    $region17: #{mla_forward.5} parent=1 // pred_fallthru
      _
    // Predicated region
    $region18: #{mla_forward.5} parent=1 // pred_check
      %p32 = pneg %p28
    $region19: #{mla_forward.5} parent=1 // pred_check_branch
      %34 = sbr.rel (%p32) target = $region21
    $region20: #{mla_forward.5} parent=1 // pred_region
      %s35 = sshllo.u32 0, 1
      loop: start=0, step=1, limit=1
      $region22: #{mla_forward.5} parent=20 // loop_pre_header
        _
      $region23: #{mla_forward.5} parent=20 // loop_header
        %s37 = sphi 0, %s41
        %p38 = scmp.ge.s32.totalorder %s37, 1
        %s42 = sphi %s1, %s1
        %s43 = sphi %s26, %s26
      $region24: #{mla_forward.5} parent=20 // loop_header_branch
        %40 = sbr.rel (%p38) target = $region28
      $region25: #{mla_forward.5} parent=20 // loop_body
        %v44 = vld [vmem:[%s42] sm:%s35]
        %45 = vst [vmem:[%s43] sm:%s35] %v44
      $region26: #{mla_forward.5} parent=20 // loop_footer
        %s41 = sadd.s32 1, %s37
      $region27: #{mla_forward.5} parent=20 // loop_footer_branch
        %36 = sbr.rel target = $region23
      $region28: #{mla_forward.5} parent=20 // loop_exit
        _
    $region21: #{mla_forward.5} parent=1 // pred_fallthru
      _
    // Predicated region
    $region40: #{mla_forward.5} parent=1 // pred_check
      _
    $region41: #{mla_forward.5} parent=1 // pred_check_branch
      %69 = sbr.rel (0) target = $region43
    $region42: #{mla_forward.5} parent=1 // pred_region
      %70 = vsyncadd [#allocation2], 16
    $region43: #{mla_forward.5} parent=1 // pred_fallthru
      _
    %s71 = sld [smem:[#allocation3 + $0x1]]
    %s72 = scalar_lea.vmem %s1, 1
    %s73 = scalar_lea.vmem %s3, %s71
    %s74 = scalar_lea.sflag [#allocation2], 1
    %p76 = scmp.lt.u32.totalorder 1, 8
    %p77 = pneg %p76
    // Predicated region
    $region44: #{mla_forward.5} parent=1 // pred_check
      _
    $region45: #{mla_forward.5} parent=1 // pred_check_branch
      %79 = sbr.rel (%p76) target = $region47
    $region46: #{mla_forward.5} parent=1 // pred_region
      %s94 = sand.u32 1, 7
      %p95 = scmp.eq.s32.totalorder %s94, 0
      %p96 = pneg %p95
      // Predicated region
      $region59: #{mla_forward.5} parent=46 // pred_check
        _
      $region60: #{mla_forward.5} parent=46 // pred_check_branch
        %98 = sbr.rel (%p95) target = $region62
      $region61: #{mla_forward.5} parent=46 // pred_region
        %s99 = sand.u32 1, 7
        %s100 = ssub.s32 1, %s99
        %s101 = scalar_lea.vmem %s72, %s100
        %s102 = ssub.s32 1, %s99
        %s103 = scalar_lea.vmem %s73, %s102
        %s104 = sshllo.u32 0, %s99
        loop: start=0, step=1, limit=1
        $region63: #{mla_forward.5} parent=61 // loop_pre_header
          _
        $region64: #{mla_forward.5} parent=61 // loop_header
          %s106 = sphi 0, %s110
          %p107 = scmp.ge.s32.totalorder %s106, 1
          %s111 = sphi %s101, %s101
          %s112 = sphi %s103, %s103
        $region65: #{mla_forward.5} parent=61 // loop_header_branch
          %109 = sbr.rel (%p107) target = $region69
        $region66: #{mla_forward.5} parent=61 // loop_body
          %v113 = vld [vmem:[%s111] sm:%s104]
          %114 = vst [vmem:[%s112] sm:%s104] %v113
        $region67: #{mla_forward.5} parent=61 // loop_footer
          %s110 = sadd.s32 1, %s106
        $region68: #{mla_forward.5} parent=61 // loop_footer_branch
          %105 = sbr.rel target = $region64
        $region69: #{mla_forward.5} parent=61 // loop_exit
          _
      $region62: #{mla_forward.5} parent=46 // pred_fallthru
        _
    $region47: #{mla_forward.5} parent=1 // pred_fallthru
      _
    // Predicated region
    $region48: #{mla_forward.5} parent=1 // pred_check
      %p80 = pneg %p76
    $region49: #{mla_forward.5} parent=1 // pred_check_branch
      %82 = sbr.rel (%p80) target = $region51
    $region50: #{mla_forward.5} parent=1 // pred_region
      %s83 = sshllo.u32 0, 1
      loop: start=0, step=1, limit=1
      $region52: #{mla_forward.5} parent=50 // loop_pre_header
        _
      $region53: #{mla_forward.5} parent=50 // loop_header
        %s85 = sphi 0, %s89
        %p86 = scmp.ge.s32.totalorder %s85, 1
        %s90 = sphi %s72, %s72
        %s91 = sphi %s73, %s73
      $region54: #{mla_forward.5} parent=50 // loop_header_branch
        %88 = sbr.rel (%p86) target = $region58
      $region55: #{mla_forward.5} parent=50 // loop_body
        %v92 = vld [vmem:[%s90] sm:%s83]
        %93 = vst [vmem:[%s91] sm:%s83] %v92
      $region56: #{mla_forward.5} parent=50 // loop_footer
        %s89 = sadd.s32 1, %s85
      $region57: #{mla_forward.5} parent=50 // loop_footer_branch
        %84 = sbr.rel target = $region53
      $region58: #{mla_forward.5} parent=50 // loop_exit
        _
    $region51: #{mla_forward.5} parent=1 // pred_fallthru
      _
    // Predicated region
    $region70: #{mla_forward.5} parent=1 // pred_check
      _
    $region71: #{mla_forward.5} parent=1 // pred_check_branch
      %117 = sbr.rel (0) target = $region73
    $region72: #{mla_forward.5} parent=1 // pred_region
      %118 = vsyncadd %s74, 16
    $region73: #{mla_forward.5} parent=1 // pred_fallthru
      _
    %s119 = sld [smem:[#allocation3]]
    %s120 = smul.u32 1, 1
    %s121 = sshll.u32 %s120, 4
    %122 = dma.done [#allocation2], %s121
    %s123 = sld [smem:[#allocation3 + $0x1]]
    %s124 = sshll.u32 %s120, 4
    %125 = dma.done %s74, %s124
    %126 = vsyncpa [#allocation4], 1
  %127 = vsyncmov [#allocation2]
  %s128 = vpop.sfrf %127
  %p129 = scmp.eq.s32.totalorder %s128, 0
  %p130 = pneg %p129
  %132 = shalt.err (%p130)
  %s133 = scalar_lea.sflag [#allocation2], 1
  %134 = vsyncmov %s133
  %s135 = vpop.sfrf %134
  %p136 = scmp.eq.s32.totalorder %s135, 0
  %p137 = pneg %p136
  %139 = shalt.err (%p137)

// kernel: mla_forward.4
$region0: #{mla_forward.4}
  #allocation0 [shape = 'u32[]', space=smem, size = 0x4, offset = 0x4, fixed_abs, tag = 'smem constant byte address 0x4 - core index']
  #allocation1 [shape = 'u32[144,128]{1,0:T(1,128)}', space=vmem, size = 0x12000, scoped, tag = 'internal scratch']
  %s0 = inlined_call_operand.vmem [shape: f32[2,64], index: 0, kind: input, shape index: {}]
  %s1 = inlined_call_operand.vmem [shape: bf16[64,32], index: 1, kind: input, shape index: {}]
  %s2 = inlined_call_operand.vmem [shape: f32[1,32], index: 2, kind: input, shape index: {}]
  %s3 = inlined_call_operand.vmem [shape: bf16[32,128], index: 3, kind: input, shape index: {}]
  %s4 = inlined_call_operand.vmem [shape: bf16[32,64], index: 4, kind: input, shape index: {}]
  %s5 = inlined_call_operand.vmem [shape: bf16[4,32,64], index: 5, kind: input, shape index: {}]
  %s6 = inlined_call_operand.vmem [shape: bf16[64,64], index: 6, kind: input, shape index: {}]
  %s7 = inlined_call_operand.vmem [shape: bf16[64,16], index: 7, kind: input, shape index: {}]
  %s8 = inlined_call_operand.vmem [shape: f32[1,64], index: 8, kind: input, shape index: {}]
  %s9 = inlined_call_operand.vmem [shape: f32[2,4,64], index: 9, kind: output, shape index: {0}]
  %s10 = inlined_call_operand.vmem [shape: f32[2,64], index: 10, kind: output, shape index: {1}]
  %s11 = inlined_call_operand.vmem [shape: f32[2,64], index: 11, kind: output, shape index: {2}]
  %s12 = inlined_call_operand.vmem [shape: f32[2,16], index: 12, kind: output, shape index: {3}]
  %13 = xla_tuple %s9, %s10, %s11, %s12
  %s14 = sld [smem:[#allocation0]]
  $region70: #{mla_forward.4} parent=0
    _
  %s16 = ssub.s32 1, %s14
  %s17 = scalar_select 0, %s16, %s14
  // Predicated region
  $region2: #{mla_forward.4} parent=0 // pred_check
    _
  $region3: #{mla_forward.4} parent=0 // pred_check_branch
    %19 = sbr.rel (0) target = $region5
  $region4: #{mla_forward.4} parent=0 // pred_region
    _
  $region5: #{mla_forward.4} parent=0 // pred_fallthru
    _
  // Predicated region
  $region6: #{mla_forward.4} parent=0 // pred_check
    _
  $region7: #{mla_forward.4} parent=0 // pred_check_branch
    %21 = sbr.rel (0) target = $region9
  $region8: #{mla_forward.4} parent=0 // pred_region
    _
  $region9: #{mla_forward.4} parent=0 // pred_fallthru
    _
  // Predicated region
  $region10: #{mla_forward.4} parent=0 // pred_check
    _
  $region11: #{mla_forward.4} parent=0 // pred_check_branch
    %23 = sbr.rel (0) target = $region13
  $region12: #{mla_forward.4} parent=0 // pred_region
    _
  $region13: #{mla_forward.4} parent=0 // pred_fallthru
    _
  // Predicated region
  $region14: #{mla_forward.4} parent=0 // pred_check
    _
  $region15: #{mla_forward.4} parent=0 // pred_check_branch
    %25 = sbr.rel (0) target = $region17
  $region16: #{mla_forward.4} parent=0 // pred_region
    _
  $region17: #{mla_forward.4} parent=0 // pred_fallthru
    _
  // Predicated region
  $region18: #{mla_forward.4} parent=0 // pred_check
    _
  $region19: #{mla_forward.4} parent=0 // pred_check_branch
    %27 = sbr.rel (0) target = $region21
  $region20: #{mla_forward.4} parent=0 // pred_region
    _
  $region21: #{mla_forward.4} parent=0 // pred_fallthru
    _
  // Predicated region
  $region22: #{mla_forward.4} parent=0 // pred_check
    _
  $region23: #{mla_forward.4} parent=0 // pred_check_branch
    %29 = sbr.rel (0) target = $region25
  $region24: #{mla_forward.4} parent=0 // pred_region
    _
  $region25: #{mla_forward.4} parent=0 // pred_fallthru
    _
  // Predicated region
  $region26: #{mla_forward.4} parent=0 // pred_check
    _
  $region27: #{mla_forward.4} parent=0 // pred_check_branch
    %31 = sbr.rel (0) target = $region29
  $region28: #{mla_forward.4} parent=0 // pred_region
    _
  $region29: #{mla_forward.4} parent=0 // pred_fallthru
    _
  // Predicated region
  $region30: #{mla_forward.4} parent=0 // pred_check
    _
  $region31: #{mla_forward.4} parent=0 // pred_check_branch
    %33 = sbr.rel (0) target = $region33
  $region32: #{mla_forward.4} parent=0 // pred_region
    _
  $region33: #{mla_forward.4} parent=0 // pred_fallthru
    _
  // Predicated region
  $region34: #{mla_forward.4} parent=0 // pred_check
    _
  $region35: #{mla_forward.4} parent=0 // pred_check_branch
    %35 = sbr.rel (0) target = $region37
  $region36: #{mla_forward.4} parent=0 // pred_region
    _
  $region37: #{mla_forward.4} parent=0 // pred_fallthru
    _
  %v37 = vld [vmem:[%s0] sm:$0x3]
  %v38 = vpack.c.bf16 %v37, %v37
  %v39 = vld [vmem:[%s1] sm:$0xf]
  %v40 = vld [vmem:[%s1 + $0x4] sm:$0xf]
  %v41 = vld [vmem:[%s1 + $0x8] sm:$0xf]
  %v42 = vld [vmem:[%s1 + $0xc] sm:$0xf]
  %v43 = vld [vmem:[%s1 + $0x10] sm:$0xf]
  %v44 = vld [vmem:[%s1 + $0x14] sm:$0xf]
  %v45 = vld [vmem:[%s1 + $0x18] sm:$0xf]
  %v46 = vld [vmem:[%s1 + $0x1c] sm:$0xf]
  %v55 = vunpack.c.l.b16 %v39
  %v56 = vunpack.c.l.b16 %v40
  %v57 = vunpack.c.l.b16 %v41
  %v58 = vunpack.c.l.b16 %v42
  %v59 = vunpack.c.l.b16 %v43
  %v60 = vunpack.c.l.b16 %v44
  %v61 = vunpack.c.l.b16 %v45
  %v62 = vunpack.c.l.b16 %v46
  %v63 = vpack.c.b16 %v56, %v55
  %v64 = vpack.c.b16 %v58, %v57
  %v65 = vpack.c.b16 %v60, %v59
  %v66 = vpack.c.b16 %v62, %v61
  %vm71 = vcmask 523264
  %v73 = vsel %vm71, %v38, 0
  %75 = vmatprep.subr.bf16.mxu0 0
  %76 = vmatpush1.bf16.msra.mxu0 %v63
  %77 = vmatprep.subr.bf16.mxu0 0
  %78 = vmatpush1.bf16.msra.mxu0 %v64
  %79 = vmatprep.subr.bf16.mxu0 0
  %80 = vmatpush1.bf16.msra.mxu0 %v65
  %81 = vmatprep.subr.bf16.mxu0 0
  %82 = vmatpush1.bf16.msra.mxu0 %v66
  %83 = vmatprep.subr.bf16.mxu0 0
  %84 = vmatpush1.bf16.msra.mxu0 0
  %85 = vmatprep.subr.bf16.mxu0 0
  %86 = vmatpush1.bf16.msra.mxu0 0
  %87 = vmatprep.subr.bf16.mxu0 0
  %88 = vmatpush1.bf16.msra.mxu0 0
  %89 = vmatprep.subr.bf16.mxu0 0
  %90 = vmatpush1.bf16.msra.mxu0 0
  %91 = vmatprep.subr.bf16.mxu0 0
  %92 = vmatpush1.bf16.msra.mxu0 0
  %93 = vmatprep.subr.bf16.mxu0 0
  %94 = vmatpush1.bf16.msra.mxu0 0
  %95 = vmatprep.subr.bf16.mxu0 0
  %96 = vmatpush1.bf16.msra.mxu0 0
  %97 = vmatprep.subr.bf16.mxu0 0
  %98 = vmatpush1.bf16.msra.mxu0 0
  %99 = vmatprep.subr.bf16.mxu0 0
  %100 = vmatpush1.bf16.msra.mxu0 0
  %101 = vmatprep.subr.bf16.mxu0 0
  %102 = vmatpush1.bf16.msra.mxu0 0
  %103 = vmatprep.subr.bf16.mxu0 0
  %104 = vmatpush1.bf16.msra.mxu0 0
  %105 = vmatprep.subr.bf16.mxu0 0
  %106 = vmatpush1.bf16.msra.mxu0 0
  %107 = vmatprep.mubr.bf16.mxu0 0
  %108 = vmatmul.mubr.bf16.gmra.mrb[0].mxu0 %v73
  %v109 = vpop.f32.mrb[0].mxu0
  %v110 = vadd.f32 0.0, %v109
  %v111 = vpop.f32.mrb[0].mxu0
  %v112 = vpop.f32.mrb[0].mxu0
  %v113 = vpop.f32.mrb[0].mxu0
  %114 = vdwg.mxu0
  %v115 = vmul.f32 %v110, %v110
  %vm116 = vcmask 254976
  %v117 = vsel %vm116, %v115, 0.0
  %118 = vadd.xlane.f32.xlu0 %v117
  %v119 = vpop.xlane.xlu0 %118
  %v120 = vrcp.pop 32.0
  %v121 = vmul.f32 %v119, %v120
  %v122 = vadd.f32 %v121, 1e-06
  %v123 = vrsqrt.pop %v122
  %v124 = vmul.f32 %v110, %v123
  %v125 = vld [vmem:[%s2] sm:$0x1]
  %v127 = vlaneseq
  %v128 = vshrl.u32 %v127, 7
  %v129 = vsub.s32 0, %v128
  %v130 = vrot.slane %v125, %v129
  %v132 = vmul.f32 %v124, %v130
  %v133 = vpack.c.bf16 %v132, %v132
  %v134 = vld [vmem:[%s4] sm:$0xf]
  %v135 = vld [vmem:[%s4 + $0x4] sm:$0xf]
  %v136 = vld [vmem:[%s4 + $0x8] sm:$0xf]
  %v137 = vld [vmem:[%s4 + $0xc] sm:$0xf]
  %v142 = vunpack.c.l.b16 %v134
  %v143 = vunpack.c.l.b16 %v135
  %v144 = vunpack.c.l.b16 %v136
  %v145 = vunpack.c.l.b16 %v137
  %v146 = vpack.c.b16 %v143, %v142
  %v147 = vpack.c.b16 %v145, %v144
  %vm150 = vcmask 261120
  %v152 = vsel %vm150, %v133, 0
  %154 = vmatprep.subr.bf16.mxu0 0
  %155 = vmatpush1.bf16.msra.mxu0 %v146
  %156 = vmatprep.subr.bf16.mxu0 0
  %157 = vmatpush1.bf16.msra.mxu0 %v147
  %158 = vmatprep.subr.bf16.mxu0 0
  %159 = vmatpush1.bf16.msra.mxu0 0
  %160 = vmatprep.subr.bf16.mxu0 0
  %161 = vmatpush1.bf16.msra.mxu0 0
  %162 = vmatprep.subr.bf16.mxu0 0
  %163 = vmatpush1.bf16.msra.mxu0 0
  %164 = vmatprep.subr.bf16.mxu0 0
  %165 = vmatpush1.bf16.msra.mxu0 0
  %166 = vmatprep.subr.bf16.mxu0 0
  %167 = vmatpush1.bf16.msra.mxu0 0
  %168 = vmatprep.subr.bf16.mxu0 0
  %169 = vmatpush1.bf16.msra.mxu0 0
  %170 = vmatprep.subr.bf16.mxu0 0
  %171 = vmatpush1.bf16.msra.mxu0 0
  %172 = vmatprep.subr.bf16.mxu0 0
  %173 = vmatpush1.bf16.msra.mxu0 0
  %174 = vmatprep.subr.bf16.mxu0 0
  %175 = vmatpush1.bf16.msra.mxu0 0
  %176 = vmatprep.subr.bf16.mxu0 0
  %177 = vmatpush1.bf16.msra.mxu0 0
  %178 = vmatprep.subr.bf16.mxu0 0
  %179 = vmatpush1.bf16.msra.mxu0 0
  %180 = vmatprep.subr.bf16.mxu0 0
  %181 = vmatpush1.bf16.msra.mxu0 0
  %182 = vmatprep.subr.bf16.mxu0 0
  %183 = vmatpush1.bf16.msra.mxu0 0
  %184 = vmatprep.subr.bf16.mxu0 0
  %185 = vmatpush1.bf16.msra.mxu0 0
  %186 = vmatprep.mubr.bf16.mxu0 0
  %187 = vmatmul.mubr.bf16.gmra.mrb[0].mxu0 %v152
  %v188 = vpop.f32.mrb[0].mxu0
  %v189 = vadd.f32 0.0, %v188
  %v190 = vpop.f32.mrb[0].mxu0
  %v191 = vpop.f32.mrb[0].mxu0
  %v192 = vpop.f32.mrb[0].mxu0
  %193 = vdwg.mxu0
  %vm194 = vcmask 517120
  %195 = vst.msk [vmem:[%s10] sm:$0x3] %vm194, %v189
  %v196 = vld [vmem:[%s3] sm:$0xf]
  %v197 = vld [vmem:[%s3 + $0x4] sm:$0xf]
  %v198 = vld [vmem:[%s3 + $0x8] sm:$0xf]
  %v199 = vld [vmem:[%s3 + $0xc] sm:$0xf]
  %v204 = vunpack.c.l.b16 %v196
  %v205 = vunpack.c.l.b16 %v197
  %v206 = vunpack.c.l.b16 %v198
  %v207 = vunpack.c.l.b16 %v199
  %v208 = vpack.c.b16 %v205, %v204
  %v209 = vpack.c.b16 %v207, %v206
  %212 = vmatprep.subr.bf16.mxu0 0
  %213 = vmatpush1.bf16.msra.mxu0 %v208
  %214 = vmatprep.subr.bf16.mxu0 0
  %215 = vmatpush1.bf16.msra.mxu0 %v209
  %216 = vmatprep.subr.bf16.mxu0 0
  %217 = vmatpush1.bf16.msra.mxu0 0
  %218 = vmatprep.subr.bf16.mxu0 0
  %219 = vmatpush1.bf16.msra.mxu0 0
  %220 = vmatprep.subr.bf16.mxu0 0
  %221 = vmatpush1.bf16.msra.mxu0 0
  %222 = vmatprep.subr.bf16.mxu0 0
  %223 = vmatpush1.bf16.msra.mxu0 0
  %224 = vmatprep.subr.bf16.mxu0 0
  %225 = vmatpush1.bf16.msra.mxu0 0
  %226 = vmatprep.subr.bf16.mxu0 0
  %227 = vmatpush1.bf16.msra.mxu0 0
  %228 = vmatprep.subr.bf16.mxu0 0
  %229 = vmatpush1.bf16.msra.mxu0 0
  %230 = vmatprep.subr.bf16.mxu0 0
  %231 = vmatpush1.bf16.msra.mxu0 0
  %232 = vmatprep.subr.bf16.mxu0 0
  %233 = vmatpush1.bf16.msra.mxu0 0
  %234 = vmatprep.subr.bf16.mxu0 0
  %235 = vmatpush1.bf16.msra.mxu0 0
  %236 = vmatprep.subr.bf16.mxu0 0
  %237 = vmatpush1.bf16.msra.mxu0 0
  %238 = vmatprep.subr.bf16.mxu0 0
  %239 = vmatpush1.bf16.msra.mxu0 0
  %240 = vmatprep.subr.bf16.mxu0 0
  %241 = vmatpush1.bf16.msra.mxu0 0
  %242 = vmatprep.subr.bf16.mxu0 0
  %243 = vmatpush1.bf16.msra.mxu0 0
  %244 = vmatprep.mubr.bf16.mxu0 0
  %245 = vmatmul.mubr.bf16.gmra.mrb[0].mxu0 %v152
  %v246 = vpop.f32.mrb[0].mxu0
  %v247 = vadd.f32 0.0, %v246
  %v248 = vpop.f32.mrb[0].mxu0
  %v249 = vpop.f32.mrb[0].mxu0
  %v250 = vpop.f32.mrb[0].mxu0
  %251 = vdwg.mxu0
  %v252 = vpack.c.bf16 %v247, %v247
  %v253 = vld [vmem:[%s5] sm:$0xf]
  %v254 = vld [vmem:[%s5 + $0x4] sm:$0xf]
  %v255 = vld [vmem:[%s5 + $0x8] sm:$0xf]
  %v256 = vld [vmem:[%s5 + $0xc] sm:$0xf]
  %v261 = vunpack.c.l.b16 %v253
  %v262 = vunpack.c.l.b16 %v254
  %v263 = vunpack.c.l.b16 %v255
  %v264 = vunpack.c.l.b16 %v256
  %v265 = vpack.c.b16 %v262, %v261
  %v266 = vpack.c.b16 %v264, %v263
  %v270 = vsel %vm150, %v252, 0
  %272 = vmatprep.subr.bf16.mxu0 0
  %273 = vmatpush1.bf16.msra.mxu0 %v265
  %274 = vmatprep.subr.bf16.mxu0 0
  %275 = vmatpush1.bf16.msra.mxu0 %v266
  %276 = vmatprep.subr.bf16.mxu0 0
  %277 = vmatpush1.bf16.msra.mxu0 0
  %278 = vmatprep.subr.bf16.mxu0 0
  %279 = vmatpush1.bf16.msra.mxu0 0
  %280 = vmatprep.subr.bf16.mxu0 0
  %281 = vmatpush1.bf16.msra.mxu0 0
  %282 = vmatprep.subr.bf16.mxu0 0
  %283 = vmatpush1.bf16.msra.mxu0 0
  %284 = vmatprep.subr.bf16.mxu0 0
  %285 = vmatpush1.bf16.msra.mxu0 0
  %286 = vmatprep.subr.bf16.mxu0 0
  %287 = vmatpush1.bf16.msra.mxu0 0
  %288 = vmatprep.subr.bf16.mxu0 0
  %289 = vmatpush1.bf16.msra.mxu0 0
  %290 = vmatprep.subr.bf16.mxu0 0
  %291 = vmatpush1.bf16.msra.mxu0 0
  %292 = vmatprep.subr.bf16.mxu0 0
  %293 = vmatpush1.bf16.msra.mxu0 0
  %294 = vmatprep.subr.bf16.mxu0 0
  %295 = vmatpush1.bf16.msra.mxu0 0
  %296 = vmatprep.subr.bf16.mxu0 0
  %297 = vmatpush1.bf16.msra.mxu0 0
  %298 = vmatprep.subr.bf16.mxu0 0
  %299 = vmatpush1.bf16.msra.mxu0 0
  %300 = vmatprep.subr.bf16.mxu0 0
  %301 = vmatpush1.bf16.msra.mxu0 0
  %302 = vmatprep.subr.bf16.mxu0 0
  %303 = vmatpush1.bf16.msra.mxu0 0
  %304 = vmatprep.mubr.bf16.mxu0 0
  %305 = vmatmul.mubr.bf16.gmra.mrb[0].mxu0 %v270
  %v306 = vpop.f32.mrb[0].mxu0
  %v307 = vadd.f32 0.0, %v306
  %v308 = vpop.f32.mrb[0].mxu0
  %v309 = vpop.f32.mrb[0].mxu0
  %v310 = vpop.f32.mrb[0].mxu0
  %311 = vdwg.mxu0
  %v314 = vunpack.c.l.s4 1966171168
  %v315 = vunpack.c.0.s8 %v314
  %v316 = vlaneseq
  %v317 = vshrl.u32 %v316, 7
  %v318 = vsub.s32 %v315, %v317
  %v319 = vrot.slane %v307, %v318
  %v320 = vcombine.high %v319, %v319
  %v322 = vunpack.c.l.s4 1966171168
  %v323 = vunpack.c.0.s8 %v322
  %v324 = vlaneseq
  %v325 = vshrl.u32 %v324, 7
  %v326 = vsub.s32 %v323, %v325
  %v327 = vrot.slane %v319, %v326
  %v329 = vunpack.c.l.s4 1966171168
  %v330 = vunpack.c.0.s8 %v329
  %v331 = vlaneseq
  %v332 = vshrl.u32 %v331, 7
  %v333 = vsub.s32 %v330, %v332
  %v334 = vrot.slane %v320, %v333
  %vm337 = vcmask 516096
  %338 = vst.msk [vmem:[%s9] sm:$0x1] %vm337, %v327
  %339 = vst.msk [vmem:[%s9 + $0x4] sm:$0x1] %vm337, %v334
  %s340 = scalar_lea.vmem %s5, 16
  %v341 = vld [vmem:[%s340] sm:$0xf]
  %v342 = vld [vmem:[%s340 + $0x4] sm:$0xf]
  %v343 = vld [vmem:[%s340 + $0x8] sm:$0xf]
  %v344 = vld [vmem:[%s340 + $0xc] sm:$0xf]
  %346 = vrot.lane.b32.xlu0 %v252, 96
  %v347 = vpop.permute.xlu0 %346
  %v352 = vunpack.c.l.b16 %v341
  %v353 = vunpack.c.l.b16 %v342
  %v354 = vunpack.c.l.b16 %v343
  %v355 = vunpack.c.l.b16 %v344
  %v356 = vpack.c.b16 %v353, %v352
  %v357 = vpack.c.b16 %v355, %v354
  %v361 = vsel %vm150, %v347, 0
  %363 = vmatprep.subr.bf16.mxu0 0
  %364 = vmatpush1.bf16.msra.mxu0 %v356
  %365 = vmatprep.subr.bf16.mxu0 0
  %366 = vmatpush1.bf16.msra.mxu0 %v357
  %367 = vmatprep.subr.bf16.mxu0 0
  %368 = vmatpush1.bf16.msra.mxu0 0
  %369 = vmatprep.subr.bf16.mxu0 0
  %370 = vmatpush1.bf16.msra.mxu0 0
  %371 = vmatprep.subr.bf16.mxu0 0
  %372 = vmatpush1.bf16.msra.mxu0 0
  %373 = vmatprep.subr.bf16.mxu0 0
  %374 = vmatpush1.bf16.msra.mxu0 0
  %375 = vmatprep.subr.bf16.mxu0 0
  %376 = vmatpush1.bf16.msra.mxu0 0
  %377 = vmatprep.subr.bf16.mxu0 0
  %378 = vmatpush1.bf16.msra.mxu0 0
  %379 = vmatprep.subr.bf16.mxu0 0
  %380 = vmatpush1.bf16.msra.mxu0 0
  %381 = vmatprep.subr.bf16.mxu0 0
  %382 = vmatpush1.bf16.msra.mxu0 0
  %383 = vmatprep.subr.bf16.mxu0 0
  %384 = vmatpush1.bf16.msra.mxu0 0
  %385 = vmatprep.subr.bf16.mxu0 0
  %386 = vmatpush1.bf16.msra.mxu0 0
  %387 = vmatprep.subr.bf16.mxu0 0
  %388 = vmatpush1.bf16.msra.mxu0 0
  %389 = vmatprep.subr.bf16.mxu0 0
  %390 = vmatpush1.bf16.msra.mxu0 0
  %391 = vmatprep.subr.bf16.mxu0 0
  %392 = vmatpush1.bf16.msra.mxu0 0
  %393 = vmatprep.subr.bf16.mxu0 0
  %394 = vmatpush1.bf16.msra.mxu0 0
  %395 = vmatprep.mubr.bf16.mxu0 0
  %396 = vmatmul.mubr.bf16.gmra.mrb[0].mxu0 %v361
  %v397 = vpop.f32.mrb[0].mxu0
  %v398 = vadd.f32 0.0, %v397
  %v399 = vpop.f32.mrb[0].mxu0
  %v400 = vpop.f32.mrb[0].mxu0
  %v401 = vpop.f32.mrb[0].mxu0
  %402 = vdwg.mxu0
  %v405 = vunpack.c.l.s4 1966171168
  %v406 = vunpack.c.0.s8 %v405
  %v407 = vlaneseq
  %v408 = vshrl.u32 %v407, 7
  %v409 = vsub.s32 %v406, %v408
  %v410 = vrot.slane %v398, %v409
  %v411 = vcombine.high %v410, %v410
  %v413 = vunpack.c.l.s4 1966171168
  %v414 = vunpack.c.0.s8 %v413
  %v415 = vlaneseq
  %v416 = vshrl.u32 %v415, 7
  %v417 = vsub.s32 %v414, %v416
  %v418 = vrot.slane %v410, %v417
  %v420 = vunpack.c.l.s4 1966171168
  %v421 = vunpack.c.0.s8 %v420
  %v422 = vlaneseq
  %v423 = vshrl.u32 %v422, 7
  %v424 = vsub.s32 %v421, %v423
  %v425 = vrot.slane %v411, %v424
  %428 = vst.msk [vmem:[%s9 + $0x1] sm:$0x1] %vm337, %v418
  %429 = vst.msk [vmem:[%s9 + $0x5] sm:$0x1] %vm337, %v425
  %s430 = scalar_lea.vmem %s5, 32
  %v431 = vld [vmem:[%s430] sm:$0xf]
  %v432 = vld [vmem:[%s430 + $0x4] sm:$0xf]
  %v433 = vld [vmem:[%s430 + $0x8] sm:$0xf]
  %v434 = vld [vmem:[%s430 + $0xc] sm:$0xf]
  %435 = vrot.lane.b32.xlu0 %v252, 64
  %v436 = vpop.permute.xlu0 %435
  %v441 = vunpack.c.l.b16 %v431
  %v442 = vunpack.c.l.b16 %v432
  %v443 = vunpack.c.l.b16 %v433
  %v444 = vunpack.c.l.b16 %v434
  %v445 = vpack.c.b16 %v442, %v441
  %v446 = vpack.c.b16 %v444, %v443
  %v450 = vsel %vm150, %v436, 0
  %452 = vmatprep.subr.bf16.mxu0 0
  %453 = vmatpush1.bf16.msra.mxu0 %v445
  %454 = vmatprep.subr.bf16.mxu0 0
  %455 = vmatpush1.bf16.msra.mxu0 %v446
  %456 = vmatprep.subr.bf16.mxu0 0
  %457 = vmatpush1.bf16.msra.mxu0 0
  %458 = vmatprep.subr.bf16.mxu0 0
  %459 = vmatpush1.bf16.msra.mxu0 0
  %460 = vmatprep.subr.bf16.mxu0 0
  %461 = vmatpush1.bf16.msra.mxu0 0
  %462 = vmatprep.subr.bf16.mxu0 0
  %463 = vmatpush1.bf16.msra.mxu0 0
  %464 = vmatprep.subr.bf16.mxu0 0
  %465 = vmatpush1.bf16.msra.mxu0 0
  %466 = vmatprep.subr.bf16.mxu0 0
  %467 = vmatpush1.bf16.msra.mxu0 0
  %468 = vmatprep.subr.bf16.mxu0 0
  %469 = vmatpush1.bf16.msra.mxu0 0
  %470 = vmatprep.subr.bf16.mxu0 0
  %471 = vmatpush1.bf16.msra.mxu0 0
  %472 = vmatprep.subr.bf16.mxu0 0
  %473 = vmatpush1.bf16.msra.mxu0 0
  %474 = vmatprep.subr.bf16.mxu0 0
  %475 = vmatpush1.bf16.msra.mxu0 0
  %476 = vmatprep.subr.bf16.mxu0 0
  %477 = vmatpush1.bf16.msra.mxu0 0
  %478 = vmatprep.subr.bf16.mxu0 0
  %479 = vmatpush1.bf16.msra.mxu0 0
  %480 = vmatprep.subr.bf16.mxu0 0
  %481 = vmatpush1.bf16.msra.mxu0 0
  %482 = vmatprep.subr.bf16.mxu0 0
  %483 = vmatpush1.bf16.msra.mxu0 0
  %484 = vmatprep.mubr.bf16.mxu0 0
  %485 = vmatmul.mubr.bf16.gmra.mrb[0].mxu0 %v450
  %v486 = vpop.f32.mrb[0].mxu0
  %v487 = vadd.f32 0.0, %v486
  %v488 = vpop.f32.mrb[0].mxu0
  %v489 = vpop.f32.mrb[0].mxu0
  %v490 = vpop.f32.mrb[0].mxu0
  %491 = vdwg.mxu0
  %v494 = vunpack.c.l.s4 1966171168
  %v495 = vunpack.c.0.s8 %v494
  %v496 = vlaneseq
  %v497 = vshrl.u32 %v496, 7
  %v498 = vsub.s32 %v495, %v497
  %v499 = vrot.slane %v487, %v498
  %v500 = vcombine.high %v499, %v499
  %v502 = vunpack.c.l.s4 1966171168
  %v503 = vunpack.c.0.s8 %v502
  %v504 = vlaneseq
  %v505 = vshrl.u32 %v504, 7
  %v506 = vsub.s32 %v503, %v505
  %v507 = vrot.slane %v499, %v506
  %v509 = vunpack.c.l.s4 1966171168
  %v510 = vunpack.c.0.s8 %v509
  %v511 = vlaneseq
  %v512 = vshrl.u32 %v511, 7
  %v513 = vsub.s32 %v510, %v512
  %v514 = vrot.slane %v500, %v513
  %517 = vst.msk [vmem:[%s9 + $0x2] sm:$0x1] %vm337, %v507
  %518 = vst.msk [vmem:[%s9 + $0x6] sm:$0x1] %vm337, %v514
  %s519 = scalar_lea.vmem %s5, 48
  %v520 = vld [vmem:[%s519] sm:$0xf]
  %v521 = vld [vmem:[%s519 + $0x4] sm:$0xf]
  %v522 = vld [vmem:[%s519 + $0x8] sm:$0xf]
  %v523 = vld [vmem:[%s519 + $0xc] sm:$0xf]
  %524 = vrot.lane.b32.xlu0 %v252, 32
  %v525 = vpop.permute.xlu0 %524
  %v530 = vunpack.c.l.b16 %v520
  %v531 = vunpack.c.l.b16 %v521
  %v532 = vunpack.c.l.b16 %v522
  %v533 = vunpack.c.l.b16 %v523
  %v534 = vpack.c.b16 %v531, %v530
  %v535 = vpack.c.b16 %v533, %v532
  %v539 = vsel %vm150, %v525, 0
  %541 = vmatprep.subr.bf16.mxu0 0
  %542 = vmatpush1.bf16.msra.mxu0 %v534
  %543 = vmatprep.subr.bf16.mxu0 0
  %544 = vmatpush1.bf16.msra.mxu0 %v535
  %545 = vmatprep.subr.bf16.mxu0 0
  %546 = vmatpush1.bf16.msra.mxu0 0
  %547 = vmatprep.subr.bf16.mxu0 0
  %548 = vmatpush1.bf16.msra.mxu0 0
  %549 = vmatprep.subr.bf16.mxu0 0
  %550 = vmatpush1.bf16.msra.mxu0 0
  %551 = vmatprep.subr.bf16.mxu0 0
  %552 = vmatpush1.bf16.msra.mxu0 0
  %553 = vmatprep.subr.bf16.mxu0 0
  %554 = vmatpush1.bf16.msra.mxu0 0
  %555 = vmatprep.subr.bf16.mxu0 0
  %556 = vmatpush1.bf16.msra.mxu0 0
  %557 = vmatprep.subr.bf16.mxu0 0
  %558 = vmatpush1.bf16.msra.mxu0 0
  %559 = vmatprep.subr.bf16.mxu0 0
  %560 = vmatpush1.bf16.msra.mxu0 0
  %561 = vmatprep.subr.bf16.mxu0 0
  %562 = vmatpush1.bf16.msra.mxu0 0
  %563 = vmatprep.subr.bf16.mxu0 0
  %564 = vmatpush1.bf16.msra.mxu0 0
  %565 = vmatprep.subr.bf16.mxu0 0
  %566 = vmatpush1.bf16.msra.mxu0 0
  %567 = vmatprep.subr.bf16.mxu0 0
  %568 = vmatpush1.bf16.msra.mxu0 0
  %569 = vmatprep.subr.bf16.mxu0 0
  %570 = vmatpush1.bf16.msra.mxu0 0
  %571 = vmatprep.subr.bf16.mxu0 0
  %572 = vmatpush1.bf16.msra.mxu0 0
  %573 = vmatprep.mubr.bf16.mxu0 0
  %574 = vmatmul.mubr.bf16.gmra.mrb[0].mxu0 %v539
  %v575 = vpop.f32.mrb[0].mxu0
  %v576 = vadd.f32 0.0, %v575
  %v577 = vpop.f32.mrb[0].mxu0
  %v578 = vpop.f32.mrb[0].mxu0
  %v579 = vpop.f32.mrb[0].mxu0
  %580 = vdwg.mxu0
  %v583 = vunpack.c.l.s4 1966171168
  %v584 = vunpack.c.0.s8 %v583
  %v585 = vlaneseq
  %v586 = vshrl.u32 %v585, 7
  %v587 = vsub.s32 %v584, %v586
  %v588 = vrot.slane %v576, %v587
  %v589 = vcombine.high %v588, %v588
  %v591 = vunpack.c.l.s4 1966171168
  %v592 = vunpack.c.0.s8 %v591
  %v593 = vlaneseq
  %v594 = vshrl.u32 %v593, 7
  %v595 = vsub.s32 %v592, %v594
  %v596 = vrot.slane %v588, %v595
  %v598 = vunpack.c.l.s4 1966171168
  %v599 = vunpack.c.0.s8 %v598
  %v600 = vlaneseq
  %v601 = vshrl.u32 %v600, 7
  %v602 = vsub.s32 %v599, %v601
  %v603 = vrot.slane %v589, %v602
  %606 = vst.msk [vmem:[%s9 + $0x3] sm:$0x1] %vm337, %v596
  %607 = vst.msk [vmem:[%s9 + $0x7] sm:$0x1] %vm337, %v603
  %v608 = vld [vmem:[%s6] sm:$0xf]
  %v609 = vld [vmem:[%s6 + $0x4] sm:$0xf]
  %v610 = vld [vmem:[%s6 + $0x8] sm:$0xf]
  %v611 = vld [vmem:[%s6 + $0xc] sm:$0xf]
  %v612 = vld [vmem:[%s6 + $0x10] sm:$0xf]
  %v613 = vld [vmem:[%s6 + $0x14] sm:$0xf]
  %v614 = vld [vmem:[%s6 + $0x18] sm:$0xf]
  %v615 = vld [vmem:[%s6 + $0x1c] sm:$0xf]
  %v624 = vunpack.c.l.b16 %v608
  %v625 = vunpack.c.l.b16 %v609
  %v626 = vunpack.c.l.b16 %v610
  %v627 = vunpack.c.l.b16 %v611
  %v628 = vunpack.c.l.b16 %v612
  %v629 = vunpack.c.l.b16 %v613
  %v630 = vunpack.c.l.b16 %v614
  %v631 = vunpack.c.l.b16 %v615
  %v632 = vpack.c.b16 %v625, %v624
  %v633 = vpack.c.b16 %v627, %v626
  %v634 = vpack.c.b16 %v629, %v628
  %v635 = vpack.c.b16 %v631, %v630
  %640 = vmatprep.subr.bf16.mxu0 0
  %641 = vmatpush1.bf16.msra.mxu0 %v632
  %642 = vmatprep.subr.bf16.mxu0 0
  %643 = vmatpush1.bf16.msra.mxu0 %v633
  %644 = vmatprep.subr.bf16.mxu0 0
  %645 = vmatpush1.bf16.msra.mxu0 %v634
  %646 = vmatprep.subr.bf16.mxu0 0
  %647 = vmatpush1.bf16.msra.mxu0 %v635
  %648 = vmatprep.subr.bf16.mxu0 0
  %649 = vmatpush1.bf16.msra.mxu0 0
  %650 = vmatprep.subr.bf16.mxu0 0
  %651 = vmatpush1.bf16.msra.mxu0 0
  %652 = vmatprep.subr.bf16.mxu0 0
  %653 = vmatpush1.bf16.msra.mxu0 0
  %654 = vmatprep.subr.bf16.mxu0 0
  %655 = vmatpush1.bf16.msra.mxu0 0
  %656 = vmatprep.subr.bf16.mxu0 0
  %657 = vmatpush1.bf16.msra.mxu0 0
  %658 = vmatprep.subr.bf16.mxu0 0
  %659 = vmatpush1.bf16.msra.mxu0 0
  %660 = vmatprep.subr.bf16.mxu0 0
  %661 = vmatpush1.bf16.msra.mxu0 0
  %662 = vmatprep.subr.bf16.mxu0 0
  %663 = vmatpush1.bf16.msra.mxu0 0
  %664 = vmatprep.subr.bf16.mxu0 0
  %665 = vmatpush1.bf16.msra.mxu0 0
  %666 = vmatprep.subr.bf16.mxu0 0
  %667 = vmatpush1.bf16.msra.mxu0 0
  %668 = vmatprep.subr.bf16.mxu0 0
  %669 = vmatpush1.bf16.msra.mxu0 0
  %670 = vmatprep.subr.bf16.mxu0 0
  %671 = vmatpush1.bf16.msra.mxu0 0
  %672 = vmatprep.mubr.bf16.mxu0 0
  %673 = vmatmul.mubr.bf16.gmra.mrb[0].mxu0 %v73
  %v674 = vpop.f32.mrb[0].mxu0
  %v675 = vadd.f32 0.0, %v674
  %v676 = vpop.f32.mrb[0].mxu0
  %v677 = vpop.f32.mrb[0].mxu0
  %v678 = vpop.f32.mrb[0].mxu0
  %679 = vdwg.mxu0
  %v680 = vld [vmem:[%s7] sm:$0xf]
  %v681 = vld [vmem:[%s7 + $0x4] sm:$0xf]
  %v682 = vld [vmem:[%s7 + $0x8] sm:$0xf]
  %v683 = vld [vmem:[%s7 + $0xc] sm:$0xf]
  %v684 = vld [vmem:[%s7 + $0x10] sm:$0xf]
  %v685 = vld [vmem:[%s7 + $0x14] sm:$0xf]
  %v686 = vld [vmem:[%s7 + $0x18] sm:$0xf]
  %v687 = vld [vmem:[%s7 + $0x1c] sm:$0xf]
  %v696 = vunpack.c.l.b16 %v680
  %v697 = vunpack.c.l.b16 %v681
  %v698 = vunpack.c.l.b16 %v682
  %v699 = vunpack.c.l.b16 %v683
  %v700 = vunpack.c.l.b16 %v684
  %v701 = vunpack.c.l.b16 %v685
  %v702 = vunpack.c.l.b16 %v686
  %v703 = vunpack.c.l.b16 %v687
  %v704 = vpack.c.b16 %v697, %v696
  %v705 = vpack.c.b16 %v699, %v698
  %v706 = vpack.c.b16 %v701, %v700
  %v707 = vpack.c.b16 %v703, %v702
  %712 = vmatprep.subr.bf16.mxu0 0
  %713 = vmatpush1.bf16.msra.mxu0 %v704
  %714 = vmatprep.subr.bf16.mxu0 0
  %715 = vmatpush1.bf16.msra.mxu0 %v705
  %716 = vmatprep.subr.bf16.mxu0 0
  %717 = vmatpush1.bf16.msra.mxu0 %v706
  %718 = vmatprep.subr.bf16.mxu0 0
  %719 = vmatpush1.bf16.msra.mxu0 %v707
  %720 = vmatprep.subr.bf16.mxu0 0
  %721 = vmatpush1.bf16.msra.mxu0 0
  %722 = vmatprep.subr.bf16.mxu0 0
  %723 = vmatpush1.bf16.msra.mxu0 0
  %724 = vmatprep.subr.bf16.mxu0 0
  %725 = vmatpush1.bf16.msra.mxu0 0
  %726 = vmatprep.subr.bf16.mxu0 0
  %727 = vmatpush1.bf16.msra.mxu0 0
  %728 = vmatprep.subr.bf16.mxu0 0
  %729 = vmatpush1.bf16.msra.mxu0 0
  %730 = vmatprep.subr.bf16.mxu0 0
  %731 = vmatpush1.bf16.msra.mxu0 0
  %732 = vmatprep.subr.bf16.mxu0 0
  %733 = vmatpush1.bf16.msra.mxu0 0
  %734 = vmatprep.subr.bf16.mxu0 0
  %735 = vmatpush1.bf16.msra.mxu0 0
  %736 = vmatprep.subr.bf16.mxu0 0
  %737 = vmatpush1.bf16.msra.mxu0 0
  %738 = vmatprep.subr.bf16.mxu0 0
  %739 = vmatpush1.bf16.msra.mxu0 0
  %740 = vmatprep.subr.bf16.mxu0 0
  %741 = vmatpush1.bf16.msra.mxu0 0
  %742 = vmatprep.subr.bf16.mxu0 0
  %743 = vmatpush1.bf16.msra.mxu0 0
  %744 = vmatprep.mubr.bf16.mxu0 0
  %745 = vmatmul.mubr.bf16.gmra.mrb[0].mxu0 %v73
  %v746 = vpop.f32.mrb[0].mxu0
  %v747 = vadd.f32 0.0, %v746
  %v748 = vpop.f32.mrb[0].mxu0
  %v749 = vpop.f32.mrb[0].mxu0
  %v750 = vpop.f32.mrb[0].mxu0
  %751 = vdwg.mxu0
  %vm752 = vcmask 123904
  %753 = vst.msk [vmem:[%s12] sm:$0x3] %vm752, %v747
  %v754 = vmul.f32 %v675, %v675
  %v755 = vsel %vm194, %v754, 0.0
  %756 = vadd.xlane.f32.xlu0 %v755
  %v757 = vpop.xlane.xlu0 %756
  %v758 = vrcp.pop 64.0
  %v759 = vmul.f32 %v757, %v758
  %v760 = vadd.f32 %v759, 1e-06
  %v761 = vrsqrt.pop %v760
  %v762 = vmul.f32 %v675, %v761
  %v763 = vld [vmem:[%s8] sm:$0x1]
  %v765 = vlaneseq
  %v766 = vshrl.u32 %v765, 7
  %v767 = vsub.s32 0, %v766
  %v768 = vrot.slane %v763, %v767
  %v770 = vmul.f32 %v762, %v768
  %771 = vst.msk [vmem:[%s11] sm:$0x3] %vm194, %v770
  // Predicated region
  $region38: #{mla_forward.4} parent=0 // pred_check
    _
  $region39: #{mla_forward.4} parent=0 // pred_check_branch
    %773 = sbr.rel (0) target = $region41
  $region40: #{mla_forward.4} parent=0 // pred_region
    _
  $region41: #{mla_forward.4} parent=0 // pred_fallthru
    _
  // Predicated region
  $region42: #{mla_forward.4} parent=0 // pred_check
    _
  $region43: #{mla_forward.4} parent=0 // pred_check_branch
    %775 = sbr.rel (0) target = $region45
  $region44: #{mla_forward.4} parent=0 // pred_region
    _
  $region45: #{mla_forward.4} parent=0 // pred_fallthru
    _
  // Predicated region
  $region46: #{mla_forward.4} parent=0 // pred_check
    _
  $region47: #{mla_forward.4} parent=0 // pred_check_branch
    %777 = sbr.rel (0) target = $region49
  $region48: #{mla_forward.4} parent=0 // pred_region
    _
  $region49: #{mla_forward.4} parent=0 // pred_fallthru
    _
  // Predicated region
  $region50: #{mla_forward.4} parent=0 // pred_check
    _
  $region51: #{mla_forward.4} parent=0 // pred_check_branch
    %779 = sbr.rel (0) target = $region53
  $region52: #{mla_forward.4} parent=0 // pred_region
    _
  $region53: #{mla_forward.4} parent=0 // pred_fallthru
    _
  // Predicated region
  $region54: #{mla_forward.4} parent=0 // pred_check
    _
  $region55: #{mla_forward.4} parent=0 // pred_check_branch
    %781 = sbr.rel (0) target = $region57
  $region56: #{mla_forward.4} parent=0 // pred_region
    _
  $region57: #{mla_forward.4} parent=0 // pred_fallthru
    _
  // Predicated region
  $region58: #{mla_forward.4} parent=0 // pred_check
    _
  $region59: #{mla_forward.4} parent=0 // pred_check_branch
    %783 = sbr.rel (0) target = $region61
  $region60: #{mla_forward.4} parent=0 // pred_region
    _
  $region61: #{mla_forward.4} parent=0 // pred_fallthru
    _
  // Predicated region
  $region62: #{mla_forward.4} parent=0 // pred_check
    _
  $region63: #{mla_forward.4} parent=0 // pred_check_branch
    %785 = sbr.rel (0) target = $region65
  $region64: #{mla_forward.4} parent=0 // pred_region
    _
  $region65: #{mla_forward.4} parent=0 // pred_fallthru
    _
  // Predicated region
  $region66: #{mla_forward.4} parent=0 // pred_check
    _
  $region67: #{mla_forward.4} parent=0 // pred_check_branch
    %787 = sbr.rel (0) target = $region69
  $region68: #{mla_forward.4} parent=0 // pred_region
    _
  $region69: #{mla_forward.4} parent=0 // pred_fallthru
    _

// kernel: mla_forward.6
$region0: #{mla_forward.6}
  #allocation0 [shape = 'u32[]', space=smem, size = 0x4, offset = 0x4, fixed_abs, tag = 'smem constant byte address 0x4 - core index']
  #allocation1 [shape = 'u32[144,128]{1,0:T(1,128)}', space=vmem, size = 0x12000, scoped, tag = 'internal scratch']
  #allocation2 [shape = 'f32[16,80]{1,0:T(8,128)}', space=vmem, size = 0x2000, scoped, tag = 'scratch operand']
  #allocation3 [shape = 's32[2]{0}', space=sflag, size = 0x8, scoped, tag = 'scratch operand']
  #allocation4 [shape = 's32[1]{0}', space=sflag, size = 0x4, scoped, tag = 'scoped memory for mla_forward.6']
  #allocation5 [shape = 'u8[1024]{0}', space=smem, size = 0x400, scoped, tag = 'prefetched SMEM operand 0']
  #allocation6 [shape = 'u8[512]{0}', space=smem, size = 0x200, scoped, tag = 'prefetched SMEM operand 1']
  #allocation7 [shape = 's32[]', space=sflag, size = 0x4, offset = 0, fixed_abs, tag = 'sflag constant byte address 0x0 - dummy sync flag']
  #allocation8 [shape = 's32[]', space=sflag, size = 0x4, offset = 0, fixed_abs, tag = 'sflag constant byte address 0x0 - dummy sync flag']
  %s0 = inlined_call_operand.vmem [shape: s32[2,16], index: 0, kind: input, shape index: {}]
  %s1 = inlined_call_operand.vmem [shape: s32[2], index: 1, kind: input, shape index: {}]
  %s2 = inlined_call_operand.vmem [shape: f32[2,4,64], index: 2, kind: input, shape index: {}]
  %s3 = inlined_call_operand.vmem [shape: f32[2,4,16], index: 3, kind: input, shape index: {}]
  %s4 = inlined_call_operand.vmem [shape: f32[64,80], index: 4, kind: input, shape index: {}]
  %s5 = inlined_call_operand.vmem [shape: f32[2,4,64], index: 5, kind: output, shape index: {}]
  %s6 = sld [smem:[#allocation0]]
  $region116: #{mla_forward.6} parent=0
    _
  %s8 = ssub.s32 1, %s6
  %s9 = scalar_select 0, %s8, %s6
  %s10 = sshll.u32 %s0, 4
  %s11 = int_to_ptr.vmem [resolvable:$true] %s10
  %13 = dma.vmem_to_smem %s11, 32, [#allocation5], [#allocation4]
  %s14 = sshll.u32 %s1, 4
  %s15 = int_to_ptr.vmem [resolvable:$true] %s14
  %17 = dma.vmem_to_smem %s15, 16, [#allocation6], [#allocation4]
  %18 = dma.done [#allocation4], 48
  %19 = sfence
  loop: start=0, step=1, limit=4
  $region2: #{mla_forward.6} parent=0 // loop_pre_header
    _
  $region3: #{mla_forward.6} parent=0 // loop_header
    %s21 = sphi 0, %s25
    %p22 = scmp.ge.s32.totalorder %s21, 4
    %s31 = sphi 0, %s33
    %s34 = sphi 0, %s31
    %s35 = sphi 0, %s34
    %s51 = sphi 0, %s35
    %s57 = sphi 0, %s59
    %s60 = sphi 0, %s57
    %s61 = sphi 0, %s60
    %s77 = sphi 0, %s61
    %s83 = sphi 0, %s85
    %s86 = sphi 0, %s83
    %s87 = sphi 0, %s86
    %s103 = sphi 0, %s87
  $region4: #{mla_forward.6} parent=0 // loop_header_branch
    %24 = sbr.rel (%p22) target = $region8
  $region5: #{mla_forward.6} parent=0 // loop_body
    %s26 = ssub.s32 %s21, 1
    %s27 = ssub.s32 %s21, 2
    %s28 = sadd.s32 %s21, 1
    %s29 = ssub.s32 %s21, %s28
    %p30 = scmp.eq.s32.totalorder %s29, 0
    %s32 = sadd.s32 %s31, 1
    %s33 = scalar_select %p30, %s31, %s32
    %p36 = pneg %p30
    %p37 = scmp.eq.s32.totalorder %s21, 1
    %p38 = por %p36, %p37
    %p39 = scmp.ne.s32.totalorder %s31, %s34
    %p40 = scmp.eq.s32.totalorder %s21, 0
    %p41 = por %p39, %p40
    %p42 = scmp.ne.s32.totalorder %s31, %s34
    %p43 = scmp.eq.s32.totalorder %s26, 1
    %p44 = por %p42, %p43
    %p45 = scmp.ne.s32.totalorder %s34, %s35
    %p46 = scmp.eq.s32.totalorder %s26, 0
    %p47 = por %p45, %p46
    %p48 = scmp.ne.s32.totalorder %s34, %s35
    %p49 = scmp.eq.s32.totalorder %s27, 1
    %p50 = por %p48, %p49
    %p52 = scmp.ne.s32.totalorder %s35, %s51
    %p53 = scmp.eq.s32.totalorder %s27, 0
    %p54 = por %p52, %p53
    %s55 = ssub.s32 %s21, %s28
    %p56 = scmp.eq.s32.totalorder %s55, 0
    %s58 = sadd.s32 %s57, 1
    %s59 = scalar_select %p56, %s57, %s58
    %p62 = pneg %p56
    %p63 = scmp.eq.s32.totalorder %s21, 1
    %p64 = por %p62, %p63
    %p65 = scmp.ne.s32.totalorder %s57, %s60
    %p66 = scmp.eq.s32.totalorder %s21, 0
    %p67 = por %p65, %p66
    %p68 = scmp.ne.s32.totalorder %s57, %s60
    %p69 = scmp.eq.s32.totalorder %s26, 1
    %p70 = por %p68, %p69
    %p71 = scmp.ne.s32.totalorder %s60, %s61
    %p72 = scmp.eq.s32.totalorder %s26, 0
    %p73 = por %p71, %p72
    %p74 = scmp.ne.s32.totalorder %s60, %s61
    %p75 = scmp.eq.s32.totalorder %s27, 1
    %p76 = por %p74, %p75
    %p78 = scmp.ne.s32.totalorder %s61, %s77
    %p79 = scmp.eq.s32.totalorder %s27, 0
    %p80 = por %p78, %p79
    %s81 = ssub.s32 %s21, %s28
    %p82 = scmp.eq.s32.totalorder %s81, 0
    %s84 = sadd.s32 %s83, 1
    %s85 = scalar_select %p82, %s83, %s84
    %p88 = pneg %p82
    %p89 = scmp.eq.s32.totalorder %s21, 1
    %p90 = por %p88, %p89
    %p91 = scmp.ne.s32.totalorder %s83, %s86
    %p92 = scmp.eq.s32.totalorder %s21, 0
    %p93 = por %p91, %p92
    %p94 = scmp.ne.s32.totalorder %s83, %s86
    %p95 = scmp.eq.s32.totalorder %s26, 1
    %p96 = por %p94, %p95
    %p97 = scmp.ne.s32.totalorder %s86, %s87
    %p98 = scmp.eq.s32.totalorder %s26, 0
    %p99 = por %p97, %p98
    %p100 = scmp.ne.s32.totalorder %s86, %s87
    %p101 = scmp.eq.s32.totalorder %s27, 1
    %p102 = por %p100, %p101
    %p104 = scmp.ne.s32.totalorder %s87, %s103
    %p105 = scmp.eq.s32.totalorder %s27, 0
    %p106 = por %p104, %p105
    %p107 = scmp.le.s32.totalorder 1, %s21
    %p108 = scmp.lt.s32.totalorder %s21, 3
    %p109 = pnand %p107, %p108
    %p110 = pneg %p109
    // Predicated region
    $region9: #{mla_forward.6} parent=5 // pred_check
      _
    $region10: #{mla_forward.6} parent=5 // pred_check_branch
      %112 = sbr.rel (%p109) target = $region12
    $region11: #{mla_forward.6} parent=5 // pred_region
      %s113 = ssub.s32 %s21, 1
    $region12: #{mla_forward.6} parent=5 // pred_fallthru
      _
    %p114 = scmp.lt.s32.totalorder %s21, 2
    // Predicated region
    $region13: #{mla_forward.6} parent=5 // pred_check
      %p115 = pneg %p114
    $region14: #{mla_forward.6} parent=5 // pred_check_branch
      %117 = sbr.rel (%p115) target = $region16
    $region15: #{mla_forward.6} parent=5 // pred_region
      // Predicated region
      $region17: #{mla_forward.6} parent=15 // pred_check
        %p118 = pneg %p41
      $region18: #{mla_forward.6} parent=15 // pred_check_branch
        %120 = sbr.rel (%p118) target = $region20
      $region19: #{mla_forward.6} parent=15 // pred_region
        %p121 = scmp.lt.s32.totalorder %s21, 1
        %s122 = scalar_select %p121, %s21, 1
        %s123 = smul.addr %s122, 4
        %s124 = scalar_lea.vmem %s2, %s123
      $region20: #{mla_forward.6} parent=15 // pred_fallthru
        _
      // Predicated region
      $region21: #{mla_forward.6} parent=15 // pred_check
        %p125 = pneg %p67
      $region22: #{mla_forward.6} parent=15 // pred_check_branch
        %127 = sbr.rel (%p125) target = $region24
      $region23: #{mla_forward.6} parent=15 // pred_region
        %p128 = scmp.lt.s32.totalorder %s21, 1
        %s129 = scalar_select %p128, %s21, 1
        %s130 = smul.addr %s129, 4
        %s131 = scalar_lea.vmem %s3, %s130
      $region24: #{mla_forward.6} parent=15 // pred_fallthru
        _
    $region16: #{mla_forward.6} parent=5 // pred_fallthru
      _
    %p132 = scmp.le.s32.totalorder 1, %s21
    %p133 = scmp.lt.s32.totalorder %s21, 3
    %p134 = pnand %p132, %p133
    %p135 = pneg %p134
    // Predicated region
    $region25: #{mla_forward.6} parent=5 // pred_check
      _
    $region26: #{mla_forward.6} parent=5 // pred_check_branch
      %137 = sbr.rel (%p134) target = $region28
    $region27: #{mla_forward.6} parent=5 // pred_region
      %s138 = ssub.s32 %s21, 1
      %p139 = scmp.lt.s32.totalorder %s26, 1
      %s140 = scalar_select %p139, %s26, 1
      %s141 = smul.addr %s140, 4
      %s142 = scalar_lea.vmem %s2, %s141
      %p143 = pneg %p47
      %p144 = pneg %p44
      %p145 = scmp.lt.s32.totalorder %s26, 1
      %s146 = scalar_select %p145, %s26, 1
      %s147 = smul.addr %s146, 4
      %s148 = scalar_lea.vmem %s3, %s147
      %p149 = pneg %p73
      %p150 = pneg %p70
      %p151 = pneg %p99
      %p152 = pneg %p96
      %p153 = scmp.lt.s32.totalorder %s26, 1
      %s154 = scalar_select %p153, %s26, 1
      %s155 = smul.addr %s154, 4
      %s156 = scalar_lea.vmem %s5, %s155
      %p157 = scmp.lt.s32.totalorder %s26, 1
      %s158 = scalar_select %p157, %s26, 1
      %s159 = smul.addr %s158, 4
      %s160 = scalar_lea.vmem %s2, %s159
      %p161 = scmp.lt.s32.totalorder %s26, 1
      %s162 = scalar_select %p161, %s26, 1
      %s163 = smul.addr %s162, 4
      %s164 = scalar_lea.vmem %s3, %s163
      %p165 = scmp.lt.s32.totalorder %s26, 1
      %s166 = scalar_select %p165, %s26, 1
      %s167 = smul.addr %s166, 4
      %s168 = scalar_lea.vmem %s5, %s167
      %s169 = sld [smem:[#allocation6 + %s26]]
      %p170 = scmp.gt.s32.totalorder %s169, 0
      // Predicated region
      $region29: #{mla_forward.6} parent=27 // pred_check
        %p171 = pneg %p170
      $region30: #{mla_forward.6} parent=27 // pred_check_branch
        %173 = sbr.rel (%p171) target = $region32
      $region31: #{mla_forward.6} parent=27 // pred_region
        %s174 = smul.u32 %s26, 128
        %s175 = sld [smem:[#allocation5 + %s174]]
        %s176 = scalar_lea.vmem %s4, %s175
        %p178 = scmp.lt.u32.totalorder 1, 8
        %p179 = pneg %p178
        // Predicated region
        $region33: #{mla_forward.6} parent=31 // pred_check
          _
        $region34: #{mla_forward.6} parent=31 // pred_check_branch
          %181 = sbr.rel (%p178) target = $region36
        $region35: #{mla_forward.6} parent=31 // pred_region
          %s196 = sand.u32 1, 7
          %p197 = scmp.eq.s32.totalorder %s196, 0
          %p198 = pneg %p197
          // Predicated region
          $region48: #{mla_forward.6} parent=35 // pred_check
            _
          $region49: #{mla_forward.6} parent=35 // pred_check_branch
            %200 = sbr.rel (%p197) target = $region51
          $region50: #{mla_forward.6} parent=35 // pred_region
            %s201 = sand.u32 1, 7
            %s202 = ssub.s32 1, %s201
            %s203 = scalar_lea.vmem %s176, %s202
            %s204 = ssub.s32 1, %s201
            %s205 = scalar_lea.vmem [#allocation2], %s204
            %s206 = sshllo.u32 0, %s201
            loop: start=0, step=1, limit=1
            $region52: #{mla_forward.6} parent=50 // loop_pre_header
              _
            $region53: #{mla_forward.6} parent=50 // loop_header
              %s208 = sphi 0, %s212
              %p209 = scmp.ge.s32.totalorder %s208, 1
              %s213 = sphi %s203, %s203
              %s214 = sphi %s205, %s205
            $region54: #{mla_forward.6} parent=50 // loop_header_branch
              %211 = sbr.rel (%p209) target = $region58
            $region55: #{mla_forward.6} parent=50 // loop_body
              %v215 = vld [vmem:[%s213] sm:%s206]
              %216 = vst [vmem:[%s214] sm:%s206] %v215
            $region56: #{mla_forward.6} parent=50 // loop_footer
              %s212 = sadd.s32 1, %s208
            $region57: #{mla_forward.6} parent=50 // loop_footer_branch
              %207 = sbr.rel target = $region53
            $region58: #{mla_forward.6} parent=50 // loop_exit
              _
          $region51: #{mla_forward.6} parent=35 // pred_fallthru
            _
        $region36: #{mla_forward.6} parent=31 // pred_fallthru
          _
        // Predicated region
        $region37: #{mla_forward.6} parent=31 // pred_check
          %p182 = pneg %p178
        $region38: #{mla_forward.6} parent=31 // pred_check_branch
          %184 = sbr.rel (%p182) target = $region40
        $region39: #{mla_forward.6} parent=31 // pred_region
          %s185 = sshllo.u32 0, 1
          loop: start=0, step=1, limit=1
          $region41: #{mla_forward.6} parent=39 // loop_pre_header
            _
          $region42: #{mla_forward.6} parent=39 // loop_header
            %s187 = sphi 0, %s191
            %p188 = scmp.ge.s32.totalorder %s187, 1
            %s192 = sphi %s176, %s176
            %s193 = sphi [#allocation2], [#allocation2]
          $region43: #{mla_forward.6} parent=39 // loop_header_branch
            %190 = sbr.rel (%p188) target = $region47
          $region44: #{mla_forward.6} parent=39 // loop_body
            %v194 = vld [vmem:[%s192] sm:%s185]
            %195 = vst [vmem:[%s193] sm:%s185] %v194
          $region45: #{mla_forward.6} parent=39 // loop_footer
            %s191 = sadd.s32 1, %s187
          $region46: #{mla_forward.6} parent=39 // loop_footer_branch
            %186 = sbr.rel target = $region42
          $region47: #{mla_forward.6} parent=39 // loop_exit
            _
        $region40: #{mla_forward.6} parent=31 // pred_fallthru
          _
        // Predicated region
        $region59: #{mla_forward.6} parent=31 // pred_check
          _
        $region60: #{mla_forward.6} parent=31 // pred_check_branch
          %219 = sbr.rel (0) target = $region62
        $region61: #{mla_forward.6} parent=31 // pred_region
          %220 = vsyncadd [#allocation3], 16
        $region62: #{mla_forward.6} parent=31 // pred_fallthru
          _
      $region32: #{mla_forward.6} parent=27 // pred_fallthru
        _
      // While loop
      $region63: #{mla_forward.6} parent=27 // loop_pre_header
        _
      $region64: #{mla_forward.6} parent=27 // loop_header
        %s222 = sphi 0, %s224
        %p223 = scmp.ge.s32.totalorder %s222, %s169
      $region65: #{mla_forward.6} parent=27 // loop_header_branch
        %226 = sbr.rel (%p223) target = $region69
      $region66: #{mla_forward.6} parent=27 // loop_body
        %p227 = scmp.lt.s32.totalorder %s222, 0
        %s228 = ssub.s32 0, %s222
        %s229 = scalar_select %p227, %s228, %s222
        %s230 = sand.u32 %s229, 1
        %s231 = ssub.s32 0, %s230
        %s232 = scalar_select %p227, %s231, %s230
        %p233 = scmp.ne.s32.totalorder %s232, 0
        %p234 = scmp.lt.s32.totalorder %s232, 0
        %p235 = pnand %p234, %p233
        %p236 = pneg %p235
        %s237 = sadd.s32 %s232, 2
        %s238 = scalar_select %p236, %s237, %s232
        %s239 = sadd.s32 %s222, 1
        %p240 = scmp.lt.s32.totalorder %s239, %s169
        // Predicated region
        $region70: #{mla_forward.6} parent=66 // pred_check
          %p241 = pneg %p240
        $region71: #{mla_forward.6} parent=66 // pred_check_branch
          %243 = sbr.rel (%p241) target = $region73
        $region72: #{mla_forward.6} parent=66 // pred_region
          %s244 = ssub.s32 1, %s238
          %s245 = sshra.s32 %s239, 7
          %s246 = sand.u32 %s239, 127
          %s247 = sadd.s32 %s245, %s26
          %s248 = smul.u32 %s247, 128
          %s249 = sshra.s32 %s239, 7
          %s250 = sand.u32 %s239, 127
          %s251 = sadd.s32 %s248, %s250
          %s252 = sld [smem:[#allocation5 + %s251]]
          %s253 = scalar_lea.vmem %s4, %s252
          %s254 = scalar_lea.vmem [#allocation2], %s239
          %s255 = scalar_lea.sflag [#allocation3], %s244
          %p257 = scmp.lt.u32.totalorder 1, 8
          %p258 = pneg %p257
          // Predicated region
          $region74: #{mla_forward.6} parent=72 // pred_check
            _
          $region75: #{mla_forward.6} parent=72 // pred_check_branch
            %260 = sbr.rel (%p257) target = $region77
          $region76: #{mla_forward.6} parent=72 // pred_region
            %s275 = sand.u32 1, 7
            %p276 = scmp.eq.s32.totalorder %s275, 0
            %p277 = pneg %p276
            // Predicated region
            $region89: #{mla_forward.6} parent=76 // pred_check
              _
            $region90: #{mla_forward.6} parent=76 // pred_check_branch
              %279 = sbr.rel (%p276) target = $region92
            $region91: #{mla_forward.6} parent=76 // pred_region
              %s280 = sand.u32 1, 7
              %s281 = ssub.s32 1, %s280
              %s282 = scalar_lea.vmem %s253, %s281
              %s283 = ssub.s32 1, %s280
              %s284 = scalar_lea.vmem %s254, %s283 [#allocation2]
              %s285 = sshllo.u32 0, %s280
              loop: start=0, step=1, limit=1
              $region93: #{mla_forward.6} parent=91 // loop_pre_header
                _
              $region94: #{mla_forward.6} parent=91 // loop_header
                %s287 = sphi 0, %s291
                %p288 = scmp.ge.s32.totalorder %s287, 1
                %s292 = sphi %s282, %s282
                %s293 = sphi %s284, %s284
              $region95: #{mla_forward.6} parent=91 // loop_header_branch
                %290 = sbr.rel (%p288) target = $region99
              $region96: #{mla_forward.6} parent=91 // loop_body
                %v294 = vld [vmem:[%s292] sm:%s285]
                %295 = vst [vmem:[%s293] sm:%s285] %v294
              $region97: #{mla_forward.6} parent=91 // loop_footer
                %s291 = sadd.s32 1, %s287
              $region98: #{mla_forward.6} parent=91 // loop_footer_branch
                %286 = sbr.rel target = $region94
              $region99: #{mla_forward.6} parent=91 // loop_exit
                _
            $region92: #{mla_forward.6} parent=76 // pred_fallthru
              _
          $region77: #{mla_forward.6} parent=72 // pred_fallthru
            _
          // Predicated region
          $region78: #{mla_forward.6} parent=72 // pred_check
            %p261 = pneg %p257
          $region79: #{mla_forward.6} parent=72 // pred_check_branch
            %263 = sbr.rel (%p261) target = $region81
          $region80: #{mla_forward.6} parent=72 // pred_region
            %s264 = sshllo.u32 0, 1
            loop: start=0, step=1, limit=1
            $region82: #{mla_forward.6} parent=80 // loop_pre_header
              _
            $region83: #{mla_forward.6} parent=80 // loop_header
              %s266 = sphi 0, %s270
              %p267 = scmp.ge.s32.totalorder %s266, 1
              %s271 = sphi %s253, %s253
              %s272 = sphi %s254, %s254
            $region84: #{mla_forward.6} parent=80 // loop_header_branch
              %269 = sbr.rel (%p267) target = $region88
            $region85: #{mla_forward.6} parent=80 // loop_body
              %v273 = vld [vmem:[%s271] sm:%s264]
              %274 = vst [vmem:[%s272] sm:%s264] %v273
            $region86: #{mla_forward.6} parent=80 // loop_footer
              %s270 = sadd.s32 1, %s266
            $region87: #{mla_forward.6} parent=80 // loop_footer_branch
              %265 = sbr.rel target = $region83
            $region88: #{mla_forward.6} parent=80 // loop_exit
              _
          $region81: #{mla_forward.6} parent=72 // pred_fallthru
            _
          // Predicated region
          $region100: #{mla_forward.6} parent=72 // pred_check
            _
          $region101: #{mla_forward.6} parent=72 // pred_check_branch
            %298 = sbr.rel (0) target = $region103
          $region102: #{mla_forward.6} parent=72 // pred_region
            %299 = vsyncadd %s255, 16
          $region103: #{mla_forward.6} parent=72 // pred_fallthru
            _
        $region73: #{mla_forward.6} parent=66 // pred_fallthru
          _
        %s300 = sshra.s32 %s222, 7
        %s301 = sand.u32 %s222, 127
        %s302 = sadd.s32 %s300, %s26
        %s303 = smul.u32 %s302, 128
        %s304 = sshra.s32 %s222, 7
        %s305 = sand.u32 %s222, 127
        %s306 = sadd.s32 %s303, %s305
        %s307 = sld [smem:[#allocation5 + %s306]]
        %s308 = scalar_lea.sflag [#allocation3], %s238
        %s309 = smul.u32 1, 1
        %s310 = sshll.u32 %s309, 4
        %311 = dma.done %s308, %s310
      $region67: #{mla_forward.6} parent=27 // loop_footer
        %s224 = sadd.s32 %s222, 1
      $region68: #{mla_forward.6} parent=27 // loop_footer_branch
        %221 = sbr.rel target = $region64
      $region69: #{mla_forward.6} parent=27 // loop_exit
        _
      %v312 = vld [vmem:[%s160] sm:$0xf]
      %v313 = vmul.f32 %v312, 0.14433756
      %v314 = vld [vmem:[%s164] sm:$0xf]
      %v315 = vmul.f32 %v314, 0.14433756
      %v316 = vlaneseq
      %v317 = vshrl.u32 %v316, 7
      %v318 = vadd.s32 %v317, 8
      %v319 = vstv %s169
      %vm320 = vcmp.lt.s32.totalorder %v317, %v319
      %vm321 = vcmp.lt.s32.totalorder %v318, %v319
      %v322 = vld [vmem:[#allocation2] sm:$0xff]
      %v323 = vld [vmem:[#allocation2 + $0x8] sm:$0xff]
      %v324 = vsel %vm320, 1, 0
      %v325 = vsel %vm321, 1, 0
      %vm326 = vcmp.eq.s32.totalorder %v324, 1
      %vm327 = vcmp.eq.s32.totalorder %v325, 1
      %v328 = vsel %vm326, %v322, 0.0
      %v329 = vsel %vm327, %v323, 0.0
      %332 = vrot.lane.b32.xlu0 %v328, 64
      %v333 = vpop.permute.xlu0 %332
      %334 = vrot.lane.b32.xlu0 %v329, 64
      %v335 = vpop.permute.xlu0 %334
      %vm336 = vcmask 130048
      %v338 = vsel %vm336, %v315, 0
      %v340 = vsel %vm336, %v333, 0
      %v342 = vsel %vm336, %v335, 0
      %344 = vmatprep.subr.mxu0 0.0
      %345 = vmatpush1.xpose.msra.mxu0 %v340
      %346 = vmatprep.subr.mxu0 0.0
      %347 = vmatpush1.xpose.msra.mxu0 %v342
      %348 = vmatprep.subr.mxu0 0.0
      %349 = vmatpush1.xpose.msra.mxu0 0.0
      %350 = vmatprep.subr.mxu0 0.0
      %351 = vmatpush1.xpose.msra.mxu0 0.0
      %352 = vmatprep.subr.mxu0 0.0
      %353 = vmatpush1.xpose.msra.mxu0 0.0
      %354 = vmatprep.subr.mxu0 0.0
      %355 = vmatpush1.xpose.msra.mxu0 0.0
      %356 = vmatprep.subr.mxu0 0.0
      %357 = vmatpush1.xpose.msra.mxu0 0.0
      %358 = vmatprep.subr.mxu0 0.0
      %359 = vmatpush1.xpose.msra.mxu0 0.0
      %360 = vmatprep.subr.mxu0 0.0
      %361 = vmatpush1.xpose.msra.mxu0 0.0
      %362 = vmatprep.subr.mxu0 0.0
      %363 = vmatpush1.xpose.msra.mxu0 0.0
      %364 = vmatprep.subr.mxu0 0.0
      %365 = vmatpush1.xpose.msra.mxu0 0.0
      %366 = vmatprep.subr.mxu0 0.0
      %367 = vmatpush1.xpose.msra.mxu0 0.0
      %368 = vmatprep.subr.mxu0 0.0
      %369 = vmatpush1.xpose.msra.mxu0 0.0
      %370 = vmatprep.subr.mxu0 0.0
      %371 = vmatpush1.xpose.msra.mxu0 0.0
      %372 = vmatprep.subr.mxu0 0.0
      %373 = vmatpush1.xpose.msra.mxu0 0.0
      %374 = vmatprep.subr.mxu0 0.0
      %375 = vmatpush1.xpose.msra.mxu0 0.0
      %376 = vmatprep.subr.mxu0 0.0
      %377 = vmatpush1.xpose.msra.mxu0 0.0
      %378 = vmatprep.subr.mxu0 0.0
      %379 = vmatpush1.xpose.msra.mxu0 0.0
      %380 = vmatprep.subr.mxu0 0.0
      %381 = vmatpush1.xpose.msra.mxu0 0.0
      %382 = vmatprep.subr.mxu0 0.0
      %383 = vmatpush1.xpose.msra.mxu0 0.0
      %384 = vmatprep.subr.mxu0 0.0
      %385 = vmatpush1.xpose.msra.mxu0 0.0
      %386 = vmatprep.subr.mxu0 0.0
      %387 = vmatpush1.xpose.msra.mxu0 0.0
      %388 = vmatprep.subr.mxu0 0.0
      %389 = vmatpush1.xpose.msra.mxu0 0.0
      %390 = vmatprep.subr.mxu0 0.0
      %391 = vmatpush1.xpose.msra.mxu0 0.0
      %392 = vmatprep.subr.mxu0 0.0
      %393 = vmatpush1.xpose.msra.mxu0 0.0
      %394 = vmatprep.subr.mxu0 0.0
      %395 = vmatpush1.xpose.msra.mxu0 0.0
      %396 = vmatprep.subr.mxu0 0.0
      %397 = vmatpush1.xpose.msra.mxu0 0.0
      %398 = vmatprep.subr.mxu0 0.0
      %399 = vmatpush1.xpose.msra.mxu0 0.0
      %400 = vmatprep.subr.mxu0 0.0
      %401 = vmatpush1.xpose.msra.mxu0 0.0
      %402 = vmatprep.subr.mxu0 0.0
      %403 = vmatpush1.xpose.msra.mxu0 0.0
      %404 = vmatprep.subr.mxu0 0.0
      %405 = vmatpush1.xpose.msra.mxu0 0.0
      %406 = vmatprep.subr.mxu0 0.0
      %407 = vmatpush1.xpose.msra.mxu0 0.0
      %408 = vmatprep.mubr.f32.mxu0 0.0
      %409 = vmatmul.mubr.f32.gmra.mrb[0].mxu0 %v338
      %v410 = vpop.f32.mrb[0].mxu0
      %v411 = vadd.f32 0.0, %v410
      %v412 = vpop.f32.mrb[0].mxu0
      %413 = vdwg.mxu0
      %vm414 = vcmask 523264
      %v416 = vsel %vm414, %v313, 0
      %v418 = vsel %vm414, %v328, 0
      %v420 = vsel %vm414, %v329, 0
      %422 = vmatprep.subr.mxu0 0.0
      %423 = vmatpush1.xpose.msra.mxu0 %v418
      %424 = vmatprep.subr.mxu0 0.0
      %425 = vmatpush1.xpose.msra.mxu0 %v420
      %426 = vmatprep.subr.mxu0 0.0
      %427 = vmatpush1.xpose.msra.mxu0 0.0
      %428 = vmatprep.subr.mxu0 0.0
      %429 = vmatpush1.xpose.msra.mxu0 0.0
      %430 = vmatprep.subr.mxu0 0.0
      %431 = vmatpush1.xpose.msra.mxu0 0.0
      %432 = vmatprep.subr.mxu0 0.0
      %433 = vmatpush1.xpose.msra.mxu0 0.0
      %434 = vmatprep.subr.mxu0 0.0
      %435 = vmatpush1.xpose.msra.mxu0 0.0
      %436 = vmatprep.subr.mxu0 0.0
      %437 = vmatpush1.xpose.msra.mxu0 0.0
      %438 = vmatprep.subr.mxu0 0.0
      %439 = vmatpush1.xpose.msra.mxu0 0.0
      %440 = vmatprep.subr.mxu0 0.0
      %441 = vmatpush1.xpose.msra.mxu0 0.0
      %442 = vmatprep.subr.mxu0 0.0
      %443 = vmatpush1.xpose.msra.mxu0 0.0
      %444 = vmatprep.subr.mxu0 0.0
      %445 = vmatpush1.xpose.msra.mxu0 0.0
      %446 = vmatprep.subr.mxu0 0.0
      %447 = vmatpush1.xpose.msra.mxu0 0.0
      %448 = vmatprep.subr.mxu0 0.0
      %449 = vmatpush1.xpose.msra.mxu0 0.0
      %450 = vmatprep.subr.mxu0 0.0
      %451 = vmatpush1.xpose.msra.mxu0 0.0
      %452 = vmatprep.subr.mxu0 0.0
      %453 = vmatpush1.xpose.msra.mxu0 0.0
      %454 = vmatprep.subr.mxu0 0.0
      %455 = vmatpush1.xpose.msra.mxu0 0.0
      %456 = vmatprep.subr.mxu0 0.0
      %457 = vmatpush1.xpose.msra.mxu0 0.0
      %458 = vmatprep.subr.mxu0 0.0
      %459 = vmatpush1.xpose.msra.mxu0 0.0
      %460 = vmatprep.subr.mxu0 0.0
      %461 = vmatpush1.xpose.msra.mxu0 0.0
      %462 = vmatprep.subr.mxu0 0.0
      %463 = vmatpush1.xpose.msra.mxu0 0.0
      %464 = vmatprep.subr.mxu0 0.0
      %465 = vmatpush1.xpose.msra.mxu0 0.0
      %466 = vmatprep.subr.mxu0 0.0
      %467 = vmatpush1.xpose.msra.mxu0 0.0
      %468 = vmatprep.subr.mxu0 0.0
      %469 = vmatpush1.xpose.msra.mxu0 0.0
      %470 = vmatprep.subr.mxu0 0.0
      %471 = vmatpush1.xpose.msra.mxu0 0.0
      %472 = vmatprep.subr.mxu0 0.0
      %473 = vmatpush1.xpose.msra.mxu0 0.0
      %474 = vmatprep.subr.mxu0 0.0
      %475 = vmatpush1.xpose.msra.mxu0 0.0
      %476 = vmatprep.subr.mxu0 0.0
      %477 = vmatpush1.xpose.msra.mxu0 0.0
      %478 = vmatprep.subr.mxu0 0.0
      %479 = vmatpush1.xpose.msra.mxu0 0.0
      %480 = vmatprep.subr.mxu0 0.0
      %481 = vmatpush1.xpose.msra.mxu0 0.0
      %482 = vmatprep.subr.mxu0 0.0
      %483 = vmatpush1.xpose.msra.mxu0 0.0
      %484 = vmatprep.subr.mxu0 0.0
      %485 = vmatpush1.xpose.msra.mxu0 0.0
      %486 = vmatprep.mubr.f32.mxu0 0.0
      %487 = vmatmul.mubr.f32.gmra.mrb[0].mxu0 %v416
      %v488 = vpop.f32.mrb[0].mxu0
      %v489 = vadd.f32 %v411, %v488
      %v490 = vpop.f32.mrb[0].mxu0
      %491 = vdwg.mxu0
      %v492 = vlaneseq
      %v493 = vand.u32 %v492, 127
      %vm494 = vcmp.lt.s32.totalorder %v493, %v319
      %v495 = vsel %vm494, %v489, -inf
      %vm496 = vcmask 125952
      %v497 = vsel %vm496, %v495, -inf
      %498 = vmax.xlane.f32.xlu0 %v497
      %v499 = vpop.xlane.xlu0 %498
      %v500 = vsub.f32 %v495, %v499
      %v501 = vmul.f32 %v500, 1.442695
      %v502 = vpow.pop %v501
      %v503 = vsel %vm496, %v502, 0.0
      %504 = vadd.xlane.f32.xlu0 %v503
      %v505 = vpop.xlane.xlu0 %504
      %v506 = vmax.f32 %v505, 1e-30
      %v508 = vsel %vm336, %v502, 0
      %510 = vmatprep.subr.mxu0 0.0
      %511 = vmatpush1.msra.mxu0 %v328
      %512 = vmatprep.subr.mxu0 0.0
      %513 = vmatpush1.msra.mxu0 %v329
      %514 = vmatprep.subr.mxu0 0.0
      %515 = vmatpush1.msra.mxu0 0.0
      %516 = vmatprep.subr.mxu0 0.0
      %517 = vmatpush1.msra.mxu0 0.0
      %518 = vmatprep.subr.mxu0 0.0
      %519 = vmatpush1.msra.mxu0 0.0
      %520 = vmatprep.subr.mxu0 0.0
      %521 = vmatpush1.msra.mxu0 0.0
      %522 = vmatprep.subr.mxu0 0.0
      %523 = vmatpush1.msra.mxu0 0.0
      %524 = vmatprep.subr.mxu0 0.0
      %525 = vmatpush1.msra.mxu0 0.0
      %526 = vmatprep.subr.mxu0 0.0
      %527 = vmatpush1.msra.mxu0 0.0
      %528 = vmatprep.subr.mxu0 0.0
      %529 = vmatpush1.msra.mxu0 0.0
      %530 = vmatprep.subr.mxu0 0.0
      %531 = vmatpush1.msra.mxu0 0.0
      %532 = vmatprep.subr.mxu0 0.0
      %533 = vmatpush1.msra.mxu0 0.0
      %534 = vmatprep.subr.mxu0 0.0
      %535 = vmatpush1.msra.mxu0 0.0
      %536 = vmatprep.subr.mxu0 0.0
      %537 = vmatpush1.msra.mxu0 0.0
      %538 = vmatprep.subr.mxu0 0.0
      %539 = vmatpush1.msra.mxu0 0.0
      %540 = vmatprep.subr.mxu0 0.0
      %541 = vmatpush1.msra.mxu0 0.0
      %542 = vmatprep.subr.mxu0 0.0
      %543 = vmatpush1.msra.mxu0 0.0
      %544 = vmatprep.subr.mxu0 0.0
      %545 = vmatpush1.msra.mxu0 0.0
      %546 = vmatprep.subr.mxu0 0.0
      %547 = vmatpush1.msra.mxu0 0.0
      %548 = vmatprep.subr.mxu0 0.0
      %549 = vmatpush1.msra.mxu0 0.0
      %550 = vmatprep.subr.mxu0 0.0
      %551 = vmatpush1.msra.mxu0 0.0
      %552 = vmatprep.subr.mxu0 0.0
      %553 = vmatpush1.msra.mxu0 0.0
      %554 = vmatprep.subr.mxu0 0.0
      %555 = vmatpush1.msra.mxu0 0.0
      %556 = vmatprep.subr.mxu0 0.0
      %557 = vmatpush1.msra.mxu0 0.0
      %558 = vmatprep.subr.mxu0 0.0
      %559 = vmatpush1.msra.mxu0 0.0
      %560 = vmatprep.subr.mxu0 0.0
      %561 = vmatpush1.msra.mxu0 0.0
      %562 = vmatprep.subr.mxu0 0.0
      %563 = vmatpush1.msra.mxu0 0.0
      %564 = vmatprep.subr.mxu0 0.0
      %565 = vmatpush1.msra.mxu0 0.0
      %566 = vmatprep.subr.mxu0 0.0
      %567 = vmatpush1.msra.mxu0 0.0
      %568 = vmatprep.subr.mxu0 0.0
      %569 = vmatpush1.msra.mxu0 0.0
      %570 = vmatprep.subr.mxu0 0.0
      %571 = vmatpush1.msra.mxu0 0.0
      %572 = vmatprep.subr.mxu0 0.0
      %573 = vmatpush1.msra.mxu0 0.0
      %574 = vmatprep.mubr.f32.mxu0 0.0
      %575 = vmatmul.mubr.f32.gmra.mrb[0].mxu0 %v508
      %v576 = vpop.f32.mrb[0].mxu0
      %v577 = vadd.f32 0.0, %v576
      %v578 = vpop.f32.mrb[0].mxu0
      %579 = vdwg.mxu0
      %v580 = vrcp.pop %v506
      %v581 = vmul.f32 %v577, %v580
      %vm582 = vcmask 519168
      %583 = vst.msk [vmem:[%s168] sm:$0xf] %vm582, %v581
      %p584 = scmp.lt.s32.totalorder %s26, 1
      %s585 = scalar_select %p584, %s26, 1
      %s586 = smul.addr %s585, 4
      %s587 = scalar_lea.vmem %s5, %s586
      // Predicated region
      $region104: #{mla_forward.6} parent=27 // pred_check
        %p588 = pneg %p96
      $region105: #{mla_forward.6} parent=27 // pred_check_branch
        %590 = sbr.rel (%p588) target = $region107
      $region106: #{mla_forward.6} parent=27 // pred_region
        _
      $region107: #{mla_forward.6} parent=27 // pred_fallthru
        _
    $region28: #{mla_forward.6} parent=5 // pred_fallthru
      _
    %p591 = scmp.le.s32.totalorder 2, %s21
    // Predicated region
    $region108: #{mla_forward.6} parent=5 // pred_check
      %p592 = pneg %p591
    $region109: #{mla_forward.6} parent=5 // pred_check_branch
      %594 = sbr.rel (%p592) target = $region111
    $region110: #{mla_forward.6} parent=5 // pred_region
      %s595 = ssub.s32 %s21, 2
      // Predicated region
      $region112: #{mla_forward.6} parent=110 // pred_check
        %p596 = pneg %p102
      $region113: #{mla_forward.6} parent=110 // pred_check_branch
        %598 = sbr.rel (%p596) target = $region115
      $region114: #{mla_forward.6} parent=110 // pred_region
        %p599 = scmp.lt.s32.totalorder %s27, 1
        %s600 = scalar_select %p599, %s27, 1
        %s601 = smul.addr %s600, 4
        %s602 = scalar_lea.vmem %s5, %s601
      $region115: #{mla_forward.6} parent=110 // pred_fallthru
        _
    $region111: #{mla_forward.6} parent=5 // pred_fallthru
      _
  $region6: #{mla_forward.6} parent=0 // loop_footer
    %s25 = sadd.s32 1, %s21
  $region7: #{mla_forward.6} parent=0 // loop_footer_branch
    %20 = sbr.rel target = $region3
  $region8: #{mla_forward.6} parent=0 // loop_exit
    _
  %603 = vsyncmov [#allocation3]
  %s604 = vpop.sfrf %603
  %p605 = scmp.eq.s32.totalorder %s604, 0
  %p606 = pneg %p605
  %608 = shalt.err (%p606)
  %s609 = scalar_lea.sflag [#allocation3], 1
  %610 = vsyncmov %s609
  %s611 = vpop.sfrf %610
  %p612 = scmp.eq.s32.totalorder %s611, 0
  %p613 = pneg %p612
  %615 = shalt.err (%p613)

// kernel: mla_forward.7
$region0: #{mla_forward.7}
  #allocation0 [shape = 'u32[]', space=smem, size = 0x4, offset = 0x4, fixed_abs, tag = 'smem constant byte address 0x4 - core index']
  #allocation1 [shape = 'u32[144,128]{1,0:T(1,128)}', space=vmem, size = 0x12000, scoped, tag = 'internal scratch']
  %s0 = inlined_call_operand.vmem [shape: f32[2,4,64], index: 0, kind: input, shape index: {}]
  %s1 = inlined_call_operand.vmem [shape: bf16[4,64,32], index: 1, kind: input, shape index: {}]
  %s2 = inlined_call_operand.vmem [shape: bf16[128,64], index: 2, kind: input, shape index: {}]
  %s3 = inlined_call_operand.hbm [shape: f32[2,64], index: 3, kind: output, shape index: {}]
  %s4 = sld [smem:[#allocation0]]
  $region22: #{mla_forward.7} parent=0
    _
  %s6 = ssub.s32 1, %s4
  %s7 = scalar_select 0, %s6, %s4
  $region1: #{mla_forward.7} parent=0
    #allocation2 [shape = 'u8[1024]{0}', space=vmem, size = 0x400, scoped, tag = 'output window, operand 0, single buffered']
    #allocation3 [shape = 's32[1]{0}', space=sflag, size = 0x4, scoped, tag = 'scoped memory for mla_forward.7']
    %8 = vsyncpa [#allocation3], 0
    // Predicated region
    $region2: #{mla_forward.7} parent=1 // pred_check
      _
    $region3: #{mla_forward.7} parent=1 // pred_check_branch
      %10 = sbr.rel (0) target = $region5
    $region4: #{mla_forward.7} parent=1 // pred_region
      _
    $region5: #{mla_forward.7} parent=1 // pred_fallthru
      _
    // Predicated region
    $region6: #{mla_forward.7} parent=1 // pred_check
      _
    $region7: #{mla_forward.7} parent=1 // pred_check_branch
      %12 = sbr.rel (0) target = $region9
    $region8: #{mla_forward.7} parent=1 // pred_region
      _
    $region9: #{mla_forward.7} parent=1 // pred_fallthru
      _
    // Predicated region
    $region10: #{mla_forward.7} parent=1 // pred_check
      _
    $region11: #{mla_forward.7} parent=1 // pred_check_branch
      %14 = sbr.rel (0) target = $region13
    $region12: #{mla_forward.7} parent=1 // pred_region
      _
    $region13: #{mla_forward.7} parent=1 // pred_fallthru
      _
    %v16 = vld [vmem:[%s0] sm:$0x1]
    %v17 = vld [vmem:[%s0 + $0x4] sm:$0x1]
    %v18 = vpack.c.bf16 %v16, %v16
    %v19 = vpack.c.bf16 %v17, %v17
    %v20 = vld [vmem:[%s1] sm:$0xf]
    %v21 = vld [vmem:[%s1 + $0x4] sm:$0xf]
    %v22 = vld [vmem:[%s1 + $0x8] sm:$0xf]
    %v23 = vld [vmem:[%s1 + $0xc] sm:$0xf]
    %v24 = vld [vmem:[%s1 + $0x10] sm:$0xf]
    %v25 = vld [vmem:[%s1 + $0x14] sm:$0xf]
    %v26 = vld [vmem:[%s1 + $0x18] sm:$0xf]
    %v27 = vld [vmem:[%s1 + $0x1c] sm:$0xf]
    %v30 = vunpack.c.l.b16 %v18
    %v31 = vunpack.c.l.b16 %v19
    %v32 = vrot.slane %v31, 7
    %vm33 = vcmask 1041409
    %v34 = vsel %vm33, %v32, %v30
    %v35 = vpack.c.b16 %v34, %v34
    %v44 = vunpack.c.l.b16 %v20
    %v45 = vunpack.c.l.b16 %v21
    %v46 = vunpack.c.l.b16 %v22
    %v47 = vunpack.c.l.b16 %v23
    %v48 = vunpack.c.l.b16 %v24
    %v49 = vunpack.c.l.b16 %v25
    %v50 = vunpack.c.l.b16 %v26
    %v51 = vunpack.c.l.b16 %v27
    %v52 = vpack.c.b16 %v45, %v44
    %v53 = vpack.c.b16 %v47, %v46
    %v54 = vpack.c.b16 %v49, %v48
    %v55 = vpack.c.b16 %v51, %v50
    %vm60 = vcmask 523264
    %v62 = vsel %vm60, %v35, 0
    %64 = vmatprep.subr.bf16.mxu0 0
    %65 = vmatpush1.bf16.msra.mxu0 %v52
    %66 = vmatprep.subr.bf16.mxu0 0
    %67 = vmatpush1.bf16.msra.mxu0 %v53
    %68 = vmatprep.subr.bf16.mxu0 0
    %69 = vmatpush1.bf16.msra.mxu0 %v54
    %70 = vmatprep.subr.bf16.mxu0 0
    %71 = vmatpush1.bf16.msra.mxu0 %v55
    %72 = vmatprep.subr.bf16.mxu0 0
    %73 = vmatpush1.bf16.msra.mxu0 0
    %74 = vmatprep.subr.bf16.mxu0 0
    %75 = vmatpush1.bf16.msra.mxu0 0
    %76 = vmatprep.subr.bf16.mxu0 0
    %77 = vmatpush1.bf16.msra.mxu0 0
    %78 = vmatprep.subr.bf16.mxu0 0
    %79 = vmatpush1.bf16.msra.mxu0 0
    %80 = vmatprep.subr.bf16.mxu0 0
    %81 = vmatpush1.bf16.msra.mxu0 0
    %82 = vmatprep.subr.bf16.mxu0 0
    %83 = vmatpush1.bf16.msra.mxu0 0
    %84 = vmatprep.subr.bf16.mxu0 0
    %85 = vmatpush1.bf16.msra.mxu0 0
    %86 = vmatprep.subr.bf16.mxu0 0
    %87 = vmatpush1.bf16.msra.mxu0 0
    %88 = vmatprep.subr.bf16.mxu0 0
    %89 = vmatpush1.bf16.msra.mxu0 0
    %90 = vmatprep.subr.bf16.mxu0 0
    %91 = vmatpush1.bf16.msra.mxu0 0
    %92 = vmatprep.subr.bf16.mxu0 0
    %93 = vmatpush1.bf16.msra.mxu0 0
    %94 = vmatprep.subr.bf16.mxu0 0
    %95 = vmatpush1.bf16.msra.mxu0 0
    %96 = vmatprep.mubr.bf16.mxu0 0
    %97 = vmatmul.mubr.bf16.gmra.mrb[0].mxu0 %v62
    %v98 = vpop.f32.mrb[0].mxu0
    %v99 = vadd.f32 0.0, %v98
    %v100 = vpop.f32.mrb[0].mxu0
    %v101 = vpop.f32.mrb[0].mxu0
    %v102 = vpop.f32.mrb[0].mxu0
    %103 = vdwg.mxu0
    %v104 = vpack.c.bf16 %v99, %v99
    %v105 = vld [vmem:[%s2] sm:$0xf]
    %v106 = vld [vmem:[%s2 + $0x4] sm:$0xf]
    %v107 = vld [vmem:[%s2 + $0x8] sm:$0xf]
    %v108 = vld [vmem:[%s2 + $0xc] sm:$0xf]
    %v109 = vld [vmem:[%s0 + $0x1] sm:$0x1]
    %v110 = vld [vmem:[%s0 + $0x5] sm:$0x1]
    %v111 = vpack.c.bf16 %v109, %v109
    %v112 = vpack.c.bf16 %v110, %v110
    %s113 = scalar_lea.vmem %s1, 32
    %v114 = vld [vmem:[%s113] sm:$0xf]
    %v115 = vld [vmem:[%s113 + $0x4] sm:$0xf]
    %v116 = vld [vmem:[%s113 + $0x8] sm:$0xf]
    %v117 = vld [vmem:[%s113 + $0xc] sm:$0xf]
    %v118 = vld [vmem:[%s113 + $0x10] sm:$0xf]
    %v119 = vld [vmem:[%s113 + $0x14] sm:$0xf]
    %v120 = vld [vmem:[%s113 + $0x18] sm:$0xf]
    %v121 = vld [vmem:[%s113 + $0x1c] sm:$0xf]
    %v124 = vunpack.c.l.b16 %v111
    %v125 = vunpack.c.l.b16 %v112
    %v126 = vrot.slane %v125, 7
    %v127 = vsel %vm33, %v126, %v124
    %v128 = vpack.c.b16 %v127, %v127
    %v137 = vunpack.c.l.b16 %v114
    %v138 = vunpack.c.l.b16 %v115
    %v139 = vunpack.c.l.b16 %v116
    %v140 = vunpack.c.l.b16 %v117
    %v141 = vunpack.c.l.b16 %v118
    %v142 = vunpack.c.l.b16 %v119
    %v143 = vunpack.c.l.b16 %v120
    %v144 = vunpack.c.l.b16 %v121
    %v145 = vpack.c.b16 %v138, %v137
    %v146 = vpack.c.b16 %v140, %v139
    %v147 = vpack.c.b16 %v142, %v141
    %v148 = vpack.c.b16 %v144, %v143
    %v154 = vsel %vm60, %v128, 0
    %156 = vmatprep.subr.bf16.mxu0 0
    %157 = vmatpush1.bf16.msra.mxu0 %v145
    %158 = vmatprep.subr.bf16.mxu0 0
    %159 = vmatpush1.bf16.msra.mxu0 %v146
    %160 = vmatprep.subr.bf16.mxu0 0
    %161 = vmatpush1.bf16.msra.mxu0 %v147
    %162 = vmatprep.subr.bf16.mxu0 0
    %163 = vmatpush1.bf16.msra.mxu0 %v148
    %164 = vmatprep.subr.bf16.mxu0 0
    %165 = vmatpush1.bf16.msra.mxu0 0
    %166 = vmatprep.subr.bf16.mxu0 0
    %167 = vmatpush1.bf16.msra.mxu0 0
    %168 = vmatprep.subr.bf16.mxu0 0
    %169 = vmatpush1.bf16.msra.mxu0 0
    %170 = vmatprep.subr.bf16.mxu0 0
    %171 = vmatpush1.bf16.msra.mxu0 0
    %172 = vmatprep.subr.bf16.mxu0 0
    %173 = vmatpush1.bf16.msra.mxu0 0
    %174 = vmatprep.subr.bf16.mxu0 0
    %175 = vmatpush1.bf16.msra.mxu0 0
    %176 = vmatprep.subr.bf16.mxu0 0
    %177 = vmatpush1.bf16.msra.mxu0 0
    %178 = vmatprep.subr.bf16.mxu0 0
    %179 = vmatpush1.bf16.msra.mxu0 0
    %180 = vmatprep.subr.bf16.mxu0 0
    %181 = vmatpush1.bf16.msra.mxu0 0
    %182 = vmatprep.subr.bf16.mxu0 0
    %183 = vmatpush1.bf16.msra.mxu0 0
    %184 = vmatprep.subr.bf16.mxu0 0
    %185 = vmatpush1.bf16.msra.mxu0 0
    %186 = vmatprep.subr.bf16.mxu0 0
    %187 = vmatpush1.bf16.msra.mxu0 0
    %188 = vmatprep.mubr.bf16.mxu0 0
    %189 = vmatmul.mubr.bf16.gmra.mrb[0].mxu0 %v154
    %v190 = vpop.f32.mrb[0].mxu0
    %v191 = vadd.f32 0.0, %v190
    %v192 = vpop.f32.mrb[0].mxu0
    %v193 = vpop.f32.mrb[0].mxu0
    %v194 = vpop.f32.mrb[0].mxu0
    %195 = vdwg.mxu0
    %v196 = vpack.c.bf16 %v191, %v191
    %v197 = vld [vmem:[%s2 + $0x10] sm:$0xf]
    %v198 = vld [vmem:[%s2 + $0x14] sm:$0xf]
    %v199 = vld [vmem:[%s2 + $0x18] sm:$0xf]
    %v200 = vld [vmem:[%s2 + $0x1c] sm:$0xf]
    %v205 = vunpack.c.l.b16 %v197
    %v206 = vunpack.c.l.b16 %v198
    %v207 = vunpack.c.l.b16 %v199
    %v208 = vunpack.c.l.b16 %v200
    %v209 = vpack.c.b16 %v206, %v205
    %v210 = vpack.c.b16 %v208, %v207
    %vm213 = vcmask 261120
    %v215 = vsel %vm213, %v196, 0
    %217 = vmatprep.subr.bf16.mxu0 0
    %218 = vmatpush1.bf16.msra.mxu0 %v209
    %219 = vmatprep.subr.bf16.mxu0 0
    %220 = vmatpush1.bf16.msra.mxu0 %v210
    %221 = vmatprep.subr.bf16.mxu0 0
    %222 = vmatpush1.bf16.msra.mxu0 0
    %223 = vmatprep.subr.bf16.mxu0 0
    %224 = vmatpush1.bf16.msra.mxu0 0
    %225 = vmatprep.subr.bf16.mxu0 0
    %226 = vmatpush1.bf16.msra.mxu0 0
    %227 = vmatprep.subr.bf16.mxu0 0
    %228 = vmatpush1.bf16.msra.mxu0 0
    %229 = vmatprep.subr.bf16.mxu0 0
    %230 = vmatpush1.bf16.msra.mxu0 0
    %231 = vmatprep.subr.bf16.mxu0 0
    %232 = vmatpush1.bf16.msra.mxu0 0
    %233 = vmatprep.subr.bf16.mxu0 0
    %234 = vmatpush1.bf16.msra.mxu0 0
    %235 = vmatprep.subr.bf16.mxu0 0
    %236 = vmatpush1.bf16.msra.mxu0 0
    %237 = vmatprep.subr.bf16.mxu0 0
    %238 = vmatpush1.bf16.msra.mxu0 0
    %239 = vmatprep.subr.bf16.mxu0 0
    %240 = vmatpush1.bf16.msra.mxu0 0
    %241 = vmatprep.subr.bf16.mxu0 0
    %242 = vmatpush1.bf16.msra.mxu0 0
    %243 = vmatprep.subr.bf16.mxu0 0
    %244 = vmatpush1.bf16.msra.mxu0 0
    %245 = vmatprep.subr.bf16.mxu0 0
    %246 = vmatpush1.bf16.msra.mxu0 0
    %247 = vmatprep.subr.bf16.mxu0 0
    %248 = vmatpush1.bf16.msra.mxu0 0
    %249 = vmatprep.mubr.bf16.mxu0 0
    %250 = vmatmul.mubr.bf16.gmra.mrb[0].mxu0 %v215
    %v251 = vpop.f32.mrb[0].mxu0
    %v252 = vadd.f32 0.0, %v251
    %v253 = vpop.f32.mrb[0].mxu0
    %v254 = vpop.f32.mrb[0].mxu0
    %v255 = vpop.f32.mrb[0].mxu0
    %256 = vdwg.mxu0
    %v261 = vunpack.c.l.b16 %v105
    %v262 = vunpack.c.l.b16 %v106
    %v263 = vunpack.c.l.b16 %v107
    %v264 = vunpack.c.l.b16 %v108
    %v265 = vpack.c.b16 %v262, %v261
    %v266 = vpack.c.b16 %v264, %v263
    %v270 = vsel %vm213, %v104, 0
    %272 = vmatprep.subr.bf16.mxu0 0
    %273 = vmatpush1.bf16.msra.mxu0 %v265
    %274 = vmatprep.subr.bf16.mxu0 0
    %275 = vmatpush1.bf16.msra.mxu0 %v266
    %276 = vmatprep.subr.bf16.mxu0 0
    %277 = vmatpush1.bf16.msra.mxu0 0
    %278 = vmatprep.subr.bf16.mxu0 0
    %279 = vmatpush1.bf16.msra.mxu0 0
    %280 = vmatprep.subr.bf16.mxu0 0
    %281 = vmatpush1.bf16.msra.mxu0 0
    %282 = vmatprep.subr.bf16.mxu0 0
    %283 = vmatpush1.bf16.msra.mxu0 0
    %284 = vmatprep.subr.bf16.mxu0 0
    %285 = vmatpush1.bf16.msra.mxu0 0
    %286 = vmatprep.subr.bf16.mxu0 0
    %287 = vmatpush1.bf16.msra.mxu0 0
    %288 = vmatprep.subr.bf16.mxu0 0
    %289 = vmatpush1.bf16.msra.mxu0 0
    %290 = vmatprep.subr.bf16.mxu0 0
    %291 = vmatpush1.bf16.msra.mxu0 0
    %292 = vmatprep.subr.bf16.mxu0 0
    %293 = vmatpush1.bf16.msra.mxu0 0
    %294 = vmatprep.subr.bf16.mxu0 0
    %295 = vmatpush1.bf16.msra.mxu0 0
    %296 = vmatprep.subr.bf16.mxu0 0
    %297 = vmatpush1.bf16.msra.mxu0 0
    %298 = vmatprep.subr.bf16.mxu0 0
    %299 = vmatpush1.bf16.msra.mxu0 0
    %300 = vmatprep.subr.bf16.mxu0 0
    %301 = vmatpush1.bf16.msra.mxu0 0
    %302 = vmatprep.subr.bf16.mxu0 0
    %303 = vmatpush1.bf16.msra.mxu0 0
    %304 = vmatprep.mubr.bf16.mxu0 0
    %305 = vmatmul.mubr.bf16.gmra.mrb[0].mxu0 %v270
    %v306 = vpop.f32.mrb[0].mxu0
    %v307 = vadd.f32 %v252, %v306
    %v308 = vpop.f32.mrb[0].mxu0
    %v309 = vpop.f32.mrb[0].mxu0
    %v310 = vpop.f32.mrb[0].mxu0
    %311 = vdwg.mxu0
    %v312 = vld [vmem:[%s0 + $0x2] sm:$0x1]
    %v313 = vld [vmem:[%s0 + $0x6] sm:$0x1]
    %v314 = vpack.c.bf16 %v312, %v312
    %v315 = vpack.c.bf16 %v313, %v313
    %s316 = scalar_lea.vmem %s1, 64
    %v317 = vld [vmem:[%s316] sm:$0xf]
    %v318 = vld [vmem:[%s316 + $0x4] sm:$0xf]
    %v319 = vld [vmem:[%s316 + $0x8] sm:$0xf]
    %v320 = vld [vmem:[%s316 + $0xc] sm:$0xf]
    %v321 = vld [vmem:[%s316 + $0x10] sm:$0xf]
    %v322 = vld [vmem:[%s316 + $0x14] sm:$0xf]
    %v323 = vld [vmem:[%s316 + $0x18] sm:$0xf]
    %v324 = vld [vmem:[%s316 + $0x1c] sm:$0xf]
    %v327 = vunpack.c.l.b16 %v314
    %v328 = vunpack.c.l.b16 %v315
    %v329 = vrot.slane %v328, 7
    %v330 = vsel %vm33, %v329, %v327
    %v331 = vpack.c.b16 %v330, %v330
    %v340 = vunpack.c.l.b16 %v317
    %v341 = vunpack.c.l.b16 %v318
    %v342 = vunpack.c.l.b16 %v319
    %v343 = vunpack.c.l.b16 %v320
    %v344 = vunpack.c.l.b16 %v321
    %v345 = vunpack.c.l.b16 %v322
    %v346 = vunpack.c.l.b16 %v323
    %v347 = vunpack.c.l.b16 %v324
    %v348 = vpack.c.b16 %v341, %v340
    %v349 = vpack.c.b16 %v343, %v342
    %v350 = vpack.c.b16 %v345, %v344
    %v351 = vpack.c.b16 %v347, %v346
    %v357 = vsel %vm60, %v331, 0
    %359 = vmatprep.subr.bf16.mxu0 0
    %360 = vmatpush1.bf16.msra.mxu0 %v348
    %361 = vmatprep.subr.bf16.mxu0 0
    %362 = vmatpush1.bf16.msra.mxu0 %v349
    %363 = vmatprep.subr.bf16.mxu0 0
    %364 = vmatpush1.bf16.msra.mxu0 %v350
    %365 = vmatprep.subr.bf16.mxu0 0
    %366 = vmatpush1.bf16.msra.mxu0 %v351
    %367 = vmatprep.subr.bf16.mxu0 0
    %368 = vmatpush1.bf16.msra.mxu0 0
    %369 = vmatprep.subr.bf16.mxu0 0
    %370 = vmatpush1.bf16.msra.mxu0 0
    %371 = vmatprep.subr.bf16.mxu0 0
    %372 = vmatpush1.bf16.msra.mxu0 0
    %373 = vmatprep.subr.bf16.mxu0 0
    %374 = vmatpush1.bf16.msra.mxu0 0
    %375 = vmatprep.subr.bf16.mxu0 0
    %376 = vmatpush1.bf16.msra.mxu0 0
    %377 = vmatprep.subr.bf16.mxu0 0
    %378 = vmatpush1.bf16.msra.mxu0 0
    %379 = vmatprep.subr.bf16.mxu0 0
    %380 = vmatpush1.bf16.msra.mxu0 0
    %381 = vmatprep.subr.bf16.mxu0 0
    %382 = vmatpush1.bf16.msra.mxu0 0
    %383 = vmatprep.subr.bf16.mxu0 0
    %384 = vmatpush1.bf16.msra.mxu0 0
    %385 = vmatprep.subr.bf16.mxu0 0
    %386 = vmatpush1.bf16.msra.mxu0 0
    %387 = vmatprep.subr.bf16.mxu0 0
    %388 = vmatpush1.bf16.msra.mxu0 0
    %389 = vmatprep.subr.bf16.mxu0 0
    %390 = vmatpush1.bf16.msra.mxu0 0
    %391 = vmatprep.mubr.bf16.mxu0 0
    %392 = vmatmul.mubr.bf16.gmra.mrb[0].mxu0 %v357
    %v393 = vpop.f32.mrb[0].mxu0
    %v394 = vadd.f32 0.0, %v393
    %v395 = vpop.f32.mrb[0].mxu0
    %v396 = vpop.f32.mrb[0].mxu0
    %v397 = vpop.f32.mrb[0].mxu0
    %398 = vdwg.mxu0
    %v399 = vpack.c.bf16 %v394, %v394
    %v400 = vld [vmem:[%s2 + $0x20] sm:$0xf]
    %v401 = vld [vmem:[%s2 + $0x24] sm:$0xf]
    %v402 = vld [vmem:[%s2 + $0x28] sm:$0xf]
    %v403 = vld [vmem:[%s2 + $0x2c] sm:$0xf]
    %v408 = vunpack.c.l.b16 %v400
    %v409 = vunpack.c.l.b16 %v401
    %v410 = vunpack.c.l.b16 %v402
    %v411 = vunpack.c.l.b16 %v403
    %v412 = vpack.c.b16 %v409, %v408
    %v413 = vpack.c.b16 %v411, %v410
    %v417 = vsel %vm213, %v399, 0
    %419 = vmatprep.subr.bf16.mxu0 0
    %420 = vmatpush1.bf16.msra.mxu0 %v412
    %421 = vmatprep.subr.bf16.mxu0 0
    %422 = vmatpush1.bf16.msra.mxu0 %v413
    %423 = vmatprep.subr.bf16.mxu0 0
    %424 = vmatpush1.bf16.msra.mxu0 0
    %425 = vmatprep.subr.bf16.mxu0 0
    %426 = vmatpush1.bf16.msra.mxu0 0
    %427 = vmatprep.subr.bf16.mxu0 0
    %428 = vmatpush1.bf16.msra.mxu0 0
    %429 = vmatprep.subr.bf16.mxu0 0
    %430 = vmatpush1.bf16.msra.mxu0 0
    %431 = vmatprep.subr.bf16.mxu0 0
    %432 = vmatpush1.bf16.msra.mxu0 0
    %433 = vmatprep.subr.bf16.mxu0 0
    %434 = vmatpush1.bf16.msra.mxu0 0
    %435 = vmatprep.subr.bf16.mxu0 0
    %436 = vmatpush1.bf16.msra.mxu0 0
    %437 = vmatprep.subr.bf16.mxu0 0
    %438 = vmatpush1.bf16.msra.mxu0 0
    %439 = vmatprep.subr.bf16.mxu0 0
    %440 = vmatpush1.bf16.msra.mxu0 0
    %441 = vmatprep.subr.bf16.mxu0 0
    %442 = vmatpush1.bf16.msra.mxu0 0
    %443 = vmatprep.subr.bf16.mxu0 0
    %444 = vmatpush1.bf16.msra.mxu0 0
    %445 = vmatprep.subr.bf16.mxu0 0
    %446 = vmatpush1.bf16.msra.mxu0 0
    %447 = vmatprep.subr.bf16.mxu0 0
    %448 = vmatpush1.bf16.msra.mxu0 0
    %449 = vmatprep.subr.bf16.mxu0 0
    %450 = vmatpush1.bf16.msra.mxu0 0
    %451 = vmatprep.mubr.bf16.mxu0 0
    %452 = vmatmul.mubr.bf16.gmra.mrb[0].mxu0 %v417
    %v453 = vpop.f32.mrb[0].mxu0
    %v454 = vadd.f32 0.0, %v453
    %v455 = vpop.f32.mrb[0].mxu0
    %v456 = vpop.f32.mrb[0].mxu0
    %v457 = vpop.f32.mrb[0].mxu0
    %458 = vdwg.mxu0
    %v459 = vadd.f32 %v307, %v454
    %v460 = vld [vmem:[%s0 + $0x3] sm:$0x1]
    %v461 = vld [vmem:[%s0 + $0x7] sm:$0x1]
    %v462 = vpack.c.bf16 %v460, %v460
    %v463 = vpack.c.bf16 %v461, %v461
    %s464 = scalar_lea.vmem %s1, 96
    %v465 = vld [vmem:[%s464] sm:$0xf]
    %v466 = vld [vmem:[%s464 + $0x4] sm:$0xf]
    %v467 = vld [vmem:[%s464 + $0x8] sm:$0xf]
    %v468 = vld [vmem:[%s464 + $0xc] sm:$0xf]
    %v469 = vld [vmem:[%s464 + $0x10] sm:$0xf]
    %v470 = vld [vmem:[%s464 + $0x14] sm:$0xf]
    %v471 = vld [vmem:[%s464 + $0x18] sm:$0xf]
    %v472 = vld [vmem:[%s464 + $0x1c] sm:$0xf]
    %v475 = vunpack.c.l.b16 %v462
    %v476 = vunpack.c.l.b16 %v463
    %v477 = vrot.slane %v476, 7
    %v478 = vsel %vm33, %v477, %v475
    %v479 = vpack.c.b16 %v478, %v478
    %v488 = vunpack.c.l.b16 %v465
    %v489 = vunpack.c.l.b16 %v466
    %v490 = vunpack.c.l.b16 %v467
    %v491 = vunpack.c.l.b16 %v468
    %v492 = vunpack.c.l.b16 %v469
    %v493 = vunpack.c.l.b16 %v470
    %v494 = vunpack.c.l.b16 %v471
    %v495 = vunpack.c.l.b16 %v472
    %v496 = vpack.c.b16 %v489, %v488
    %v497 = vpack.c.b16 %v491, %v490
    %v498 = vpack.c.b16 %v493, %v492
    %v499 = vpack.c.b16 %v495, %v494
    %v505 = vsel %vm60, %v479, 0
    %507 = vmatprep.subr.bf16.mxu0 0
    %508 = vmatpush1.bf16.msra.mxu0 %v496
    %509 = vmatprep.subr.bf16.mxu0 0
    %510 = vmatpush1.bf16.msra.mxu0 %v497
    %511 = vmatprep.subr.bf16.mxu0 0
    %512 = vmatpush1.bf16.msra.mxu0 %v498
    %513 = vmatprep.subr.bf16.mxu0 0
    %514 = vmatpush1.bf16.msra.mxu0 %v499
    %515 = vmatprep.subr.bf16.mxu0 0
    %516 = vmatpush1.bf16.msra.mxu0 0
    %517 = vmatprep.subr.bf16.mxu0 0
    %518 = vmatpush1.bf16.msra.mxu0 0
    %519 = vmatprep.subr.bf16.mxu0 0
    %520 = vmatpush1.bf16.msra.mxu0 0
    %521 = vmatprep.subr.bf16.mxu0 0
    %522 = vmatpush1.bf16.msra.mxu0 0
    %523 = vmatprep.subr.bf16.mxu0 0
    %524 = vmatpush1.bf16.msra.mxu0 0
    %525 = vmatprep.subr.bf16.mxu0 0
    %526 = vmatpush1.bf16.msra.mxu0 0
    %527 = vmatprep.subr.bf16.mxu0 0
    %528 = vmatpush1.bf16.msra.mxu0 0
    %529 = vmatprep.subr.bf16.mxu0 0
    %530 = vmatpush1.bf16.msra.mxu0 0
    %531 = vmatprep.subr.bf16.mxu0 0
    %532 = vmatpush1.bf16.msra.mxu0 0
    %533 = vmatprep.subr.bf16.mxu0 0
    %534 = vmatpush1.bf16.msra.mxu0 0
    %535 = vmatprep.subr.bf16.mxu0 0
    %536 = vmatpush1.bf16.msra.mxu0 0
    %537 = vmatprep.subr.bf16.mxu0 0
    %538 = vmatpush1.bf16.msra.mxu0 0
    %539 = vmatprep.mubr.bf16.mxu0 0
    %540 = vmatmul.mubr.bf16.gmra.mrb[0].mxu0 %v505
    %v541 = vpop.f32.mrb[0].mxu0
    %v542 = vadd.f32 0.0, %v541
    %v543 = vpop.f32.mrb[0].mxu0
    %v544 = vpop.f32.mrb[0].mxu0
    %v545 = vpop.f32.mrb[0].mxu0
    %546 = vdwg.mxu0
    %v547 = vpack.c.bf16 %v542, %v542
    %v548 = vld [vmem:[%s2 + $0x30] sm:$0xf]
    %v549 = vld [vmem:[%s2 + $0x34] sm:$0xf]
    %v550 = vld [vmem:[%s2 + $0x38] sm:$0xf]
    %v551 = vld [vmem:[%s2 + $0x3c] sm:$0xf]
    %v556 = vunpack.c.l.b16 %v548
    %v557 = vunpack.c.l.b16 %v549
    %v558 = vunpack.c.l.b16 %v550
    %v559 = vunpack.c.l.b16 %v551
    %v560 = vpack.c.b16 %v557, %v556
    %v561 = vpack.c.b16 %v559, %v558
    %v565 = vsel %vm213, %v547, 0
    %567 = vmatprep.subr.bf16.mxu0 0
    %568 = vmatpush1.bf16.msra.mxu0 %v560
    %569 = vmatprep.subr.bf16.mxu0 0
    %570 = vmatpush1.bf16.msra.mxu0 %v561
    %571 = vmatprep.subr.bf16.mxu0 0
    %572 = vmatpush1.bf16.msra.mxu0 0
    %573 = vmatprep.subr.bf16.mxu0 0
    %574 = vmatpush1.bf16.msra.mxu0 0
    %575 = vmatprep.subr.bf16.mxu0 0
    %576 = vmatpush1.bf16.msra.mxu0 0
    %577 = vmatprep.subr.bf16.mxu0 0
    %578 = vmatpush1.bf16.msra.mxu0 0
    %579 = vmatprep.subr.bf16.mxu0 0
    %580 = vmatpush1.bf16.msra.mxu0 0
    %581 = vmatprep.subr.bf16.mxu0 0
    %582 = vmatpush1.bf16.msra.mxu0 0
    %583 = vmatprep.subr.bf16.mxu0 0
    %584 = vmatpush1.bf16.msra.mxu0 0
    %585 = vmatprep.subr.bf16.mxu0 0
    %586 = vmatpush1.bf16.msra.mxu0 0
    %587 = vmatprep.subr.bf16.mxu0 0
    %588 = vmatpush1.bf16.msra.mxu0 0
    %589 = vmatprep.subr.bf16.mxu0 0
    %590 = vmatpush1.bf16.msra.mxu0 0
    %591 = vmatprep.subr.bf16.mxu0 0
    %592 = vmatpush1.bf16.msra.mxu0 0
    %593 = vmatprep.subr.bf16.mxu0 0
    %594 = vmatpush1.bf16.msra.mxu0 0
    %595 = vmatprep.subr.bf16.mxu0 0
    %596 = vmatpush1.bf16.msra.mxu0 0
    %597 = vmatprep.subr.bf16.mxu0 0
    %598 = vmatpush1.bf16.msra.mxu0 0
    %599 = vmatprep.mubr.bf16.mxu0 0
    %600 = vmatmul.mubr.bf16.gmra.mrb[0].mxu0 %v565
    %v601 = vpop.f32.mrb[0].mxu0
    %v602 = vadd.f32 0.0, %v601
    %v603 = vpop.f32.mrb[0].mxu0
    %v604 = vpop.f32.mrb[0].mxu0
    %v605 = vpop.f32.mrb[0].mxu0
    %606 = vdwg.mxu0
    %v607 = vadd.f32 %v459, %v602
    %vm608 = vcmask 517120
    %609 = vst.msk [vmem:[#allocation2] sm:$0x3] %vm608, %v607
    // Predicated region
    $region14: #{mla_forward.7} parent=1 // pred_check
      _
    $region15: #{mla_forward.7} parent=1 // pred_check_branch
      %611 = sbr.rel (0) target = $region17
    $region16: #{mla_forward.7} parent=1 // pred_region
      %s613 = ssub.s32 32, 32
      %614 = vsyncadd [#allocation3], %s613
      %s616 = sshll.u32 [#allocation2], 4
      %s617 = int_to_ptr.vmem [resolvable:$true] %s616
      %619 = dma.vmem_to_hbm [thread:$0]  %s617, 32, %s3, [#allocation3]
    $region17: #{mla_forward.7} parent=1 // pred_fallthru
      _
    // Predicated region
    $region18: #{mla_forward.7} parent=1 // pred_check
      _
    $region19: #{mla_forward.7} parent=1 // pred_check_branch
      %621 = sbr.rel (0) target = $region21
    $region20: #{mla_forward.7} parent=1 // pred_region
      %622 = dma.done [#allocation3], 32
    $region21: #{mla_forward.7} parent=1 // pred_fallthru
      _
    %623 = vsyncpa [#allocation3], 1

</llo_original>
